<compile_context>
chip_gen: v5e
topology: v5e:2x2
jax: 0.10.0
libtpu: 0.0.40
codegen_flags: <defaults>
</compile_context>

<pallas_src>
import functools

import jax
import jax.numpy as jnp
from jax.experimental import pallas as pl
from jax.experimental.pallas import tpu as pltpu

BN_EPS = 1e-5
LANE = 128     # output channels padded to a multiple of the lane width
SUB = 16       # contraction (K) dims padded only to the bf16 sublane pack
N_CHUNKS = 2   # leading "parallel" grid axis -> megacore split on v7x


def _round_up(v, m):
    return (v + m - 1) // m * m


_VMEM_LIMIT_CACHE = [None]


def _vmem_limit_bytes():
    """~3/4 of physical VMEM: ~96 MiB on v5e/v6e (128 MiB), ~48 MiB on v7x (64 MiB)."""
    if _VMEM_LIMIT_CACHE[0] is None:
        limit = 48 * 1024 * 1024   # safe fallback on every generation
        try:
            info = pltpu.get_tpu_info()
            for name in ("vmem_capacity_bytes", "vmem_size_bytes", "vmem_bytes"):
                cap = getattr(info, name, None)
                if cap:
                    limit = int(min(cap * 3 // 4, 100 * 1024 * 1024))
                    break
        except Exception:
            pass
        _VMEM_LIMIT_CACHE[0] = limit
    return _VMEM_LIMIT_CACHE[0]


# ------------------------------ Pallas kernels ------------------------------

def _conv_stats_kernel(p_ref, w_ref, y_ref, ss_ref, acc_ref):
    """One row tile of an im2col conv matmul + BN sum / sum-of-squares."""
    i = pl.program_id(1)
    y = jnp.dot(p_ref[...], w_ref[...], preferred_element_type=jnp.float32)
    y_ref[...] = y.astype(y_ref.dtype)

    @pl.when(i == 0)
    def _():
        acc_ref[...] = jnp.zeros_like(acc_ref)

    # Zero-padded rows contribute 0 to both sums, so the padded grid is exact.
    acc_ref[0:1, :] += jnp.sum(y, axis=0, keepdims=True)
    acc_ref[1:2, :] += jnp.sum(y * y, axis=0, keepdims=True)

    @pl.when(i == pl.num_programs(1) - 1)
    def _():
        ss_ref[...] = acc_ref[...]


def _conv2_shortcut_kernel(p2_ref, w2_ref, ps_ref, ws_ref,
                           y2_ref, ys_ref, ss2_ref, sss_ref,
                           acc2_ref, accs_ref):
    """conv_2 and the 1x1 shortcut conv on the same row tile (+ BN stats)."""
    i = pl.program_id(1)
    y2 = jnp.dot(p2_ref[...], w2_ref[...], preferred_element_type=jnp.float32)
    ys = jnp.dot(ps_ref[...], ws_ref[...], preferred_element_type=jnp.float32)
    y2_ref[...] = y2.astype(y2_ref.dtype)
    ys_ref[...] = ys.astype(ys_ref.dtype)

    @pl.when(i == 0)
    def _():
        acc2_ref[...] = jnp.zeros_like(acc2_ref)
        accs_ref[...] = jnp.zeros_like(accs_ref)

    acc2_ref[0:1, :] += jnp.sum(y2, axis=0, keepdims=True)
    acc2_ref[1:2, :] += jnp.sum(y2 * y2, axis=0, keepdims=True)
    accs_ref[0:1, :] += jnp.sum(ys, axis=0, keepdims=True)
    accs_ref[1:2, :] += jnp.sum(ys * ys, axis=0, keepdims=True)

    @pl.when(i == pl.num_programs(1) - 1)
    def _():
        ss2_ref[...] = acc2_ref[...]
        sss_ref[...] = accs_ref[...]


def _bn_relu_kernel(y_ref, sc_ref, sh_ref, o_ref):
    # BN affine (precomputed f32 scale/shift) + ReLU, per row tile.
    y = y_ref[...].astype(jnp.float32)
    o_ref[...] = jnp.maximum(y * sc_ref[...] + sh_ref[...], 0.0).astype(o_ref.dtype)


def _bn_add_relu_kernel(y2_ref, sc2_ref, sh2_ref, ys_ref, scs_ref, shs_ref, o_ref):
    h = y2_ref[...].astype(jnp.float32) * sc2_ref[...] + sh2_ref[...]
    s = ys_ref[...].astype(jnp.float32) * scs_ref[...] + shs_ref[...]
    o_ref[...] = jnp.maximum(h + s, 0.0).astype(o_ref.dtype)


# --------------------------- pallas_call wrappers ----------------------------

def _conv_stats(p, w, tile_m, c_pad, n_chunks, out_dtype):
    R, K = p.shape
    n_inner = R // (tile_m * n_chunks)
    itm = p.dtype.itemsize
    otm = jnp.dtype(out_dtype).itemsize
    cost = pl.CostEstimate(
        flops=2 * R * K * c_pad,
        transcendentals=0,
        bytes_accessed=(R * K * itm + K * c_pad * itm + R * c_pad * otm
                        + n_chunks * 8 * c_pad * 4))
    row_idx = lambda c, i: (c * n_inner + i, 0)
    return pl.pallas_call(
        _conv_stats_kernel,
        out_shape=(jax.ShapeDtypeStruct((R, c_pad), out_dtype),
                   jax.ShapeDtypeStruct((n_chunks * 8, c_pad), jnp.float32)),
        grid=(n_chunks, n_inner),
        in_specs=[pl.BlockSpec((tile_m, K), row_idx),
                  pl.BlockSpec((K, c_pad), lambda c, i: (0, 0))],
        out_specs=(pl.BlockSpec((tile_m, c_pad), row_idx),
                   pl.BlockSpec((8, c_pad), lambda c, i: (c, 0))),
        scratch_shapes=[pltpu.VMEM((8, c_pad), jnp.float32)],
        compiler_params=pltpu.CompilerParams(
            dimension_semantics=("parallel", "arbitrary"),
            vmem_limit_bytes=_vmem_limit_bytes()),
        cost_estimate=cost,
    )(p, w)


def _conv2_shortcut(p2, w2, ps, ws, tile_m, c_pad, n_chunks, out_dtype):
    R, K2 = p2.shape
    _, Ks = ps.shape
    n_inner = R // (tile_m * n_chunks)
    itm = p2.dtype.itemsize
    otm = jnp.dtype(out_dtype).itemsize
    cost = pl.CostEstimate(
        flops=2 * R * (K2 + Ks) * c_pad,
        transcendentals=0,
        bytes_accessed=(R * (K2 + Ks) * itm + (K2 + Ks) * c_pad * itm
                        + 2 * R * c_pad * otm + 2 * n_chunks * 8 * c_pad * 4))
    row_idx = lambda c, i: (c * n_inner + i, 0)
    stat_idx = lambda c, i: (c, 0)
    return pl.pallas_call(
        _conv2_shortcut_kernel,
        out_shape=(jax.ShapeDtypeStruct((R, c_pad), out_dtype),
                   jax.ShapeDtypeStruct((R, c_pad), out_dtype),
                   jax.ShapeDtypeStruct((n_chunks * 8, c_pad), jnp.float32),
                   jax.ShapeDtypeStruct((n_chunks * 8, c_pad), jnp.float32)),
        grid=(n_chunks, n_inner),
        in_specs=[pl.BlockSpec((tile_m, K2), row_idx),
                  pl.BlockSpec((K2, c_pad), lambda c, i: (0, 0)),
                  pl.BlockSpec((tile_m, Ks), row_idx),
                  pl.BlockSpec((Ks, c_pad), lambda c, i: (0, 0))],
        out_specs=(pl.BlockSpec((tile_m, c_pad), row_idx),
                   pl.BlockSpec((tile_m, c_pad), row_idx),
                   pl.BlockSpec((8, c_pad), stat_idx),
                   pl.BlockSpec((8, c_pad), stat_idx)),
        scratch_shapes=[pltpu.VMEM((8, c_pad), jnp.float32),
                        pltpu.VMEM((8, c_pad), jnp.float32)],
        compiler_params=pltpu.CompilerParams(
            dimension_semantics=("parallel", "arbitrary"),
            vmem_limit_bytes=_vmem_limit_bytes()),
        cost_estimate=cost,
    )(p2, w2, ps, ws)


def _bn_affine_relu(y, scale, shift, tile_m, out_dtype):
    R, C = y.shape
    row = pl.BlockSpec((tile_m, C), lambda i: (i, 0))
    vec = pl.BlockSpec((1, C), lambda i: (0, 0))
    return pl.pallas_call(
        _bn_relu_kernel,
        out_shape=jax.ShapeDtypeStruct((R, C), out_dtype),
        grid=(R // tile_m,),
        in_specs=[row, vec, vec],
        out_specs=row,
        compiler_params=pltpu.CompilerParams(
            dimension_semantics=("parallel",),   # megacore-shardable on v7x
            vmem_limit_bytes=_vmem_limit_bytes()),
    )(y, scale, shift)


def _bn_add_relu(y2, sc2, sh2, ys, scs, shs, tile_m):
    R, C = y2.shape
    row = pl.BlockSpec((tile_m, C), lambda i: (i, 0))
    vec = pl.BlockSpec((1, C), lambda i: (0, 0))
    return pl.pallas_call(
        _bn_add_relu_kernel,
        out_shape=jax.ShapeDtypeStruct((R, C), jnp.float32),
        grid=(R // tile_m,),
        in_specs=[row, vec, vec, row, vec, vec],
        out_specs=row,
        compiler_params=pltpu.CompilerParams(
            dimension_semantics=("parallel",),
            vmem_limit_bytes=_vmem_limit_bytes()),
    )(y2, sc2, sh2, ys, scs, shs)


# --------------------------------- host glue ---------------------------------

def _im2col(x_nhwc, k, stride, pad):
    """Extract (k x k) patches -> (N*Ho*Wo, k*k*C)."""
    N, H, W, C = x_nhwc.shape
    xp = jnp.pad(x_nhwc, ((0, 0), (pad, pad), (pad, pad), (0, 0)))
    Ho = (H + 2 * pad - k) // stride + 1
    Wo = (W + 2 * pad - k) // stride + 1
    cols = []
    for i in range(k):
        for j in range(k):
            cols.append(xp[:, i:i + Ho * stride:stride, j:j + Wo * stride:stride, :])
    patches = jnp.concatenate(cols, axis=-1)          # (N, Ho, Wo, k*k*C)
    return patches.reshape(N * Ho * Wo, k * k * C), (N, Ho, Wo)


def _w_oihw_to_mat(w):
    """(Cout, Cin, kh, kw) -> (kh*kw*Cin, Cout), matching _im2col ordering."""
    Cout, Cin, kh, kw = w.shape
    return jnp.transpose(w, (2, 3, 1, 0)).reshape(kh * kw * Cin, Cout)


def _pad2d(x, rows_to, cols_to):
    r, c = x.shape
    return jnp.pad(x, ((0, rows_to - r), (0, cols_to - c)))


def _pad_vec(v, cols_to):
    return jnp.pad(v.reshape(1, -1), ((0, 0), (0, cols_to - v.shape[0])))


def _bn_scale_shift(stats, gamma_p, beta_p, count):
    """Fold (sum, sumsq) + gamma/beta into per-channel scale/shift (f32)."""
    # NOTE: single-pass E[y^2]-E[y]^2 in f32; fine at these scales, consider a
    # centered/Welford merge for very large N*H*W.
    s = stats[0:1, :]
    sq = stats[1:2, :]
    mean = s / count
    var = jnp.maximum(sq / count - mean * mean, 0.0)   # biased variance
    inv = jax.lax.rsqrt(var + BN_EPS)
    scale = gamma_p * inv
    shift = beta_p - mean * scale
    return scale, shift


# --------------------------------- forward -----------------------------------

def conv_block_x2(x_nchw, params, stride, *, tile_m=512, ew_tile=1024,
                  matmul_dtype=jnp.bfloat16, n_chunks=N_CHUNKS):
    # bf16 operands + f32 MXU accumulation by default; set matmul_dtype=f32 for
    # tight validation.  BN stats / scale / shift are always f32.
    x = jnp.transpose(x_nchw, (0, 2, 3, 1)).astype(jnp.float32)   # NCHW -> NHWC
    N, H, W, Cin = x.shape
    Cout = params["w1"].shape[0]
    c_pad = _round_up(Cout, LANE)
    inter_dtype = jnp.bfloat16 if matmul_dtype == jnp.bfloat16 else jnp.float32

    # ---------------- stage 1: conv_1 -> bn_1 -> relu ----------------
    p1, (N, Ho, Wo) = _im2col(x, 3, stride, 1)
    rows = N * Ho * Wo

    # Conv row tile: clamp so tiny inputs don't over-pad; keep multiple of 8.
    tm = max(8, min(tile_m, _round_up(_round_up(rows, 8) // n_chunks, 8)))
    tm = _round_up(tm, 8)
    r_pad = _round_up(rows, tm * n_chunks)

    k1p = _round_up(p1.shape[1], SUB)                  # K padded to sublane only
    p1p = _pad2d(p1, r_pad, k1p).astype(matmul_dtype)
    w1p = _pad2d(_w_oihw_to_mat(params["w1"]), k1p, c_pad).astype(matmul_dtype)

    y1, st1 = _conv_stats(p1p, w1p, tm, c_pad, n_chunks, inter_dtype)
    st1 = st1.reshape(n_chunks, 8, c_pad).sum(axis=0)
    sc1, sh1 = _bn_scale_shift(st1, _pad_vec(params["g1"], c_pad),
                               _pad_vec(params["b1"], c_pad), rows)

    # Elementwise row tile: largest divisor of r_pad up to ew_tile.
    te = min(ew_tile, r_pad)
    while r_pad % te:
        te //= 2

    h1 = _bn_affine_relu(y1, sc1, sh1, te, inter_dtype)           # (r_pad, c_pad)

    # ------- stage 2: conv_2+bn_2, shortcut+bn, add, relu (fused conv) -------
    # TODO(synk): in-kernel halo'd patch formation + fused BN_1/ReLU prologue to
    # avoid this host-side im2col round trip.
    h1_img = h1[:rows, :Cout].reshape(N, Ho, Wo, Cout)
    p2, _ = _im2col(h1_img, 3, 1, 1)
    k2p = _round_up(p2.shape[1], SUB)
    p2p = _pad2d(p2, r_pad, k2p).astype(matmul_dtype)
    w2p = _pad2d(_w_oihw_to_mat(params["w2"]), k2p, c_pad).astype(matmul_dtype)

    ps = x[:, ::stride, ::stride, :].reshape(rows, Cin)           # 1x1 strided conv
    ksp = _round_up(Cin, SUB)
    psp = _pad2d(ps, r_pad, ksp).astype(matmul_dtype)
    wsp = _pad2d(_w_oihw_to_mat(params["ws"]), ksp, c_pad).astype(matmul_dtype)

    y2, ys, st2, sts = _conv2_shortcut(p2p, w2p, psp, wsp, tm, c_pad,
                                       n_chunks, inter_dtype)
    st2 = st2.reshape(n_chunks, 8, c_pad).sum(axis=0)
    sts = sts.reshape(n_chunks, 8, c_pad).sum(axis=0)
    sc2, sh2 = _bn_scale_shift(st2, _pad_vec(params["g2"], c_pad),
                               _pad_vec(params["b2"], c_pad), rows)
    scs, shs = _bn_scale_shift(sts, _pad_vec(params["gs"], c_pad),
                               _pad_vec(params["bs"], c_pad), rows)

    out = _bn_add_relu(y2, sc2, sh2, ys, scs, shs, te)            # f32 (r_pad, c_pad)
    out = out[:rows, :Cout].reshape(N, Ho, Wo, Cout)
    return jnp.transpose(out, (0, 3, 1, 2))                       # NHWC -> NCHW


# ----------------------------- pure-JAX reference ----------------------------

def _ref_forward(x, p, stride):
    def conv(x, w, s, pad):
        return jax.lax.conv_general_dilated(
            x, w, (s, s), ((pad, pad), (pad, pad)),
            dimension_numbers=("NCHW", "OIHW", "NCHW"))

    def bn(y, g, b):
        m = jnp.mean(y, axis=(0, 2, 3), keepdims=True)
        v = jnp.mean((y - m) ** 2, axis=(0, 2, 3), keepdims=True)
        return (y - m) * jax.lax.rsqrt(v + BN_EPS) * g.reshape(1, -1, 1, 1) \
               + b.reshape(1, -1, 1, 1)

    h = jax.nn.relu(bn(conv(x, p["w1"], stride, 1), p["g1"], p["b1"]))
    h = bn(conv(h, p["w2"], 1, 1), p["g2"], p["b2"])
    sc = bn(conv(x, p["ws"], stride, 0), p["gs"], p["bs"])
    return jax.nn.relu(h + sc)


# ---------------------------------- main -------------------------------------

if __name__ == "__main__":
    in_channels, out_channels, stride = 4, 8, 1
    N, H, W = 2, 16, 16

    key = jax.random.PRNGKey(0)
    k_x, k_w1, k_w2, k_ws = jax.random.split(key, 4)

    x = jax.random.normal(k_x, (N, in_channels, H, W), dtype=jnp.float32)
    params = {
        "w1": 0.1 * jax.random.normal(k_w1, (out_channels, in_channels, 3, 3), jnp.float32),
        "g1": jnp.ones((out_channels,), jnp.float32),
        "b1": jnp.zeros((out_channels,), jnp.float32),
        "w2": 0.1 * jax.random.normal(k_w2, (out_channels, out_channels, 3, 3), jnp.float32),
        "g2": jnp.ones((out_channels,), jnp.float32),
        "b2": jnp.zeros((out_channels,), jnp.float32),
        "ws": 0.1 * jax.random.normal(k_ws, (out_channels, in_channels, 1, 1), jnp.float32),
        "gs": jnp.ones((out_channels,), jnp.float32),
        "bs": jnp.zeros((out_channels,), jnp.float32),
    }

    fwd = jax.jit(functools.partial(conv_block_x2, stride=stride))
    out = jax.block_until_ready(fwd(x, params))
    ref = jax.block_until_ready(_ref_forward(x, params, stride))

    assert out.shape == ref.shape, (out.shape, ref.shape)
    # bf16 matmul operands + bf16 intermediates -> looser tolerance than f32.
    assert jnp.allclose(out, ref, atol=5e-2, rtol=5e-2), \
        float(jnp.max(jnp.abs(out - ref)))
    print("KERNEL_OK")
</pallas_src>

<mosaic_0001>
module attributes {stable_mosaic.version = 11 : i64} {
  func.func @_conv_stats_kernel(%arg0: i32, %arg1: i32, %arg2: memref<256x48xbf16, #tpu.memory_space<vmem>>, %arg3: memref<48x128xbf16, #tpu.memory_space<vmem>>, %arg4: memref<256x128xbf16, #tpu.memory_space<vmem>>, %arg5: memref<8x128xf32, #tpu.memory_space<vmem>>, %arg6: memref<8x128xf32, #tpu.memory_space<vmem>>) attributes {dimension_semantics = [#tpu.dimension_semantics<parallel>, #tpu.dimension_semantics<arbitrary>], iteration_bounds = array<i64: 2, 1>, scalar_prefetch = 0 : i64, scratch_operands = 1 : i64, tpu.core_type = #tpu.core_type<tc>, window_params = [{transform_indices = @transform_0, window_bounds = array<i64: 256, 48>}, {pipeline_mode = #tpu.pipeline_mode<synchronous>, transform_indices = @transform_1, window_bounds = array<i64: 48, 128>}, {transform_indices = @transform_2, window_bounds = array<i64: 256, 128>}, {transform_indices = @transform_3, window_bounds = array<i64: 8, 128>}]} {
    %c0 = arith.constant 0 : index
    %c0_0 = arith.constant 0 : index
    %0 = vector.load %arg2[%c0, %c0_0] : memref<256x48xbf16, #tpu.memory_space<vmem>>, vector<256x48xbf16>
    %c0_1 = arith.constant 0 : index
    %c0_2 = arith.constant 0 : index
    %1 = vector.load %arg3[%c0_1, %c0_2] : memref<48x128xbf16, #tpu.memory_space<vmem>>, vector<48x128xbf16>
    %cst = arith.constant dense<0.000000e+00> : vector<256x128xf32>
    %2 = tpu.matmul %0, %1, %cst {dimension_numbers = #tpu.dot_dimension_numbers<[1], [0], [0], [1], [0, 0, 1, 1], [], []>} : vector<256x48xbf16>, vector<48x128xbf16>, vector<256x128xf32> -> vector<256x128xf32>
    %3 = arith.truncf %2 : vector<256x128xf32> to vector<256x128xbf16>
    %c0_3 = arith.constant 0 : index
    %c0_4 = arith.constant 0 : index
    %4 = vector.load %arg4[%c0_3, %c0_4] : memref<256x128xbf16, #tpu.memory_space<vmem>>, vector<256x128xbf16>
    tpu.vector_store %arg4[%c0_3, %c0_4], %3 {strides = array<i32>} : memref<256x128xbf16, #tpu.memory_space<vmem>>, vector<256x128xbf16>,
    %c0_i32 = arith.constant 0 : i32
    %5 = arith.cmpi eq, %arg1, %c0_i32 : i32
    %6 = arith.extui %5 : i1 to i32
    %c0_i32_5 = arith.constant 0 : i32
    %7 = arith.cmpi ne, %6, %c0_i32_5 : i32
    scf.if %7 {
      %cst_17 = arith.constant 0.000000e+00 : f32
      %22 = vector.broadcast %cst_17 : f32 to vector<8x128xf32>
      %c0_18 = arith.constant 0 : index
      %c0_19 = arith.constant 0 : index
      %23 = vector.load %arg6[%c0_18, %c0_19] : memref<8x128xf32, #tpu.memory_space<vmem>>, vector<8x128xf32>
      tpu.vector_store %arg6[%c0_18, %c0_19], %22 {strides = array<i32>} : memref<8x128xf32, #tpu.memory_space<vmem>>, vector<8x128xf32>,
    } else {
    }
    %c0_6 = arith.constant 0 : index
    %c0_7 = arith.constant 0 : index
    %8 = vector.load %arg6[%c0_6, %c0_7] : memref<8x128xf32, #tpu.memory_space<vmem>>, vector<1x128xf32>
    %cst_8 = arith.constant dense<0.000000e+00> : vector<128xf32>
    %9 = vector.multi_reduction <add>, %2, %cst_8 [0] : vector<256x128xf32> to vector<128xf32>
    %10 = vector.shape_cast %9 : vector<128xf32> to vector<1x128xf32>
    %11 = arith.addf %8, %10 : vector<1x128xf32>
    %c0_9 = arith.constant 0 : index
    %c0_10 = arith.constant 0 : index
    %12 = vector.load %arg6[%c0_9, %c0_10] : memref<8x128xf32, #tpu.memory_space<vmem>>, vector<1x128xf32>
    tpu.vector_store %arg6[%c0_9, %c0_10], %11 {strides = array<i32>} : memref<8x128xf32, #tpu.memory_space<vmem>>, vector<1x128xf32>,
    %c1 = arith.constant 1 : index
    %c0_11 = arith.constant 0 : index
    %13 = vector.load %arg6[%c1, %c0_11] : memref<8x128xf32, #tpu.memory_space<vmem>>, vector<1x128xf32>
    %14 = arith.mulf %2, %2 : vector<256x128xf32>
    %cst_12 = arith.constant dense<0.000000e+00> : vector<128xf32>
    %15 = vector.multi_reduction <add>, %14, %cst_12 [0] : vector<256x128xf32> to vector<128xf32>
    %16 = vector.shape_cast %15 : vector<128xf32> to vector<1x128xf32>
    %17 = arith.addf %13, %16 : vector<1x128xf32>
    %c1_13 = arith.constant 1 : index
    %c0_14 = arith.constant 0 : index
    %18 = vector.load %arg6[%c1_13, %c0_14] : memref<8x128xf32, #tpu.memory_space<vmem>>, vector<1x128xf32>
    tpu.vector_store %arg6[%c1_13, %c0_14], %17 {strides = array<i32>} : memref<8x128xf32, #tpu.memory_space<vmem>>, vector<1x128xf32>,
    %c0_i32_15 = arith.constant 0 : i32
    %19 = arith.cmpi eq, %arg1, %c0_i32_15 : i32
    %20 = arith.extui %19 : i1 to i32
    %c0_i32_16 = arith.constant 0 : i32
    %21 = arith.cmpi ne, %20, %c0_i32_16 : i32
    scf.if %21 {
      %c0_17 = arith.constant 0 : index
      %c0_18 = arith.constant 0 : index
      %22 = vector.load %arg6[%c0_17, %c0_18] : memref<8x128xf32, #tpu.memory_space<vmem>>, vector<8x128xf32>
      %c0_19 = arith.constant 0 : index
      %c0_20 = arith.constant 0 : index
      %23 = vector.load %arg5[%c0_19, %c0_20] : memref<8x128xf32, #tpu.memory_space<vmem>>, vector<8x128xf32>
      tpu.vector_store %arg5[%c0_19, %c0_20], %22 {strides = array<i32>} : memref<8x128xf32, #tpu.memory_space<vmem>>, vector<8x128xf32>,
    } else {
    }
    return
  }
  func.func @transform_0(%arg0: i32, %arg1: i32) -> (i32, i32) {
    %c1_i32 = arith.constant 1 : i32
    %0 = arith.muli %arg0, %c1_i32 : i32
    %1 = arith.addi %0, %arg1 : i32
    %c0_i32 = arith.constant 0 : i32
    %c0_i32_0 = arith.constant 0 : i32
    return %1, %c0_i32 : i32, i32
  }
  func.func @transform_1(%arg0: i32, %arg1: i32) -> (i32, i32) {
    %c0_i32 = arith.constant 0 : i32
    %c0_i32_0 = arith.constant 0 : i32
    %c0_i32_1 = arith.constant 0 : i32
    return %c0_i32, %c0_i32_0 : i32, i32
  }
  func.func @transform_2(%arg0: i32, %arg1: i32) -> (i32, i32) {
    %c1_i32 = arith.constant 1 : i32
    %0 = arith.muli %arg0, %c1_i32 : i32
    %1 = arith.addi %0, %arg1 : i32
    %c0_i32 = arith.constant 0 : i32
    %c0_i32_0 = arith.constant 0 : i32
    return %1, %c0_i32 : i32, i32
  }
  func.func @transform_3(%arg0: i32, %arg1: i32) -> (i32, i32) {
    %c0_i32 = arith.constant 0 : i32
    %c0_i32_0 = arith.constant 0 : i32
    return %arg0, %c0_i32 : i32, i32
  }
}

module attributes {stable_mosaic.version = 11 : i64} {
  func.func @_bn_relu_kernel(%arg0: i32, %arg1: memref<512x128xbf16, #tpu.memory_space<vmem>>, %arg2: memref<1x128xf32, #tpu.memory_space<vmem>>, %arg3: memref<1x128xf32, #tpu.memory_space<vmem>>, %arg4: memref<512x128xbf16, #tpu.memory_space<vmem>>) attributes {dimension_semantics = [#tpu.dimension_semantics<parallel>], iteration_bounds = array<i64: 1>, scalar_prefetch = 0 : i64, scratch_operands = 0 : i64, tpu.core_type = #tpu.core_type<tc>, window_params = [{transform_indices = @transform_0, window_bounds = array<i64: 512, 128>}, {pipeline_mode = #tpu.pipeline_mode<synchronous>, transform_indices = @transform_1, window_bounds = array<i64: 1, 128>}, {pipeline_mode = #tpu.pipeline_mode<synchronous>, transform_indices = @transform_2, window_bounds = array<i64: 1, 128>}, {transform_indices = @transform_3, window_bounds = array<i64: 512, 128>}]} {
    %c0 = arith.constant 0 : index
    %c0_0 = arith.constant 0 : index
    %0 = vector.load %arg1[%c0, %c0_0] : memref<512x128xbf16, #tpu.memory_space<vmem>>, vector<512x128xbf16>
    %1 = arith.extf %0 : vector<512x128xbf16> to vector<512x128xf32>
    %c0_1 = arith.constant 0 : index
    %c0_2 = arith.constant 0 : index
    %2 = vector.load %arg2[%c0_1, %c0_2] : memref<1x128xf32, #tpu.memory_space<vmem>>, vector<1x128xf32>
    %3 = vector.broadcast %2 : vector<1x128xf32> to vector<512x128xf32>
    %4 = arith.mulf %1, %3 : vector<512x128xf32>
    %c0_3 = arith.constant 0 : index
    %c0_4 = arith.constant 0 : index
    %5 = vector.load %arg3[%c0_3, %c0_4] : memref<1x128xf32, #tpu.memory_space<vmem>>, vector<1x128xf32>
    %6 = vector.broadcast %5 : vector<1x128xf32> to vector<512x128xf32>
    %7 = arith.addf %4, %6 : vector<512x128xf32>
    %cst = arith.constant 0.000000e+00 : f32
    %8 = vector.broadcast %cst : f32 to vector<512x128xf32>
    %9 = arith.maximumf %7, %8 : vector<512x128xf32>
    %10 = arith.truncf %9 : vector<512x128xf32> to vector<512x128xbf16>
    %c0_5 = arith.constant 0 : index
    %c0_6 = arith.constant 0 : index
    %11 = vector.load %arg4[%c0_5, %c0_6] : memref<512x128xbf16, #tpu.memory_space<vmem>>, vector<512x128xbf16>
    tpu.vector_store %arg4[%c0_5, %c0_6], %10 {strides = array<i32>} : memref<512x128xbf16, #tpu.memory_space<vmem>>, vector<512x128xbf16>,
    return
  }
  func.func @transform_0(%arg0: i32) -> (i32, i32) {
    %c0_i32 = arith.constant 0 : i32
    %c0_i32_0 = arith.constant 0 : i32
    return %arg0, %c0_i32 : i32, i32
  }
  func.func @transform_1(%arg0: i32) -> (i32, i32) {
    %c0_i32 = arith.constant 0 : i32
    %c0_i32_0 = arith.constant 0 : i32
    %c0_i32_1 = arith.constant 0 : i32
    return %c0_i32, %c0_i32_0 : i32, i32
  }
  func.func @transform_2(%arg0: i32) -> (i32, i32) {
    %c0_i32 = arith.constant 0 : i32
    %c0_i32_0 = arith.constant 0 : i32
    %c0_i32_1 = arith.constant 0 : i32
    return %c0_i32, %c0_i32_0 : i32, i32
  }
  func.func @transform_3(%arg0: i32) -> (i32, i32) {
    %c0_i32 = arith.constant 0 : i32
    %c0_i32_0 = arith.constant 0 : i32
    return %arg0, %c0_i32 : i32, i32
  }
}

module attributes {stable_mosaic.version = 11 : i64} {
  func.func @_bn_add_relu_kernel(%arg0: i32, %arg1: memref<512x128xbf16, #tpu.memory_space<vmem>>, %arg2: memref<1x128xf32, #tpu.memory_space<vmem>>, %arg3: memref<1x128xf32, #tpu.memory_space<vmem>>, %arg4: memref<512x128xbf16, #tpu.memory_space<vmem>>, %arg5: memref<1x128xf32, #tpu.memory_space<vmem>>, %arg6: memref<1x128xf32, #tpu.memory_space<vmem>>, %arg7: memref<512x128xf32, #tpu.memory_space<vmem>>) attributes {dimension_semantics = [#tpu.dimension_semantics<parallel>], iteration_bounds = array<i64: 1>, scalar_prefetch = 0 : i64, scratch_operands = 0 : i64, tpu.core_type = #tpu.core_type<tc>, window_params = [{transform_indices = @transform_0, window_bounds = array<i64: 512, 128>}, {pipeline_mode = #tpu.pipeline_mode<synchronous>, transform_indices = @transform_1, window_bounds = array<i64: 1, 128>}, {pipeline_mode = #tpu.pipeline_mode<synchronous>, transform_indices = @transform_2, window_bounds = array<i64: 1, 128>}, {transform_indices = @transform_3, window_bounds = array<i64: 512, 128>}, {pipeline_mode = #tpu.pipeline_mode<synchronous>, transform_indices = @transform_4, window_bounds = array<i64: 1, 128>}, {pipeline_mode = #tpu.pipeline_mode<synchronous>, transform_indices = @transform_5, window_bounds = array<i64: 1, 128>}, {transform_indices = @transform_6, window_bounds = array<i64: 512, 128>}]} {
    %c0 = arith.constant 0 : index
    %c0_0 = arith.constant 0 : index
    %0 = vector.load %arg1[%c0, %c0_0] : memref<512x128xbf16, #tpu.memory_space<vmem>>, vector<512x128xbf16>
    %1 = arith.extf %0 : vector<512x128xbf16> to vector<512x128xf32>
    %c0_1 = arith.constant 0 : index
    %c0_2 = arith.constant 0 : index
    %2 = vector.load %arg2[%c0_1, %c0_2] : memref<1x128xf32, #tpu.memory_space<vmem>>, vector<1x128xf32>
    %3 = vector.broadcast %2 : vector<1x128xf32> to vector<512x128xf32>
    %4 = arith.mulf %1, %3 : vector<512x128xf32>
    %c0_3 = arith.constant 0 : index
    %c0_4 = arith.constant 0 : index
    %5 = vector.load %arg3[%c0_3, %c0_4] : memref<1x128xf32, #tpu.memory_space<vmem>>, vector<1x128xf32>
    %6 = vector.broadcast %5 : vector<1x128xf32> to vector<512x128xf32>
    %7 = arith.addf %4, %6 : vector<512x128xf32>
    %c0_5 = arith.constant 0 : index
    %c0_6 = arith.constant 0 : index
    %8 = vector.load %arg4[%c0_5, %c0_6] : memref<512x128xbf16, #tpu.memory_space<vmem>>, vector<512x128xbf16>
    %9 = arith.extf %8 : vector<512x128xbf16> to vector<512x128xf32>
    %c0_7 = arith.constant 0 : index
    %c0_8 = arith.constant 0 : index
    %10 = vector.load %arg5[%c0_7, %c0_8] : memref<1x128xf32, #tpu.memory_space<vmem>>, vector<1x128xf32>
    %11 = vector.broadcast %10 : vector<1x128xf32> to vector<512x128xf32>
    %12 = arith.mulf %9, %11 : vector<512x128xf32>
    %c0_9 = arith.constant 0 : index
    %c0_10 = arith.constant 0 : index
    %13 = vector.load %arg6[%c0_9, %c0_10] : memref<1x128xf32, #tpu.memory_space<vmem>>, vector<1x128xf32>
    %14 = vector.broadcast %13 : vector<1x128xf32> to vector<512x128xf32>
    %15 = arith.addf %12, %14 : vector<512x128xf32>
    %16 = arith.addf %7, %15 : vector<512x128xf32>
    %cst = arith.constant 0.000000e+00 : f32
    %17 = vector.broadcast %cst : f32 to vector<512x128xf32>
    %18 = arith.maximumf %16, %17 : vector<512x128xf32>
    %c0_11 = arith.constant 0 : index
    %c0_12 = arith.constant 0 : index
    %19 = vector.load %arg7[%c0_11, %c0_12] : memref<512x128xf32, #tpu.memory_space<vmem>>, vector<512x128xf32>
    tpu.vector_store %arg7[%c0_11, %c0_12], %18 {strides = array<i32>} : memref<512x128xf32, #tpu.memory_space<vmem>>, vector<512x128xf32>,
    return
  }
  func.func @transform_0(%arg0: i32) -> (i32, i32) {
    %c0_i32 = arith.constant 0 : i32
    %c0_i32_0 = arith.constant 0 : i32
    return %arg0, %c0_i32 : i32, i32
  }
  func.func @transform_1(%arg0: i32) -> (i32, i32) {
    %c0_i32 = arith.constant 0 : i32
    %c0_i32_0 = arith.constant 0 : i32
    %c0_i32_1 = arith.constant 0 : i32
    return %c0_i32, %c0_i32_0 : i32, i32
  }
  func.func @transform_2(%arg0: i32) -> (i32, i32) {
    %c0_i32 = arith.constant 0 : i32
    %c0_i32_0 = arith.constant 0 : i32
    %c0_i32_1 = arith.constant 0 : i32
    return %c0_i32, %c0_i32_0 : i32, i32
  }
  func.func @transform_3(%arg0: i32) -> (i32, i32) {
    %c0_i32 = arith.constant 0 : i32
    %c0_i32_0 = arith.constant 0 : i32
    return %arg0, %c0_i32 : i32, i32
  }
  func.func @transform_4(%arg0: i32) -> (i32, i32) {
    %c0_i32 = arith.constant 0 : i32
    %c0_i32_0 = arith.constant 0 : i32
    %c0_i32_1 = arith.constant 0 : i32
    return %c0_i32, %c0_i32_0 : i32, i32
  }
  func.func @transform_5(%arg0: i32) -> (i32, i32) {
    %c0_i32 = arith.constant 0 : i32
    %c0_i32_0 = arith.constant 0 : i32
    %c0_i32_1 = arith.constant 0 : i32
    return %c0_i32, %c0_i32_0 : i32, i32
  }
  func.func @transform_6(%arg0: i32) -> (i32, i32) {
    %c0_i32 = arith.constant 0 : i32
    %c0_i32_0 = arith.constant 0 : i32
    return %arg0, %c0_i32 : i32, i32
  }
}

module attributes {stable_mosaic.version = 11 : i64} {
  func.func @_conv2_shortcut_kernel(%arg0: i32, %arg1: i32, %arg2: memref<256x80xbf16, #tpu.memory_space<vmem>>, %arg3: memref<80x128xbf16, #tpu.memory_space<vmem>>, %arg4: memref<256x16xbf16, #tpu.memory_space<vmem>>, %arg5: memref<16x128xbf16, #tpu.memory_space<vmem>>, %arg6: memref<256x128xbf16, #tpu.memory_space<vmem>>, %arg7: memref<256x128xbf16, #tpu.memory_space<vmem>>, %arg8: memref<8x128xf32, #tpu.memory_space<vmem>>, %arg9: memref<8x128xf32, #tpu.memory_space<vmem>>, %arg10: memref<8x128xf32, #tpu.memory_space<vmem>>, %arg11: memref<8x128xf32, #tpu.memory_space<vmem>>) attributes {dimension_semantics = [#tpu.dimension_semantics<parallel>, #tpu.dimension_semantics<arbitrary>], iteration_bounds = array<i64: 2, 1>, scalar_prefetch = 0 : i64, scratch_operands = 2 : i64, tpu.core_type = #tpu.core_type<tc>, window_params = [{transform_indices = @transform_0, window_bounds = array<i64: 256, 80>}, {pipeline_mode = #tpu.pipeline_mode<synchronous>, transform_indices = @transform_1, window_bounds = array<i64: 80, 128>}, {transform_indices = @transform_2, window_bounds = array<i64: 256, 16>}, {pipeline_mode = #tpu.pipeline_mode<synchronous>, transform_indices = @transform_3, window_bounds = array<i64: 16, 128>}, {transform_indices = @transform_4, window_bounds = array<i64: 256, 128>}, {transform_indices = @transform_5, window_bounds = array<i64: 256, 128>}, {transform_indices = @transform_6, window_bounds = array<i64: 8, 128>}, {transform_indices = @transform_7, window_bounds = array<i64: 8, 128>}]} {
    %c0 = arith.constant 0 : index
    %c0_0 = arith.constant 0 : index
    %0 = vector.load %arg2[%c0, %c0_0] : memref<256x80xbf16, #tpu.memory_space<vmem>>, vector<256x80xbf16>
    %c0_1 = arith.constant 0 : index
    %c0_2 = arith.constant 0 : index
    %1 = vector.load %arg3[%c0_1, %c0_2] : memref<80x128xbf16, #tpu.memory_space<vmem>>, vector<80x128xbf16>
    %cst = arith.constant dense<0.000000e+00> : vector<256x128xf32>
    %2 = tpu.matmul %0, %1, %cst {dimension_numbers = #tpu.dot_dimension_numbers<[1], [0], [0], [1], [0, 0, 1, 1], [], []>} : vector<256x80xbf16>, vector<80x128xbf16>, vector<256x128xf32> -> vector<256x128xf32>
    %c0_3 = arith.constant 0 : index
    %c0_4 = arith.constant 0 : index
    %3 = vector.load %arg4[%c0_3, %c0_4] : memref<256x16xbf16, #tpu.memory_space<vmem>>, vector<256x16xbf16>
    %c0_5 = arith.constant 0 : index
    %c0_6 = arith.constant 0 : index
    %4 = vector.load %arg5[%c0_5, %c0_6] : memref<16x128xbf16, #tpu.memory_space<vmem>>, vector<16x128xbf16>
    %cst_7 = arith.constant dense<0.000000e+00> : vector<256x128xf32>
    %5 = tpu.matmul %3, %4, %cst_7 {dimension_numbers = #tpu.dot_dimension_numbers<[1], [0], [0], [1], [0, 0, 1, 1], [], []>} : vector<256x16xbf16>, vector<16x128xbf16>, vector<256x128xf32> -> vector<256x128xf32>
    %6 = arith.truncf %2 : vector<256x128xf32> to vector<256x128xbf16>
    %c0_8 = arith.constant 0 : index
    %c0_9 = arith.constant 0 : index
    %7 = vector.load %arg6[%c0_8, %c0_9] : memref<256x128xbf16, #tpu.memory_space<vmem>>, vector<256x128xbf16>
    tpu.vector_store %arg6[%c0_8, %c0_9], %6 {strides = array<i32>} : memref<256x128xbf16, #tpu.memory_space<vmem>>, vector<256x128xbf16>,
    %8 = arith.truncf %5 : vector<256x128xf32> to vector<256x128xbf16>
    %c0_10 = arith.constant 0 : index
    %c0_11 = arith.constant 0 : index
    %9 = vector.load %arg7[%c0_10, %c0_11] : memref<256x128xbf16, #tpu.memory_space<vmem>>, vector<256x128xbf16>
    tpu.vector_store %arg7[%c0_10, %c0_11], %8 {strides = array<i32>} : memref<256x128xbf16, #tpu.memory_space<vmem>>, vector<256x128xbf16>,
    %c0_i32 = arith.constant 0 : i32
    %10 = arith.cmpi eq, %arg1, %c0_i32 : i32
    %11 = arith.extui %10 : i1 to i32
    %c0_i32_12 = arith.constant 0 : i32
    %12 = arith.cmpi ne, %11, %c0_i32_12 : i32
    scf.if %12 {
      %cst_34 = arith.constant 0.000000e+00 : f32
      %38 = vector.broadcast %cst_34 : f32 to vector<8x128xf32>
      %c0_35 = arith.constant 0 : index
      %c0_36 = arith.constant 0 : index
      %39 = vector.load %arg10[%c0_35, %c0_36] : memref<8x128xf32, #tpu.memory_space<vmem>>, vector<8x128xf32>
      tpu.vector_store %arg10[%c0_35, %c0_36], %38 {strides = array<i32>} : memref<8x128xf32, #tpu.memory_space<vmem>>, vector<8x128xf32>,
      %cst_37 = arith.constant 0.000000e+00 : f32
      %40 = vector.broadcast %cst_37 : f32 to vector<8x128xf32>
      %c0_38 = arith.constant 0 : index
      %c0_39 = arith.constant 0 : index
      %41 = vector.load %arg11[%c0_38, %c0_39] : memref<8x128xf32, #tpu.memory_space<vmem>>, vector<8x128xf32>
      tpu.vector_store %arg11[%c0_38, %c0_39], %40 {strides = array<i32>} : memref<8x128xf32, #tpu.memory_space<vmem>>, vector<8x128xf32>,
    } else {
    }
    %c0_13 = arith.constant 0 : index
    %c0_14 = arith.constant 0 : index
    %13 = vector.load %arg10[%c0_13, %c0_14] : memref<8x128xf32, #tpu.memory_space<vmem>>, vector<1x128xf32>
    %cst_15 = arith.constant dense<0.000000e+00> : vector<128xf32>
    %14 = vector.multi_reduction <add>, %2, %cst_15 [0] : vector<256x128xf32> to vector<128xf32>
    %15 = vector.shape_cast %14 : vector<128xf32> to vector<1x128xf32>
    %16 = arith.addf %13, %15 : vector<1x128xf32>
    %c0_16 = arith.constant 0 : index
    %c0_17 = arith.constant 0 : index
    %17 = vector.load %arg10[%c0_16, %c0_17] : memref<8x128xf32, #tpu.memory_space<vmem>>, vector<1x128xf32>
    tpu.vector_store %arg10[%c0_16, %c0_17], %16 {strides = array<i32>} : memref<8x128xf32, #tpu.memory_space<vmem>>, vector<1x128xf32>,
    %c1 = arith.constant 1 : index
    %c0_18 = arith.constant 0 : index
    %18 = vector.load %arg10[%c1, %c0_18] : memref<8x128xf32, #tpu.memory_space<vmem>>, vector<1x128xf32>
    %19 = arith.mulf %2, %2 : vector<256x128xf32>
    %cst_19 = arith.constant dense<0.000000e+00> : vector<128xf32>
    %20 = vector.multi_reduction <add>, %19, %cst_19 [0] : vector<256x128xf32> to vector<128xf32>
    %21 = vector.shape_cast %20 : vector<128xf32> to vector<1x128xf32>
    %22 = arith.addf %18, %21 : vector<1x128xf32>
    %c1_20 = arith.constant 1 : index
    %c0_21 = arith.constant 0 : index
    %23 = vector.load %arg10[%c1_20, %c0_21] : memref<8x128xf32, #tpu.memory_space<vmem>>, vector<1x128xf32>
    tpu.vector_store %arg10[%c1_20, %c0_21], %22 {strides = array<i32>} : memref<8x128xf32, #tpu.memory_space<vmem>>, vector<1x128xf32>,
    %c0_22 = arith.constant 0 : index
    %c0_23 = arith.constant 0 : index
    %24 = vector.load %arg11[%c0_22, %c0_23] : memref<8x128xf32, #tpu.memory_space<vmem>>, vector<1x128xf32>
    %cst_24 = arith.constant dense<0.000000e+00> : vector<128xf32>
    %25 = vector.multi_reduction <add>, %5, %cst_24 [0] : vector<256x128xf32> to vector<128xf32>
    %26 = vector.shape_cast %25 : vector<128xf32> to vector<1x128xf32>
    %27 = arith.addf %24, %26 : vector<1x128xf32>
    %c0_25 = arith.constant 0 : index
    %c0_26 = arith.constant 0 : index
    %28 = vector.load %arg11[%c0_25, %c0_26] : memref<8x128xf32, #tpu.memory_space<vmem>>, vector<1x128xf32>
    tpu.vector_store %arg11[%c0_25, %c0_26], %27 {strides = array<i32>} : memref<8x128xf32, #tpu.memory_space<vmem>>, vector<1x128xf32>,
    %c1_27 = arith.constant 1 : index
    %c0_28 = arith.constant 0 : index
    %29 = vector.load %arg11[%c1_27, %c0_28] : memref<8x128xf32, #tpu.memory_space<vmem>>, vector<1x128xf32>
    %30 = arith.mulf %5, %5 : vector<256x128xf32>
    %cst_29 = arith.constant dense<0.000000e+00> : vector<128xf32>
    %31 = vector.multi_reduction <add>, %30, %cst_29 [0] : vector<256x128xf32> to vector<128xf32>
    %32 = vector.shape_cast %31 : vector<128xf32> to vector<1x128xf32>
    %33 = arith.addf %29, %32 : vector<1x128xf32>
    %c1_30 = arith.constant 1 : index
    %c0_31 = arith.constant 0 : index
    %34 = vector.load %arg11[%c1_30, %c0_31] : memref<8x128xf32, #tpu.memory_space<vmem>>, vector<1x128xf32>
    tpu.vector_store %arg11[%c1_30, %c0_31], %33 {strides = array<i32>} : memref<8x128xf32, #tpu.memory_space<vmem>>, vector<1x128xf32>,
    %c0_i32_32 = arith.constant 0 : i32
    %35 = arith.cmpi eq, %arg1, %c0_i32_32 : i32
    %36 = arith.extui %35 : i1 to i32
    %c0_i32_33 = arith.constant 0 : i32
    %37 = arith.cmpi ne, %36, %c0_i32_33 : i32
    scf.if %37 {
      %c0_34 = arith.constant 0 : index
      %c0_35 = arith.constant 0 : index
      %38 = vector.load %arg10[%c0_34, %c0_35] : memref<8x128xf32, #tpu.memory_space<vmem>>, vector<8x128xf32>
      %c0_36 = arith.constant 0 : index
      %c0_37 = arith.constant 0 : index
      %39 = vector.load %arg8[%c0_36, %c0_37] : memref<8x128xf32, #tpu.memory_space<vmem>>, vector<8x128xf32>
      tpu.vector_store %arg8[%c0_36, %c0_37], %38 {strides = array<i32>} : memref<8x128xf32, #tpu.memory_space<vmem>>, vector<8x128xf32>,
      %c0_38 = arith.constant 0 : index
      %c0_39 = arith.constant 0 : index
      %40 = vector.load %arg11[%c0_38, %c0_39] : memref<8x128xf32, #tpu.memory_space<vmem>>, vector<8x128xf32>
      %c0_40 = arith.constant 0 : index
      %c0_41 = arith.constant 0 : index
      %41 = vector.load %arg9[%c0_40, %c0_41] : memref<8x128xf32, #tpu.memory_space<vmem>>, vector<8x128xf32>
      tpu.vector_store %arg9[%c0_40, %c0_41], %40 {strides = array<i32>} : memref<8x128xf32, #tpu.memory_space<vmem>>, vector<8x128xf32>,
    } else {
    }
    return
  }
  func.func @transform_0(%arg0: i32, %arg1: i32) -> (i32, i32) {
    %c1_i32 = arith.constant 1 : i32
    %0 = arith.muli %arg0, %c1_i32 : i32
    %1 = arith.addi %0, %arg1 : i32
    %c0_i32 = arith.constant 0 : i32
    %c0_i32_0 = arith.constant 0 : i32
    return %1, %c0_i32 : i32, i32
  }
  func.func @transform_1(%arg0: i32, %arg1: i32) -> (i32, i32) {
    %c0_i32 = arith.constant 0 : i32
    %c0_i32_0 = arith.constant 0 : i32
    %c0_i32_1 = arith.constant 0 : i32
    return %c0_i32, %c0_i32_0 : i32, i32
  }
  func.func @transform_2(%arg0: i32, %arg1: i32) -> (i32, i32) {
    %c1_i32 = arith.constant 1 : i32
    %0 = arith.muli %arg0, %c1_i32 : i32
    %1 = arith.addi %0, %arg1 : i32
    %c0_i32 = arith.constant 0 : i32
    %c0_i32_0 = arith.constant 0 : i32
    return %1, %c0_i32 : i32, i32
  }
  func.func @transform_3(%arg0: i32, %arg1: i32) -> (i32, i32) {
    %c0_i32 = arith.constant 0 : i32
    %c0_i32_0 = arith.constant 0 : i32
    %c0_i32_1 = arith.constant 0 : i32
    return %c0_i32, %c0_i32_0 : i32, i32
  }
  func.func @transform_4(%arg0: i32, %arg1: i32) -> (i32, i32) {
    %c1_i32 = arith.constant 1 : i32
    %0 = arith.muli %arg0, %c1_i32 : i32
    %1 = arith.addi %0, %arg1 : i32
    %c0_i32 = arith.constant 0 : i32
    %c0_i32_0 = arith.constant 0 : i32
    return %1, %c0_i32 : i32, i32
  }
  func.func @transform_5(%arg0: i32, %arg1: i32) -> (i32, i32) {
    %c1_i32 = arith.constant 1 : i32
    %0 = arith.muli %arg0, %c1_i32 : i32
    %1 = arith.addi %0, %arg1 : i32
    %c0_i32 = arith.constant 0 : i32
    %c0_i32_0 = arith.constant 0 : i32
    return %1, %c0_i32 : i32, i32
  }
  func.func @transform_6(%arg0: i32, %arg1: i32) -> (i32, i32) {
    %c0_i32 = arith.constant 0 : i32
    %c0_i32_0 = arith.constant 0 : i32
    return %arg0, %c0_i32 : i32, i32
  }
  func.func @transform_7(%arg0: i32, %arg1: i32) -> (i32, i32) {
    %c0_i32 = arith.constant 0 : i32
    %c0_i32_0 = arith.constant 0 : i32
    return %arg0, %c0_i32 : i32, i32
  }
}

</mosaic_0001>

<llo_original>
// kernel: conv_block_x2.4
$region0: #{conv_block_x2.4}
  #allocation0 [shape = 'u32[]', space=smem, size = 0x4, offset = 0x4, fixed_abs, tag = 'smem constant byte address 0x4 - core index']
  #allocation1 [shape = 'u32[72,128]{1,0:T(1,128)}', space=vmem, size = 0x9000, scoped, tag = 'internal scratch']
  #allocation2 [shape = 'f32[8,128]{1,0:T(8,128)}', space=vmem, size = 0x1000, scoped, tag = 'scratch operand']
  %s0 = inlined_call_operand.vmem [shape: bf16[512,48], index: 0, kind: input, shape index: {}]
  %s1 = inlined_call_operand.vmem [shape: bf16[48,128], index: 1, kind: input, shape index: {}]
  %s2 = inlined_call_operand.vmem [shape: bf16[512,128], index: 2, kind: output, shape index: {0}]
  %s3 = inlined_call_operand.vmem [shape: f32[16,128], index: 3, kind: output, shape index: {1}]
  %4 = xla_tuple %s2, %s3
  %s5 = sld [smem:[#allocation0]]
  $region57: #{conv_block_x2.4} parent=0
    _
  %s7 = ssub.s32 1, %s5
  %s8 = scalar_select 0, %s7, %s5
  loop: start=0, step=1, limit=4
  $region2: #{conv_block_x2.4} parent=0 // loop_pre_header
    _
  $region3: #{conv_block_x2.4} parent=0 // loop_header
    %s10 = sphi 0, %s14
    %p11 = scmp.ge.s32.totalorder %s10, 4
    %s17 = sphi 0, %s29
    %s18 = sphi 0, %s25
    %s19 = sphi 0, %s17
    %s20 = sphi 0, %s18
    %s21 = sphi 0, %s19
    %s22 = sphi 0, %s20
    %s34 = sphi 0, %s36
    %s37 = sphi 0, %s34
    %s38 = sphi 0, %s37
    %s54 = sphi 0, %s38
    %s58 = sphi 0, %s58
    %s60 = sphi 0, %s58
    %s61 = sphi 0, %s60
    %s75 = sphi 0, %s61
    %s83 = sphi 0, %s85
    %s86 = sphi 0, %s83
    %s87 = sphi 0, %s86
    %s103 = sphi 0, %s87
    %s109 = sphi 0, %s111
    %s112 = sphi 0, %s109
    %s113 = sphi 0, %s112
    %s129 = sphi 0, %s113
  $region4: #{conv_block_x2.4} parent=0 // loop_header_branch
    %13 = sbr.rel (%p11) target = $region8
  $region5: #{conv_block_x2.4} parent=0 // loop_body
    %s15 = ssub.s32 %s10, 1
    %s16 = ssub.s32 %s10, 2
    %s23 = sadd.s32 1, %s18
    %p24 = scmp.ge.s32.totalorder %s23, 1
    %s25 = scalar_select %p24, 0, %s23
    %s26 = sadd.s32 1, %s17
    %s27 = scalar_select %p24, %s26, %s17
    %p28 = scmp.ge.s32.totalorder %s27, 2
    %s29 = scalar_select %p28, 0, %s27
    %s30 = sadd.s32 %s17, %s18
    %s31 = sadd.s32 %s29, %s25
    %s32 = ssub.s32 %s30, %s31
    %p33 = scmp.eq.s32.totalorder %s32, 0
    %s35 = sadd.s32 %s34, 1
    %s36 = scalar_select %p33, %s34, %s35
    %p39 = pneg %p33
    %p40 = scmp.eq.s32.totalorder %s10, 1
    %p41 = por %p39, %p40
    %p42 = scmp.ne.s32.totalorder %s34, %s37
    %p43 = scmp.eq.s32.totalorder %s10, 0
    %p44 = por %p42, %p43
    %p45 = scmp.ne.s32.totalorder %s34, %s37
    %p46 = scmp.eq.s32.totalorder %s15, 1
    %p47 = por %p45, %p46
    %p48 = scmp.ne.s32.totalorder %s37, %s38
    %p49 = scmp.eq.s32.totalorder %s15, 0
    %p50 = por %p48, %p49
    %p51 = scmp.ne.s32.totalorder %s37, %s38
    %p52 = scmp.eq.s32.totalorder %s16, 1
    %p53 = por %p51, %p52
    %p55 = scmp.ne.s32.totalorder %s38, %s54
    %p56 = scmp.eq.s32.totalorder %s16, 0
    %p57 = por %p55, %p56
    %s59 = sadd.s32 %s58, 1
    %p62 = scmp.eq.s32.totalorder %s10, 1
    %p63 = scmp.ne.s32.totalorder %s58, %s60
    %p64 = scmp.eq.s32.totalorder %s10, 0
    %p65 = por %p63, %p64
    %p66 = scmp.ne.s32.totalorder %s58, %s60
    %p67 = scmp.eq.s32.totalorder %s15, 1
    %p68 = por %p66, %p67
    %p69 = scmp.ne.s32.totalorder %s60, %s61
    %p70 = scmp.eq.s32.totalorder %s15, 0
    %p71 = por %p69, %p70
    %p72 = scmp.ne.s32.totalorder %s60, %s61
    %p73 = scmp.eq.s32.totalorder %s16, 1
    %p74 = por %p72, %p73
    %p76 = scmp.ne.s32.totalorder %s61, %s75
    %p77 = scmp.eq.s32.totalorder %s16, 0
    %p78 = por %p76, %p77
    %s79 = sadd.s32 %s17, %s18
    %s80 = sadd.s32 %s29, %s25
    %s81 = ssub.s32 %s79, %s80
    %p82 = scmp.eq.s32.totalorder %s81, 0
    %s84 = sadd.s32 %s83, 1
    %s85 = scalar_select %p82, %s83, %s84
    %p88 = pneg %p82
    %p89 = scmp.eq.s32.totalorder %s10, 1
    %p90 = por %p88, %p89
    %p91 = scmp.ne.s32.totalorder %s83, %s86
    %p92 = scmp.eq.s32.totalorder %s10, 0
    %p93 = por %p91, %p92
    %p94 = scmp.ne.s32.totalorder %s83, %s86
    %p95 = scmp.eq.s32.totalorder %s15, 1
    %p96 = por %p94, %p95
    %p97 = scmp.ne.s32.totalorder %s86, %s87
    %p98 = scmp.eq.s32.totalorder %s15, 0
    %p99 = por %p97, %p98
    %p100 = scmp.ne.s32.totalorder %s86, %s87
    %p101 = scmp.eq.s32.totalorder %s16, 1
    %p102 = por %p100, %p101
    %p104 = scmp.ne.s32.totalorder %s87, %s103
    %p105 = scmp.eq.s32.totalorder %s16, 0
    %p106 = por %p104, %p105
    %s107 = ssub.s32 %s17, %s29
    %p108 = scmp.eq.s32.totalorder %s107, 0
    %s110 = sadd.s32 %s109, 1
    %s111 = scalar_select %p108, %s109, %s110
    %p114 = pneg %p108
    %p115 = scmp.eq.s32.totalorder %s10, 1
    %p116 = por %p114, %p115
    %p117 = scmp.ne.s32.totalorder %s109, %s112
    %p118 = scmp.eq.s32.totalorder %s10, 0
    %p119 = por %p117, %p118
    %p120 = scmp.ne.s32.totalorder %s109, %s112
    %p121 = scmp.eq.s32.totalorder %s15, 1
    %p122 = por %p120, %p121
    %p123 = scmp.ne.s32.totalorder %s112, %s113
    %p124 = scmp.eq.s32.totalorder %s15, 0
    %p125 = por %p123, %p124
    %p126 = scmp.ne.s32.totalorder %s112, %s113
    %p127 = scmp.eq.s32.totalorder %s16, 1
    %p128 = por %p126, %p127
    %p130 = scmp.ne.s32.totalorder %s113, %s129
    %p131 = scmp.eq.s32.totalorder %s16, 0
    %p132 = por %p130, %p131
    %p133 = scmp.le.s32.totalorder 1, %s10
    %p134 = scmp.lt.s32.totalorder %s10, 3
    %p135 = pnand %p133, %p134
    %p136 = pneg %p135
    // Predicated region
    $region9: #{conv_block_x2.4} parent=5 // pred_check
      _
    $region10: #{conv_block_x2.4} parent=5 // pred_check_branch
      %138 = sbr.rel (%p135) target = $region12
    $region11: #{conv_block_x2.4} parent=5 // pred_region
      %s139 = ssub.s32 %s10, 1
      // Predicated region
      $region13: #{conv_block_x2.4} parent=11 // pred_check
        %p140 = pneg %p71
      $region14: #{conv_block_x2.4} parent=11 // pred_check_branch
        %142 = sbr.rel (%p140) target = $region16
      $region15: #{conv_block_x2.4} parent=11 // pred_region
        _
      $region16: #{conv_block_x2.4} parent=11 // pred_fallthru
        _
    $region12: #{conv_block_x2.4} parent=5 // pred_fallthru
      _
    %p143 = scmp.lt.s32.totalorder %s10, 2
    // Predicated region
    $region17: #{conv_block_x2.4} parent=5 // pred_check
      %p144 = pneg %p143
    $region18: #{conv_block_x2.4} parent=5 // pred_check_branch
      %146 = sbr.rel (%p144) target = $region20
    $region19: #{conv_block_x2.4} parent=5 // pred_region
      // Predicated region
      $region21: #{conv_block_x2.4} parent=19 // pred_check
        %p147 = pneg %p44
      $region22: #{conv_block_x2.4} parent=19 // pred_check_branch
        %149 = sbr.rel (%p147) target = $region24
      $region23: #{conv_block_x2.4} parent=19 // pred_region
        %s150 = sadd.s32 %s17, %s18
        %s151 = smul.u32 32, %s150
        %p152 = scmp.lt.s32.totalorder %s151, 63
        %s153 = scalar_select %p152, %s151, 63
        %s154 = smul.addr %s153, 4
        %s155 = scalar_lea.vmem %s0, %s154
        %s156 = sadd.s32 %s17, %s18
        %s157 = smul.u32 32, %s156
      $region24: #{conv_block_x2.4} parent=19 // pred_fallthru
        _
    $region20: #{conv_block_x2.4} parent=5 // pred_fallthru
      _
    %p158 = scmp.le.s32.totalorder 1, %s10
    %p159 = scmp.lt.s32.totalorder %s10, 3
    %p160 = pnand %p158, %p159
    %p161 = pneg %p160
    // Predicated region
    $region25: #{conv_block_x2.4} parent=5 // pred_check
      _
    $region26: #{conv_block_x2.4} parent=5 // pred_check_branch
      %163 = sbr.rel (%p160) target = $region28
    $region27: #{conv_block_x2.4} parent=5 // pred_region
      %s164 = ssub.s32 %s10, 1
      %s165 = sadd.s32 %s19, %s20
      %s166 = smul.u32 32, %s165
      %p167 = scmp.lt.s32.totalorder %s166, 63
      %s168 = scalar_select %p167, %s166, 63
      %s169 = smul.addr %s168, 4
      %s170 = scalar_lea.vmem %s0, %s169
      %p171 = pneg %p50
      %p172 = pneg %p47
      %p173 = pneg %p71
      %p174 = pneg %p68
      %p175 = pneg %p99
      %p176 = pneg %p96
      %s177 = sadd.s32 %s19, %s20
      %s178 = smul.u32 32, %s177
      %p179 = scmp.lt.s32.totalorder %s178, 63
      %s180 = scalar_select %p179, %s178, 63
      %s181 = smul.addr %s180, 4
      %s182 = scalar_lea.vmem %s2, %s181
      %p183 = pneg %p125
      %p184 = pneg %p122
      %p185 = scmp.lt.s32.totalorder %s19, 1
      %s186 = scalar_select %p185, %s19, 1
      %s187 = smul.addr %s186, 8
      %s188 = scalar_lea.vmem %s3, %s187
      %s189 = sadd.s32 %s19, %s20
      %s190 = smul.u32 32, %s189
      %p191 = scmp.lt.s32.totalorder %s190, 63
      %s192 = scalar_select %p191, %s190, 63
      %s193 = smul.addr %s192, 4
      %s194 = scalar_lea.vmem %s0, %s193
      %s195 = sadd.s32 %s19, %s20
      %s196 = smul.u32 32, %s195
      %s197 = sadd.s32 %s19, %s20
      %s198 = smul.u32 32, %s197
      %p199 = scmp.lt.s32.totalorder %s198, 63
      %s200 = scalar_select %p199, %s198, 63
      %s201 = smul.addr %s200, 4
      %s202 = scalar_lea.vmem %s2, %s201
      %s203 = sadd.s32 %s19, %s20
      %s204 = smul.u32 32, %s203
      %p205 = scmp.lt.s32.totalorder %s19, 1
      %s206 = scalar_select %p205, %s19, 1
      %s207 = smul.addr %s206, 8
      %s208 = scalar_lea.vmem %s3, %s207
      %v210 = vld [vmem:[%s194] sm:$0xf]
      %v211 = vld [vmem:[%s194 + $0x4] sm:$0xf]
      %v212 = vld [vmem:[%s194 + $0x8] sm:$0xf]
      %v213 = vld [vmem:[%s194 + $0xc] sm:$0xf]
      %v214 = vld [vmem:[%s194 + $0x10] sm:$0xf]
      %v215 = vld [vmem:[%s194 + $0x14] sm:$0xf]
      %v216 = vld [vmem:[%s194 + $0x18] sm:$0xf]
      %v217 = vld [vmem:[%s194 + $0x1c] sm:$0xf]
      %v218 = vld [vmem:[%s194 + $0x20] sm:$0xf]
      %v219 = vld [vmem:[%s194 + $0x24] sm:$0xf]
      %v220 = vld [vmem:[%s194 + $0x28] sm:$0xf]
      %v221 = vld [vmem:[%s194 + $0x2c] sm:$0xf]
      %v222 = vld [vmem:[%s194 + $0x30] sm:$0xf]
      %v223 = vld [vmem:[%s194 + $0x34] sm:$0xf]
      %v224 = vld [vmem:[%s194 + $0x38] sm:$0xf]
      %v225 = vld [vmem:[%s194 + $0x3c] sm:$0xf]
      %v226 = vld [vmem:[%s194 + $0x40] sm:$0xf]
      %v227 = vld [vmem:[%s194 + $0x44] sm:$0xf]
      %v228 = vld [vmem:[%s194 + $0x48] sm:$0xf]
      %v229 = vld [vmem:[%s194 + $0x4c] sm:$0xf]
      %v230 = vld [vmem:[%s194 + $0x50] sm:$0xf]
      %v231 = vld [vmem:[%s194 + $0x54] sm:$0xf]
      %v232 = vld [vmem:[%s194 + $0x58] sm:$0xf]
      %v233 = vld [vmem:[%s194 + $0x5c] sm:$0xf]
      %v234 = vld [vmem:[%s194 + $0x60] sm:$0xf]
      %v235 = vld [vmem:[%s194 + $0x64] sm:$0xf]
      %v236 = vld [vmem:[%s194 + $0x68] sm:$0xf]
      %v237 = vld [vmem:[%s194 + $0x6c] sm:$0xf]
      %v238 = vld [vmem:[%s194 + $0x70] sm:$0xf]
      %v239 = vld [vmem:[%s194 + $0x74] sm:$0xf]
      %v240 = vld [vmem:[%s194 + $0x78] sm:$0xf]
      %v241 = vld [vmem:[%s194 + $0x7c] sm:$0xf]
      %v242 = vld [vmem:[%s1] sm:$0xf]
      %v243 = vld [vmem:[%s1 + $0x4] sm:$0xf]
      %v244 = vld [vmem:[%s1 + $0x8] sm:$0xf]
      %v245 = vld [vmem:[%s1 + $0xc] sm:$0xf]
      %v246 = vld [vmem:[%s1 + $0x10] sm:$0xf]
      %v247 = vld [vmem:[%s1 + $0x14] sm:$0xf]
      %v280 = vunpack.c.l.b16 %v210
      %v281 = vunpack.c.l.b16 %v211
      %v282 = vunpack.c.l.b16 %v212
      %v283 = vunpack.c.l.b16 %v213
      %v284 = vunpack.c.l.b16 %v214
      %v285 = vunpack.c.l.b16 %v215
      %v286 = vunpack.c.l.b16 %v216
      %v287 = vunpack.c.l.b16 %v217
      %v288 = vunpack.c.l.b16 %v218
      %v289 = vunpack.c.l.b16 %v219
      %v290 = vunpack.c.l.b16 %v220
      %v291 = vunpack.c.l.b16 %v221
      %v292 = vunpack.c.l.b16 %v222
      %v293 = vunpack.c.l.b16 %v223
      %v294 = vunpack.c.l.b16 %v224
      %v295 = vunpack.c.l.b16 %v225
      %v296 = vunpack.c.l.b16 %v226
      %v297 = vunpack.c.l.b16 %v227
      %v298 = vunpack.c.l.b16 %v228
      %v299 = vunpack.c.l.b16 %v229
      %v300 = vunpack.c.l.b16 %v230
      %v301 = vunpack.c.l.b16 %v231
      %v302 = vunpack.c.l.b16 %v232
      %v303 = vunpack.c.l.b16 %v233
      %v304 = vunpack.c.l.b16 %v234
      %v305 = vunpack.c.l.b16 %v235
      %v306 = vunpack.c.l.b16 %v236
      %v307 = vunpack.c.l.b16 %v237
      %v308 = vunpack.c.l.b16 %v238
      %v309 = vunpack.c.l.b16 %v239
      %v310 = vunpack.c.l.b16 %v240
      %v311 = vunpack.c.l.b16 %v241
      %v312 = vpack.c.b16 %v281, %v280
      %v313 = vpack.c.b16 %v283, %v282
      %v314 = vpack.c.b16 %v285, %v284
      %v315 = vpack.c.b16 %v287, %v286
      %v316 = vpack.c.b16 %v289, %v288
      %v317 = vpack.c.b16 %v291, %v290
      %v318 = vpack.c.b16 %v293, %v292
      %v319 = vpack.c.b16 %v295, %v294
      %v320 = vpack.c.b16 %v297, %v296
      %v321 = vpack.c.b16 %v299, %v298
      %v322 = vpack.c.b16 %v301, %v300
      %v323 = vpack.c.b16 %v303, %v302
      %v324 = vpack.c.b16 %v305, %v304
      %v325 = vpack.c.b16 %v307, %v306
      %v326 = vpack.c.b16 %v309, %v308
      %v327 = vpack.c.b16 %v311, %v310
      %v334 = vunpack.c.l.b16 %v242
      %v335 = vunpack.c.l.b16 %v243
      %v336 = vunpack.c.l.b16 %v244
      %v337 = vunpack.c.l.b16 %v245
      %v338 = vunpack.c.l.b16 %v246
      %v339 = vunpack.c.l.b16 %v247
      %v340 = vpack.c.b16 %v335, %v334
      %v341 = vpack.c.b16 %v337, %v336
      %v342 = vpack.c.b16 %v339, %v338
      %vm346 = vcmask 392192
      %v348 = vsel %vm346, %v312, 0
      %v351 = vsel %vm346, %v313, 0
      %v354 = vsel %vm346, %v314, 0
      %v357 = vsel %vm346, %v315, 0
      %v360 = vsel %vm346, %v316, 0
      %v363 = vsel %vm346, %v317, 0
      %v366 = vsel %vm346, %v318, 0
      %v369 = vsel %vm346, %v319, 0
      %v372 = vsel %vm346, %v320, 0
      %v375 = vsel %vm346, %v321, 0
      %v378 = vsel %vm346, %v322, 0
      %v381 = vsel %vm346, %v323, 0
      %v384 = vsel %vm346, %v324, 0
      %v387 = vsel %vm346, %v325, 0
      %v390 = vsel %vm346, %v326, 0
      %v393 = vsel %vm346, %v327, 0
      %395 = vmatpush.bf16.msra.mxu0 0
      %396 = vmatpush.bf16.msra.mxu0 0
      %397 = vmatpush.bf16.msra.mxu0 0
      %398 = vmatpush.bf16.msra.mxu0 0
      %399 = vmatpush.bf16.msra.mxu0 0
      %400 = vmatpush.bf16.msra.mxu0 %v342
      %401 = vmatpush.bf16.msra.mxu0 %v341
      %402 = vmatpush.bf16.msra.mxu0 %v340
      %403 = vmatmul.bf16.gmra.mxu0 %v348
      %v404 = vpop.f32.mrf.mxu0
      %v405 = vadd.f32 0.0, %v404
      %v406 = vpop.f32.mrf.mxu0
      %v407 = vadd.f32 0.0, %v406
      %408 = vmatmul.bf16.gmra.mxu0 %v351
      %v409 = vpop.f32.mrf.mxu0
      %v410 = vadd.f32 0.0, %v409
      %v411 = vpop.f32.mrf.mxu0
      %v412 = vadd.f32 0.0, %v411
      %413 = vmatmul.bf16.gmra.mxu0 %v354
      %v414 = vpop.f32.mrf.mxu0
      %v415 = vadd.f32 0.0, %v414
      %v416 = vpop.f32.mrf.mxu0
      %v417 = vadd.f32 0.0, %v416
      %418 = vmatmul.bf16.gmra.mxu0 %v357
      %v419 = vpop.f32.mrf.mxu0
      %v420 = vadd.f32 0.0, %v419
      %v421 = vpop.f32.mrf.mxu0
      %v422 = vadd.f32 0.0, %v421
      %423 = vmatmul.bf16.gmra.mxu0 %v360
      %v424 = vpop.f32.mrf.mxu0
      %v425 = vadd.f32 0.0, %v424
      %v426 = vpop.f32.mrf.mxu0
      %v427 = vadd.f32 0.0, %v426
      %428 = vmatmul.bf16.gmra.mxu0 %v363
      %v429 = vpop.f32.mrf.mxu0
      %v430 = vadd.f32 0.0, %v429
      %v431 = vpop.f32.mrf.mxu0
      %v432 = vadd.f32 0.0, %v431
      %433 = vmatmul.bf16.gmra.mxu0 %v366
      %v434 = vpop.f32.mrf.mxu0
      %v435 = vadd.f32 0.0, %v434
      %v436 = vpop.f32.mrf.mxu0
      %v437 = vadd.f32 0.0, %v436
      %438 = vmatmul.bf16.gmra.mxu0 %v369
      %v439 = vpop.f32.mrf.mxu0
      %v440 = vadd.f32 0.0, %v439
      %v441 = vpop.f32.mrf.mxu0
      %v442 = vadd.f32 0.0, %v441
      %443 = vmatmul.bf16.gmra.mxu0 %v372
      %v444 = vpop.f32.mrf.mxu0
      %v445 = vadd.f32 0.0, %v444
      %v446 = vpop.f32.mrf.mxu0
      %v447 = vadd.f32 0.0, %v446
      %448 = vmatmul.bf16.gmra.mxu0 %v375
      %v449 = vpop.f32.mrf.mxu0
      %v450 = vadd.f32 0.0, %v449
      %v451 = vpop.f32.mrf.mxu0
      %v452 = vadd.f32 0.0, %v451
      %453 = vmatmul.bf16.gmra.mxu0 %v378
      %v454 = vpop.f32.mrf.mxu0
      %v455 = vadd.f32 0.0, %v454
      %v456 = vpop.f32.mrf.mxu0
      %v457 = vadd.f32 0.0, %v456
      %458 = vmatmul.bf16.gmra.mxu0 %v381
      %v459 = vpop.f32.mrf.mxu0
      %v460 = vadd.f32 0.0, %v459
      %v461 = vpop.f32.mrf.mxu0
      %v462 = vadd.f32 0.0, %v461
      %463 = vmatmul.bf16.gmra.mxu0 %v384
      %v464 = vpop.f32.mrf.mxu0
      %v465 = vadd.f32 0.0, %v464
      %v466 = vpop.f32.mrf.mxu0
      %v467 = vadd.f32 0.0, %v466
      %468 = vmatmul.bf16.gmra.mxu0 %v387
      %v469 = vpop.f32.mrf.mxu0
      %v470 = vadd.f32 0.0, %v469
      %v471 = vpop.f32.mrf.mxu0
      %v472 = vadd.f32 0.0, %v471
      %473 = vmatmul.bf16.gmra.mxu0 %v390
      %v474 = vpop.f32.mrf.mxu0
      %v475 = vadd.f32 0.0, %v474
      %v476 = vpop.f32.mrf.mxu0
      %v477 = vadd.f32 0.0, %v476
      %478 = vmatmul.bf16.gmra.mxu0 %v393
      %v479 = vpop.f32.mrf.mxu0
      %v480 = vadd.f32 0.0, %v479
      %v481 = vpop.f32.mrf.mxu0
      %v482 = vadd.f32 0.0, %v481
      %483 = vdwg.mxu0
      %v484 = vpack.c.bf16 %v405, %v405
      %v485 = vpack.c.bf16 %v407, %v407
      %v486 = vpack.c.bf16 %v410, %v410
      %v487 = vpack.c.bf16 %v412, %v412
      %v488 = vpack.c.bf16 %v415, %v415
      %v489 = vpack.c.bf16 %v417, %v417
      %v490 = vpack.c.bf16 %v420, %v420
      %v491 = vpack.c.bf16 %v422, %v422
      %v492 = vpack.c.bf16 %v425, %v425
      %v493 = vpack.c.bf16 %v427, %v427
      %v494 = vpack.c.bf16 %v430, %v430
      %v495 = vpack.c.bf16 %v432, %v432
      %v496 = vpack.c.bf16 %v435, %v435
      %v497 = vpack.c.bf16 %v437, %v437
      %v498 = vpack.c.bf16 %v440, %v440
      %v499 = vpack.c.bf16 %v442, %v442
      %v500 = vpack.c.bf16 %v445, %v445
      %v501 = vpack.c.bf16 %v447, %v447
      %v502 = vpack.c.bf16 %v450, %v450
      %v503 = vpack.c.bf16 %v452, %v452
      %v504 = vpack.c.bf16 %v455, %v455
      %v505 = vpack.c.bf16 %v457, %v457
      %v506 = vpack.c.bf16 %v460, %v460
      %v507 = vpack.c.bf16 %v462, %v462
      %v508 = vpack.c.bf16 %v465, %v465
      %v509 = vpack.c.bf16 %v467, %v467
      %v510 = vpack.c.bf16 %v470, %v470
      %v511 = vpack.c.bf16 %v472, %v472
      %v512 = vpack.c.bf16 %v475, %v475
      %v513 = vpack.c.bf16 %v477, %v477
      %v514 = vpack.c.bf16 %v480, %v480
      %v515 = vpack.c.bf16 %v482, %v482
      %516 = vst [vmem:[%s202] sm:$0xf] %v484
      %517 = vst [vmem:[%s202 + $0x4] sm:$0xf] %v485
      %518 = vst [vmem:[%s202 + $0x8] sm:$0xf] %v486
      %519 = vst [vmem:[%s202 + $0xc] sm:$0xf] %v487
      %520 = vst [vmem:[%s202 + $0x10] sm:$0xf] %v488
      %521 = vst [vmem:[%s202 + $0x14] sm:$0xf] %v489
      %522 = vst [vmem:[%s202 + $0x18] sm:$0xf] %v490
      %523 = vst [vmem:[%s202 + $0x1c] sm:$0xf] %v491
      %524 = vst [vmem:[%s202 + $0x20] sm:$0xf] %v492
      %525 = vst [vmem:[%s202 + $0x24] sm:$0xf] %v493
      %526 = vst [vmem:[%s202 + $0x28] sm:$0xf] %v494
      %527 = vst [vmem:[%s202 + $0x2c] sm:$0xf] %v495
      %528 = vst [vmem:[%s202 + $0x30] sm:$0xf] %v496
      %529 = vst [vmem:[%s202 + $0x34] sm:$0xf] %v497
      %530 = vst [vmem:[%s202 + $0x38] sm:$0xf] %v498
      %531 = vst [vmem:[%s202 + $0x3c] sm:$0xf] %v499
      %532 = vst [vmem:[%s202 + $0x40] sm:$0xf] %v500
      %533 = vst [vmem:[%s202 + $0x44] sm:$0xf] %v501
      %534 = vst [vmem:[%s202 + $0x48] sm:$0xf] %v502
      %535 = vst [vmem:[%s202 + $0x4c] sm:$0xf] %v503
      %536 = vst [vmem:[%s202 + $0x50] sm:$0xf] %v504
      %537 = vst [vmem:[%s202 + $0x54] sm:$0xf] %v505
      %538 = vst [vmem:[%s202 + $0x58] sm:$0xf] %v506
      %539 = vst [vmem:[%s202 + $0x5c] sm:$0xf] %v507
      %540 = vst [vmem:[%s202 + $0x60] sm:$0xf] %v508
      %541 = vst [vmem:[%s202 + $0x64] sm:$0xf] %v509
      %542 = vst [vmem:[%s202 + $0x68] sm:$0xf] %v510
      %543 = vst [vmem:[%s202 + $0x6c] sm:$0xf] %v511
      %544 = vst [vmem:[%s202 + $0x70] sm:$0xf] %v512
      %545 = vst [vmem:[%s202 + $0x74] sm:$0xf] %v513
      %546 = vst [vmem:[%s202 + $0x78] sm:$0xf] %v514
      %547 = vst [vmem:[%s202 + $0x7c] sm:$0xf] %v515
      %p548 = scmp.eq.s32.totalorder %s20, 0
      // Predicated region
      $region29: #{conv_block_x2.4} parent=27 // pred_check
        %p549 = pneg %p548
      $region30: #{conv_block_x2.4} parent=27 // pred_check_branch
        %551 = sbr.rel (%p549) target = $region32
      $region31: #{conv_block_x2.4} parent=27 // pred_region
        %552 = vst [vmem:[#allocation2] sm:$0xff] 0.0
      $region32: #{conv_block_x2.4} parent=27 // pred_fallthru
        _
      %v553 = vld [vmem:[#allocation2] sm:$0x1]
      %v554 = vadd.f32 %v405, %v407
      %v555 = vadd.f32 %v554, %v410
      %v556 = vadd.f32 %v555, %v412
      %v557 = vadd.f32 %v556, %v415
      %v558 = vadd.f32 %v557, %v417
      %v559 = vadd.f32 %v558, %v420
      %v560 = vadd.f32 %v559, %v422
      %v561 = vadd.f32 %v560, %v425
      %v562 = vadd.f32 %v561, %v427
      %v563 = vadd.f32 %v562, %v430
      %v564 = vadd.f32 %v563, %v432
      %v565 = vadd.f32 %v564, %v435
      %v566 = vadd.f32 %v565, %v437
      %v567 = vadd.f32 %v566, %v440
      %v568 = vadd.f32 %v567, %v442
      %v569 = vadd.f32 %v568, %v445
      %v570 = vadd.f32 %v569, %v447
      %v571 = vadd.f32 %v570, %v450
      %v572 = vadd.f32 %v571, %v452
      %v573 = vadd.f32 %v572, %v455
      %v574 = vadd.f32 %v573, %v457
      %v575 = vadd.f32 %v574, %v460
      %v576 = vadd.f32 %v575, %v462
      %v577 = vadd.f32 %v576, %v465
      %v578 = vadd.f32 %v577, %v467
      %v579 = vadd.f32 %v578, %v470
      %v580 = vadd.f32 %v579, %v472
      %v581 = vadd.f32 %v580, %v475
      %v582 = vadd.f32 %v581, %v477
      %v583 = vadd.f32 %v582, %v480
      %v584 = vadd.f32 %v583, %v482
      %v585 = vrot.slane %v584, 4
      %v586 = vadd.f32 %v584, %v585
      %v587 = vrot.slane %v586, 2
      %v588 = vadd.f32 %v586, %v587
      %v589 = vrot.slane %v588, 1
      %v590 = vadd.f32 %v588, %v589
      %v591 = vadd.f32 %v553, %v590
      %592 = vst [vmem:[#allocation2] sm:$0x1] %v591
      %v593 = vld [vmem:[#allocation2 + $0x1] sm:$0x1]
      %v594 = vmul.f32 %v405, %v405
      %v595 = vmul.f32 %v407, %v407
      %v596 = vmul.f32 %v410, %v410
      %v597 = vmul.f32 %v412, %v412
      %v598 = vmul.f32 %v415, %v415
      %v599 = vmul.f32 %v417, %v417
      %v600 = vmul.f32 %v420, %v420
      %v601 = vmul.f32 %v422, %v422
      %v602 = vmul.f32 %v425, %v425
      %v603 = vmul.f32 %v427, %v427
      %v604 = vmul.f32 %v430, %v430
      %v605 = vmul.f32 %v432, %v432
      %v606 = vmul.f32 %v435, %v435
      %v607 = vmul.f32 %v437, %v437
      %v608 = vmul.f32 %v440, %v440
      %v609 = vmul.f32 %v442, %v442
      %v610 = vmul.f32 %v445, %v445
      %v611 = vmul.f32 %v447, %v447
      %v612 = vmul.f32 %v450, %v450
      %v613 = vmul.f32 %v452, %v452
      %v614 = vmul.f32 %v455, %v455
      %v615 = vmul.f32 %v457, %v457
      %v616 = vmul.f32 %v460, %v460
      %v617 = vmul.f32 %v462, %v462
      %v618 = vmul.f32 %v465, %v465
      %v619 = vmul.f32 %v467, %v467
      %v620 = vmul.f32 %v470, %v470
      %v621 = vmul.f32 %v472, %v472
      %v622 = vmul.f32 %v475, %v475
      %v623 = vmul.f32 %v477, %v477
      %v624 = vmul.f32 %v480, %v480
      %v625 = vmul.f32 %v482, %v482
      %v626 = vadd.f32 %v594, %v595
      %v627 = vadd.f32 %v626, %v596
      %v628 = vadd.f32 %v627, %v597
      %v629 = vadd.f32 %v628, %v598
      %v630 = vadd.f32 %v629, %v599
      %v631 = vadd.f32 %v630, %v600
      %v632 = vadd.f32 %v631, %v601
      %v633 = vadd.f32 %v632, %v602
      %v634 = vadd.f32 %v633, %v603
      %v635 = vadd.f32 %v634, %v604
      %v636 = vadd.f32 %v635, %v605
      %v637 = vadd.f32 %v636, %v606
      %v638 = vadd.f32 %v637, %v607
      %v639 = vadd.f32 %v638, %v608
      %v640 = vadd.f32 %v639, %v609
      %v641 = vadd.f32 %v640, %v610
      %v642 = vadd.f32 %v641, %v611
      %v643 = vadd.f32 %v642, %v612
      %v644 = vadd.f32 %v643, %v613
      %v645 = vadd.f32 %v644, %v614
      %v646 = vadd.f32 %v645, %v615
      %v647 = vadd.f32 %v646, %v616
      %v648 = vadd.f32 %v647, %v617
      %v649 = vadd.f32 %v648, %v618
      %v650 = vadd.f32 %v649, %v619
      %v651 = vadd.f32 %v650, %v620
      %v652 = vadd.f32 %v651, %v621
      %v653 = vadd.f32 %v652, %v622
      %v654 = vadd.f32 %v653, %v623
      %v655 = vadd.f32 %v654, %v624
      %v656 = vadd.f32 %v655, %v625
      %v657 = vrot.slane %v656, 4
      %v658 = vadd.f32 %v656, %v657
      %v659 = vrot.slane %v658, 2
      %v660 = vadd.f32 %v658, %v659
      %v661 = vrot.slane %v660, 1
      %v662 = vadd.f32 %v660, %v661
      %v663 = vadd.f32 %v593, %v662
      %664 = vst [vmem:[#allocation2 + $0x1] sm:$0x1] %v663
      // Predicated region
      $region33: #{conv_block_x2.4} parent=27 // pred_check
        %p665 = pneg %p548
      $region34: #{conv_block_x2.4} parent=27 // pred_check_branch
        %667 = sbr.rel (%p665) target = $region36
      $region35: #{conv_block_x2.4} parent=27 // pred_region
        %v668 = vld [vmem:[#allocation2] sm:$0xff]
        %669 = vst [vmem:[%s208] sm:$0xff] %v668
      $region36: #{conv_block_x2.4} parent=27 // pred_fallthru
        _
      %s670 = sadd.s32 %s19, %s20
      %s671 = smul.u32 32, %s670
      %p672 = scmp.lt.s32.totalorder %s671, 63
      %s673 = scalar_select %p672, %s671, 63
      %s674 = smul.addr %s673, 4
      %s675 = scalar_lea.vmem %s2, %s674
      %p676 = scmp.lt.s32.totalorder %s19, 1
      %s677 = scalar_select %p676, %s19, 1
      %s678 = smul.addr %s677, 8
      %s679 = scalar_lea.vmem %s3, %s678
      // Predicated region
      $region37: #{conv_block_x2.4} parent=27 // pred_check
        %p680 = pneg %p96
      $region38: #{conv_block_x2.4} parent=27 // pred_check_branch
        %682 = sbr.rel (%p680) target = $region40
      $region39: #{conv_block_x2.4} parent=27 // pred_region
        %s683 = sadd.s32 %s19, %s20
        %s684 = smul.u32 32, %s683
      $region40: #{conv_block_x2.4} parent=27 // pred_fallthru
        _
      // Predicated region
      $region41: #{conv_block_x2.4} parent=27 // pred_check
        %p685 = pneg %p122
      $region42: #{conv_block_x2.4} parent=27 // pred_check_branch
        %687 = sbr.rel (%p685) target = $region44
      $region43: #{conv_block_x2.4} parent=27 // pred_region
        _
      $region44: #{conv_block_x2.4} parent=27 // pred_fallthru
        _
    $region28: #{conv_block_x2.4} parent=5 // pred_fallthru
      _
    %p688 = scmp.le.s32.totalorder 2, %s10
    // Predicated region
    $region45: #{conv_block_x2.4} parent=5 // pred_check
      %p689 = pneg %p688
    $region46: #{conv_block_x2.4} parent=5 // pred_check_branch
      %691 = sbr.rel (%p689) target = $region48
    $region47: #{conv_block_x2.4} parent=5 // pred_region
      %s692 = ssub.s32 %s10, 2
      // Predicated region
      $region49: #{conv_block_x2.4} parent=47 // pred_check
        %p693 = pneg %p102
      $region50: #{conv_block_x2.4} parent=47 // pred_check_branch
        %695 = sbr.rel (%p693) target = $region52
      $region51: #{conv_block_x2.4} parent=47 // pred_region
        %s696 = sadd.s32 %s21, %s22
        %s697 = smul.u32 32, %s696
        %p698 = scmp.lt.s32.totalorder %s697, 63
        %s699 = scalar_select %p698, %s697, 63
        %s700 = smul.addr %s699, 4
        %s701 = scalar_lea.vmem %s2, %s700
      $region52: #{conv_block_x2.4} parent=47 // pred_fallthru
        _
      // Predicated region
      $region53: #{conv_block_x2.4} parent=47 // pred_check
        %p702 = pneg %p128
      $region54: #{conv_block_x2.4} parent=47 // pred_check_branch
        %704 = sbr.rel (%p702) target = $region56
      $region55: #{conv_block_x2.4} parent=47 // pred_region
        %p705 = scmp.lt.s32.totalorder %s21, 1
        %s706 = scalar_select %p705, %s21, 1
        %s707 = smul.addr %s706, 8
        %s708 = scalar_lea.vmem %s3, %s707
      $region56: #{conv_block_x2.4} parent=47 // pred_fallthru
        _
    $region48: #{conv_block_x2.4} parent=5 // pred_fallthru
      _
  $region6: #{conv_block_x2.4} parent=0 // loop_footer
    %s14 = sadd.s32 1, %s10
  $region7: #{conv_block_x2.4} parent=0 // loop_footer_branch
    %9 = sbr.rel target = $region3
  $region8: #{conv_block_x2.4} parent=0 // loop_exit
    _

// kernel: conv_block_x2.5
$region0: #{conv_block_x2.5}
  #allocation0 [shape = 'u32[]', space=smem, size = 0x4, offset = 0x4, fixed_abs, tag = 'smem constant byte address 0x4 - core index']
  #allocation1 [shape = 'u32[72,128]{1,0:T(1,128)}', space=vmem, size = 0x9000, scoped, tag = 'internal scratch']
  %s0 = inlined_call_operand.vmem [shape: bf16[512,128], index: 0, kind: input, shape index: {}]
  %s1 = inlined_call_operand.vmem [shape: f32[1,128], index: 1, kind: input, shape index: {}]
  %s2 = inlined_call_operand.vmem [shape: f32[1,128], index: 2, kind: input, shape index: {}]
  %s3 = inlined_call_operand.vmem [shape: bf16[512,128], index: 3, kind: output, shape index: {}]
  %s4 = sld [smem:[#allocation0]]
  $region22: #{conv_block_x2.5} parent=0
    _
  %s6 = ssub.s32 1, %s4
  %s7 = scalar_select 0, %s6, %s4
  // Predicated region
  $region2: #{conv_block_x2.5} parent=0 // pred_check
    _
  $region3: #{conv_block_x2.5} parent=0 // pred_check_branch
    %9 = sbr.rel (0) target = $region5
  $region4: #{conv_block_x2.5} parent=0 // pred_region
    _
  $region5: #{conv_block_x2.5} parent=0 // pred_fallthru
    _
  // Predicated region
  $region6: #{conv_block_x2.5} parent=0 // pred_check
    _
  $region7: #{conv_block_x2.5} parent=0 // pred_check_branch
    %11 = sbr.rel (0) target = $region9
  $region8: #{conv_block_x2.5} parent=0 // pred_region
    _
  $region9: #{conv_block_x2.5} parent=0 // pred_fallthru
    _
  // Predicated region
  $region10: #{conv_block_x2.5} parent=0 // pred_check
    _
  $region11: #{conv_block_x2.5} parent=0 // pred_check_branch
    %13 = sbr.rel (0) target = $region13
  $region12: #{conv_block_x2.5} parent=0 // pred_region
    _
  $region13: #{conv_block_x2.5} parent=0 // pred_fallthru
    _
  %v14 = vld [vmem:[%s0] sm:$0xf]
  %v15 = vld [vmem:[%s0 + $0x4] sm:$0xf]
  %v16 = vld [vmem:[%s0 + $0x8] sm:$0xf]
  %v17 = vld [vmem:[%s0 + $0xc] sm:$0xf]
  %v18 = vld [vmem:[%s0 + $0x10] sm:$0xf]
  %v19 = vld [vmem:[%s0 + $0x14] sm:$0xf]
  %v20 = vld [vmem:[%s0 + $0x18] sm:$0xf]
  %v21 = vld [vmem:[%s0 + $0x1c] sm:$0xf]
  %v22 = vld [vmem:[%s0 + $0x20] sm:$0xf]
  %v23 = vld [vmem:[%s0 + $0x24] sm:$0xf]
  %v24 = vld [vmem:[%s0 + $0x28] sm:$0xf]
  %v25 = vld [vmem:[%s0 + $0x2c] sm:$0xf]
  %v26 = vld [vmem:[%s0 + $0x30] sm:$0xf]
  %v27 = vld [vmem:[%s0 + $0x34] sm:$0xf]
  %v28 = vld [vmem:[%s0 + $0x38] sm:$0xf]
  %v29 = vld [vmem:[%s0 + $0x3c] sm:$0xf]
  %v30 = vld [vmem:[%s0 + $0x40] sm:$0xf]
  %v31 = vld [vmem:[%s0 + $0x44] sm:$0xf]
  %v32 = vld [vmem:[%s0 + $0x48] sm:$0xf]
  %v33 = vld [vmem:[%s0 + $0x4c] sm:$0xf]
  %v34 = vld [vmem:[%s0 + $0x50] sm:$0xf]
  %v35 = vld [vmem:[%s0 + $0x54] sm:$0xf]
  %v36 = vld [vmem:[%s0 + $0x58] sm:$0xf]
  %v37 = vld [vmem:[%s0 + $0x5c] sm:$0xf]
  %v38 = vld [vmem:[%s0 + $0x60] sm:$0xf]
  %v39 = vld [vmem:[%s0 + $0x64] sm:$0xf]
  %v40 = vld [vmem:[%s0 + $0x68] sm:$0xf]
  %v41 = vld [vmem:[%s0 + $0x6c] sm:$0xf]
  %v42 = vld [vmem:[%s0 + $0x70] sm:$0xf]
  %v43 = vld [vmem:[%s0 + $0x74] sm:$0xf]
  %v44 = vld [vmem:[%s0 + $0x78] sm:$0xf]
  %v45 = vld [vmem:[%s0 + $0x7c] sm:$0xf]
  %v46 = vld [vmem:[%s0 + $0x80] sm:$0xf]
  %v47 = vld [vmem:[%s0 + $0x84] sm:$0xf]
  %v48 = vld [vmem:[%s0 + $0x88] sm:$0xf]
  %v49 = vld [vmem:[%s0 + $0x8c] sm:$0xf]
  %v50 = vld [vmem:[%s0 + $0x90] sm:$0xf]
  %v51 = vld [vmem:[%s0 + $0x94] sm:$0xf]
  %v52 = vld [vmem:[%s0 + $0x98] sm:$0xf]
  %v53 = vld [vmem:[%s0 + $0x9c] sm:$0xf]
  %v54 = vld [vmem:[%s0 + $0xa0] sm:$0xf]
  %v55 = vld [vmem:[%s0 + $0xa4] sm:$0xf]
  %v56 = vld [vmem:[%s0 + $0xa8] sm:$0xf]
  %v57 = vld [vmem:[%s0 + $0xac] sm:$0xf]
  %v58 = vld [vmem:[%s0 + $0xb0] sm:$0xf]
  %v59 = vld [vmem:[%s0 + $0xb4] sm:$0xf]
  %v60 = vld [vmem:[%s0 + $0xb8] sm:$0xf]
  %v61 = vld [vmem:[%s0 + $0xbc] sm:$0xf]
  %v62 = vld [vmem:[%s0 + $0xc0] sm:$0xf]
  %v63 = vld [vmem:[%s0 + $0xc4] sm:$0xf]
  %v64 = vld [vmem:[%s0 + $0xc8] sm:$0xf]
  %v65 = vld [vmem:[%s0 + $0xcc] sm:$0xf]
  %v66 = vld [vmem:[%s0 + $0xd0] sm:$0xf]
  %v67 = vld [vmem:[%s0 + $0xd4] sm:$0xf]
  %v68 = vld [vmem:[%s0 + $0xd8] sm:$0xf]
  %v69 = vld [vmem:[%s0 + $0xdc] sm:$0xf]
  %v70 = vld [vmem:[%s0 + $0xe0] sm:$0xf]
  %v71 = vld [vmem:[%s0 + $0xe4] sm:$0xf]
  %v72 = vld [vmem:[%s0 + $0xe8] sm:$0xf]
  %v73 = vld [vmem:[%s0 + $0xec] sm:$0xf]
  %v74 = vld [vmem:[%s0 + $0xf0] sm:$0xf]
  %v75 = vld [vmem:[%s0 + $0xf4] sm:$0xf]
  %v76 = vld [vmem:[%s0 + $0xf8] sm:$0xf]
  %v77 = vld [vmem:[%s0 + $0xfc] sm:$0xf]
  %v78 = vunpack.c.l.bf16 %v14
  %v79 = vunpack.c.l.bf16 %v15
  %v80 = vunpack.c.l.bf16 %v16
  %v81 = vunpack.c.l.bf16 %v17
  %v82 = vunpack.c.l.bf16 %v18
  %v83 = vunpack.c.l.bf16 %v19
  %v84 = vunpack.c.l.bf16 %v20
  %v85 = vunpack.c.l.bf16 %v21
  %v86 = vunpack.c.l.bf16 %v22
  %v87 = vunpack.c.l.bf16 %v23
  %v88 = vunpack.c.l.bf16 %v24
  %v89 = vunpack.c.l.bf16 %v25
  %v90 = vunpack.c.l.bf16 %v26
  %v91 = vunpack.c.l.bf16 %v27
  %v92 = vunpack.c.l.bf16 %v28
  %v93 = vunpack.c.l.bf16 %v29
  %v94 = vunpack.c.l.bf16 %v30
  %v95 = vunpack.c.l.bf16 %v31
  %v96 = vunpack.c.l.bf16 %v32
  %v97 = vunpack.c.l.bf16 %v33
  %v98 = vunpack.c.l.bf16 %v34
  %v99 = vunpack.c.l.bf16 %v35
  %v100 = vunpack.c.l.bf16 %v36
  %v101 = vunpack.c.l.bf16 %v37
  %v102 = vunpack.c.l.bf16 %v38
  %v103 = vunpack.c.l.bf16 %v39
  %v104 = vunpack.c.l.bf16 %v40
  %v105 = vunpack.c.l.bf16 %v41
  %v106 = vunpack.c.l.bf16 %v42
  %v107 = vunpack.c.l.bf16 %v43
  %v108 = vunpack.c.l.bf16 %v44
  %v109 = vunpack.c.l.bf16 %v45
  %v110 = vunpack.c.l.bf16 %v46
  %v111 = vunpack.c.l.bf16 %v47
  %v112 = vunpack.c.l.bf16 %v48
  %v113 = vunpack.c.l.bf16 %v49
  %v114 = vunpack.c.l.bf16 %v50
  %v115 = vunpack.c.l.bf16 %v51
  %v116 = vunpack.c.l.bf16 %v52
  %v117 = vunpack.c.l.bf16 %v53
  %v118 = vunpack.c.l.bf16 %v54
  %v119 = vunpack.c.l.bf16 %v55
  %v120 = vunpack.c.l.bf16 %v56
  %v121 = vunpack.c.l.bf16 %v57
  %v122 = vunpack.c.l.bf16 %v58
  %v123 = vunpack.c.l.bf16 %v59
  %v124 = vunpack.c.l.bf16 %v60
  %v125 = vunpack.c.l.bf16 %v61
  %v126 = vunpack.c.l.bf16 %v62
  %v127 = vunpack.c.l.bf16 %v63
  %v128 = vunpack.c.l.bf16 %v64
  %v129 = vunpack.c.l.bf16 %v65
  %v130 = vunpack.c.l.bf16 %v66
  %v131 = vunpack.c.l.bf16 %v67
  %v132 = vunpack.c.l.bf16 %v68
  %v133 = vunpack.c.l.bf16 %v69
  %v134 = vunpack.c.l.bf16 %v70
  %v135 = vunpack.c.l.bf16 %v71
  %v136 = vunpack.c.l.bf16 %v72
  %v137 = vunpack.c.l.bf16 %v73
  %v138 = vunpack.c.l.bf16 %v74
  %v139 = vunpack.c.l.bf16 %v75
  %v140 = vunpack.c.l.bf16 %v76
  %v141 = vunpack.c.l.bf16 %v77
  %v142 = vld [vmem:[%s1] sm:$0x1]
  %v144 = vperm.slane %v142, 0
  %v146 = vmul.f32 %v78, %v144
  %v147 = vmul.f32 %v79, %v144
  %v148 = vmul.f32 %v80, %v144
  %v149 = vmul.f32 %v81, %v144
  %v150 = vmul.f32 %v82, %v144
  %v151 = vmul.f32 %v83, %v144
  %v152 = vmul.f32 %v84, %v144
  %v153 = vmul.f32 %v85, %v144
  %v154 = vmul.f32 %v86, %v144
  %v155 = vmul.f32 %v87, %v144
  %v156 = vmul.f32 %v88, %v144
  %v157 = vmul.f32 %v89, %v144
  %v158 = vmul.f32 %v90, %v144
  %v159 = vmul.f32 %v91, %v144
  %v160 = vmul.f32 %v92, %v144
  %v161 = vmul.f32 %v93, %v144
  %v162 = vmul.f32 %v94, %v144
  %v163 = vmul.f32 %v95, %v144
  %v164 = vmul.f32 %v96, %v144
  %v165 = vmul.f32 %v97, %v144
  %v166 = vmul.f32 %v98, %v144
  %v167 = vmul.f32 %v99, %v144
  %v168 = vmul.f32 %v100, %v144
  %v169 = vmul.f32 %v101, %v144
  %v170 = vmul.f32 %v102, %v144
  %v171 = vmul.f32 %v103, %v144
  %v172 = vmul.f32 %v104, %v144
  %v173 = vmul.f32 %v105, %v144
  %v174 = vmul.f32 %v106, %v144
  %v175 = vmul.f32 %v107, %v144
  %v176 = vmul.f32 %v108, %v144
  %v177 = vmul.f32 %v109, %v144
  %v178 = vmul.f32 %v110, %v144
  %v179 = vmul.f32 %v111, %v144
  %v180 = vmul.f32 %v112, %v144
  %v181 = vmul.f32 %v113, %v144
  %v182 = vmul.f32 %v114, %v144
  %v183 = vmul.f32 %v115, %v144
  %v184 = vmul.f32 %v116, %v144
  %v185 = vmul.f32 %v117, %v144
  %v186 = vmul.f32 %v118, %v144
  %v187 = vmul.f32 %v119, %v144
  %v188 = vmul.f32 %v120, %v144
  %v189 = vmul.f32 %v121, %v144
  %v190 = vmul.f32 %v122, %v144
  %v191 = vmul.f32 %v123, %v144
  %v192 = vmul.f32 %v124, %v144
  %v193 = vmul.f32 %v125, %v144
  %v194 = vmul.f32 %v126, %v144
  %v195 = vmul.f32 %v127, %v144
  %v196 = vmul.f32 %v128, %v144
  %v197 = vmul.f32 %v129, %v144
  %v198 = vmul.f32 %v130, %v144
  %v199 = vmul.f32 %v131, %v144
  %v200 = vmul.f32 %v132, %v144
  %v201 = vmul.f32 %v133, %v144
  %v202 = vmul.f32 %v134, %v144
  %v203 = vmul.f32 %v135, %v144
  %v204 = vmul.f32 %v136, %v144
  %v205 = vmul.f32 %v137, %v144
  %v206 = vmul.f32 %v138, %v144
  %v207 = vmul.f32 %v139, %v144
  %v208 = vmul.f32 %v140, %v144
  %v209 = vmul.f32 %v141, %v144
  %v210 = vld [vmem:[%s2] sm:$0x1]
  %v212 = vperm.slane %v210, 0
  %v214 = vadd.f32 %v146, %v212
  %v215 = vadd.f32 %v147, %v212
  %v216 = vadd.f32 %v148, %v212
  %v217 = vadd.f32 %v149, %v212
  %v218 = vadd.f32 %v150, %v212
  %v219 = vadd.f32 %v151, %v212
  %v220 = vadd.f32 %v152, %v212
  %v221 = vadd.f32 %v153, %v212
  %v222 = vadd.f32 %v154, %v212
  %v223 = vadd.f32 %v155, %v212
  %v224 = vadd.f32 %v156, %v212
  %v225 = vadd.f32 %v157, %v212
  %v226 = vadd.f32 %v158, %v212
  %v227 = vadd.f32 %v159, %v212
  %v228 = vadd.f32 %v160, %v212
  %v229 = vadd.f32 %v161, %v212
  %v230 = vadd.f32 %v162, %v212
  %v231 = vadd.f32 %v163, %v212
  %v232 = vadd.f32 %v164, %v212
  %v233 = vadd.f32 %v165, %v212
  %v234 = vadd.f32 %v166, %v212
  %v235 = vadd.f32 %v167, %v212
  %v236 = vadd.f32 %v168, %v212
  %v237 = vadd.f32 %v169, %v212
  %v238 = vadd.f32 %v170, %v212
  %v239 = vadd.f32 %v171, %v212
  %v240 = vadd.f32 %v172, %v212
  %v241 = vadd.f32 %v173, %v212
  %v242 = vadd.f32 %v174, %v212
  %v243 = vadd.f32 %v175, %v212
  %v244 = vadd.f32 %v176, %v212
  %v245 = vadd.f32 %v177, %v212
  %v246 = vadd.f32 %v178, %v212
  %v247 = vadd.f32 %v179, %v212
  %v248 = vadd.f32 %v180, %v212
  %v249 = vadd.f32 %v181, %v212
  %v250 = vadd.f32 %v182, %v212
  %v251 = vadd.f32 %v183, %v212
  %v252 = vadd.f32 %v184, %v212
  %v253 = vadd.f32 %v185, %v212
  %v254 = vadd.f32 %v186, %v212
  %v255 = vadd.f32 %v187, %v212
  %v256 = vadd.f32 %v188, %v212
  %v257 = vadd.f32 %v189, %v212
  %v258 = vadd.f32 %v190, %v212
  %v259 = vadd.f32 %v191, %v212
  %v260 = vadd.f32 %v192, %v212
  %v261 = vadd.f32 %v193, %v212
  %v262 = vadd.f32 %v194, %v212
  %v263 = vadd.f32 %v195, %v212
  %v264 = vadd.f32 %v196, %v212
  %v265 = vadd.f32 %v197, %v212
  %v266 = vadd.f32 %v198, %v212
  %v267 = vadd.f32 %v199, %v212
  %v268 = vadd.f32 %v200, %v212
  %v269 = vadd.f32 %v201, %v212
  %v270 = vadd.f32 %v202, %v212
  %v271 = vadd.f32 %v203, %v212
  %v272 = vadd.f32 %v204, %v212
  %v273 = vadd.f32 %v205, %v212
  %v274 = vadd.f32 %v206, %v212
  %v275 = vadd.f32 %v207, %v212
  %v276 = vadd.f32 %v208, %v212
  %v277 = vadd.f32 %v209, %v212
  %v278 = vmax.f32 %v214, 0.0
  %v279 = vmax.f32 %v215, 0.0
  %v280 = vmax.f32 %v216, 0.0
  %v281 = vmax.f32 %v217, 0.0
  %v282 = vmax.f32 %v218, 0.0
  %v283 = vmax.f32 %v219, 0.0
  %v284 = vmax.f32 %v220, 0.0
  %v285 = vmax.f32 %v221, 0.0
  %v286 = vmax.f32 %v222, 0.0
  %v287 = vmax.f32 %v223, 0.0
  %v288 = vmax.f32 %v224, 0.0
  %v289 = vmax.f32 %v225, 0.0
  %v290 = vmax.f32 %v226, 0.0
  %v291 = vmax.f32 %v227, 0.0
  %v292 = vmax.f32 %v228, 0.0
  %v293 = vmax.f32 %v229, 0.0
  %v294 = vmax.f32 %v230, 0.0
  %v295 = vmax.f32 %v231, 0.0
  %v296 = vmax.f32 %v232, 0.0
  %v297 = vmax.f32 %v233, 0.0
  %v298 = vmax.f32 %v234, 0.0
  %v299 = vmax.f32 %v235, 0.0
  %v300 = vmax.f32 %v236, 0.0
  %v301 = vmax.f32 %v237, 0.0
  %v302 = vmax.f32 %v238, 0.0
  %v303 = vmax.f32 %v239, 0.0
  %v304 = vmax.f32 %v240, 0.0
  %v305 = vmax.f32 %v241, 0.0
  %v306 = vmax.f32 %v242, 0.0
  %v307 = vmax.f32 %v243, 0.0
  %v308 = vmax.f32 %v244, 0.0
  %v309 = vmax.f32 %v245, 0.0
  %v310 = vmax.f32 %v246, 0.0
  %v311 = vmax.f32 %v247, 0.0
  %v312 = vmax.f32 %v248, 0.0
  %v313 = vmax.f32 %v249, 0.0
  %v314 = vmax.f32 %v250, 0.0
  %v315 = vmax.f32 %v251, 0.0
  %v316 = vmax.f32 %v252, 0.0
  %v317 = vmax.f32 %v253, 0.0
  %v318 = vmax.f32 %v254, 0.0
  %v319 = vmax.f32 %v255, 0.0
  %v320 = vmax.f32 %v256, 0.0
  %v321 = vmax.f32 %v257, 0.0
  %v322 = vmax.f32 %v258, 0.0
  %v323 = vmax.f32 %v259, 0.0
  %v324 = vmax.f32 %v260, 0.0
  %v325 = vmax.f32 %v261, 0.0
  %v326 = vmax.f32 %v262, 0.0
  %v327 = vmax.f32 %v263, 0.0
  %v328 = vmax.f32 %v264, 0.0
  %v329 = vmax.f32 %v265, 0.0
  %v330 = vmax.f32 %v266, 0.0
  %v331 = vmax.f32 %v267, 0.0
  %v332 = vmax.f32 %v268, 0.0
  %v333 = vmax.f32 %v269, 0.0
  %v334 = vmax.f32 %v270, 0.0
  %v335 = vmax.f32 %v271, 0.0
  %v336 = vmax.f32 %v272, 0.0
  %v337 = vmax.f32 %v273, 0.0
  %v338 = vmax.f32 %v274, 0.0
  %v339 = vmax.f32 %v275, 0.0
  %v340 = vmax.f32 %v276, 0.0
  %v341 = vmax.f32 %v277, 0.0
  %v342 = vpack.c.bf16 %v278, %v278
  %v343 = vpack.c.bf16 %v279, %v279
  %v344 = vpack.c.bf16 %v280, %v280
  %v345 = vpack.c.bf16 %v281, %v281
  %v346 = vpack.c.bf16 %v282, %v282
  %v347 = vpack.c.bf16 %v283, %v283
  %v348 = vpack.c.bf16 %v284, %v284
  %v349 = vpack.c.bf16 %v285, %v285
  %v350 = vpack.c.bf16 %v286, %v286
  %v351 = vpack.c.bf16 %v287, %v287
  %v352 = vpack.c.bf16 %v288, %v288
  %v353 = vpack.c.bf16 %v289, %v289
  %v354 = vpack.c.bf16 %v290, %v290
  %v355 = vpack.c.bf16 %v291, %v291
  %v356 = vpack.c.bf16 %v292, %v292
  %v357 = vpack.c.bf16 %v293, %v293
  %v358 = vpack.c.bf16 %v294, %v294
  %v359 = vpack.c.bf16 %v295, %v295
  %v360 = vpack.c.bf16 %v296, %v296
  %v361 = vpack.c.bf16 %v297, %v297
  %v362 = vpack.c.bf16 %v298, %v298
  %v363 = vpack.c.bf16 %v299, %v299
  %v364 = vpack.c.bf16 %v300, %v300
  %v365 = vpack.c.bf16 %v301, %v301
  %v366 = vpack.c.bf16 %v302, %v302
  %v367 = vpack.c.bf16 %v303, %v303
  %v368 = vpack.c.bf16 %v304, %v304
  %v369 = vpack.c.bf16 %v305, %v305
  %v370 = vpack.c.bf16 %v306, %v306
  %v371 = vpack.c.bf16 %v307, %v307
  %v372 = vpack.c.bf16 %v308, %v308
  %v373 = vpack.c.bf16 %v309, %v309
  %v374 = vpack.c.bf16 %v310, %v310
  %v375 = vpack.c.bf16 %v311, %v311
  %v376 = vpack.c.bf16 %v312, %v312
  %v377 = vpack.c.bf16 %v313, %v313
  %v378 = vpack.c.bf16 %v314, %v314
  %v379 = vpack.c.bf16 %v315, %v315
  %v380 = vpack.c.bf16 %v316, %v316
  %v381 = vpack.c.bf16 %v317, %v317
  %v382 = vpack.c.bf16 %v318, %v318
  %v383 = vpack.c.bf16 %v319, %v319
  %v384 = vpack.c.bf16 %v320, %v320
  %v385 = vpack.c.bf16 %v321, %v321
  %v386 = vpack.c.bf16 %v322, %v322
  %v387 = vpack.c.bf16 %v323, %v323
  %v388 = vpack.c.bf16 %v324, %v324
  %v389 = vpack.c.bf16 %v325, %v325
  %v390 = vpack.c.bf16 %v326, %v326
  %v391 = vpack.c.bf16 %v327, %v327
  %v392 = vpack.c.bf16 %v328, %v328
  %v393 = vpack.c.bf16 %v329, %v329
  %v394 = vpack.c.bf16 %v330, %v330
  %v395 = vpack.c.bf16 %v331, %v331
  %v396 = vpack.c.bf16 %v332, %v332
  %v397 = vpack.c.bf16 %v333, %v333
  %v398 = vpack.c.bf16 %v334, %v334
  %v399 = vpack.c.bf16 %v335, %v335
  %v400 = vpack.c.bf16 %v336, %v336
  %v401 = vpack.c.bf16 %v337, %v337
  %v402 = vpack.c.bf16 %v338, %v338
  %v403 = vpack.c.bf16 %v339, %v339
  %v404 = vpack.c.bf16 %v340, %v340
  %v405 = vpack.c.bf16 %v341, %v341
  %406 = vst [vmem:[%s3] sm:$0xf] %v342
  %407 = vst [vmem:[%s3 + $0x4] sm:$0xf] %v343
  %408 = vst [vmem:[%s3 + $0x8] sm:$0xf] %v344
  %409 = vst [vmem:[%s3 + $0xc] sm:$0xf] %v345
  %410 = vst [vmem:[%s3 + $0x10] sm:$0xf] %v346
  %411 = vst [vmem:[%s3 + $0x14] sm:$0xf] %v347
  %412 = vst [vmem:[%s3 + $0x18] sm:$0xf] %v348
  %413 = vst [vmem:[%s3 + $0x1c] sm:$0xf] %v349
  %414 = vst [vmem:[%s3 + $0x20] sm:$0xf] %v350
  %415 = vst [vmem:[%s3 + $0x24] sm:$0xf] %v351
  %416 = vst [vmem:[%s3 + $0x28] sm:$0xf] %v352
  %417 = vst [vmem:[%s3 + $0x2c] sm:$0xf] %v353
  %418 = vst [vmem:[%s3 + $0x30] sm:$0xf] %v354
  %419 = vst [vmem:[%s3 + $0x34] sm:$0xf] %v355
  %420 = vst [vmem:[%s3 + $0x38] sm:$0xf] %v356
  %421 = vst [vmem:[%s3 + $0x3c] sm:$0xf] %v357
  %422 = vst [vmem:[%s3 + $0x40] sm:$0xf] %v358
  %423 = vst [vmem:[%s3 + $0x44] sm:$0xf] %v359
  %424 = vst [vmem:[%s3 + $0x48] sm:$0xf] %v360
  %425 = vst [vmem:[%s3 + $0x4c] sm:$0xf] %v361
  %426 = vst [vmem:[%s3 + $0x50] sm:$0xf] %v362
  %427 = vst [vmem:[%s3 + $0x54] sm:$0xf] %v363
  %428 = vst [vmem:[%s3 + $0x58] sm:$0xf] %v364
  %429 = vst [vmem:[%s3 + $0x5c] sm:$0xf] %v365
  %430 = vst [vmem:[%s3 + $0x60] sm:$0xf] %v366
  %431 = vst [vmem:[%s3 + $0x64] sm:$0xf] %v367
  %432 = vst [vmem:[%s3 + $0x68] sm:$0xf] %v368
  %433 = vst [vmem:[%s3 + $0x6c] sm:$0xf] %v369
  %434 = vst [vmem:[%s3 + $0x70] sm:$0xf] %v370
  %435 = vst [vmem:[%s3 + $0x74] sm:$0xf] %v371
  %436 = vst [vmem:[%s3 + $0x78] sm:$0xf] %v372
  %437 = vst [vmem:[%s3 + $0x7c] sm:$0xf] %v373
  %438 = vst [vmem:[%s3 + $0x80] sm:$0xf] %v374
  %439 = vst [vmem:[%s3 + $0x84] sm:$0xf] %v375
  %440 = vst [vmem:[%s3 + $0x88] sm:$0xf] %v376
  %441 = vst [vmem:[%s3 + $0x8c] sm:$0xf] %v377
  %442 = vst [vmem:[%s3 + $0x90] sm:$0xf] %v378
  %443 = vst [vmem:[%s3 + $0x94] sm:$0xf] %v379
  %444 = vst [vmem:[%s3 + $0x98] sm:$0xf] %v380
  %445 = vst [vmem:[%s3 + $0x9c] sm:$0xf] %v381
  %446 = vst [vmem:[%s3 + $0xa0] sm:$0xf] %v382
  %447 = vst [vmem:[%s3 + $0xa4] sm:$0xf] %v383
  %448 = vst [vmem:[%s3 + $0xa8] sm:$0xf] %v384
  %449 = vst [vmem:[%s3 + $0xac] sm:$0xf] %v385
  %450 = vst [vmem:[%s3 + $0xb0] sm:$0xf] %v386
  %451 = vst [vmem:[%s3 + $0xb4] sm:$0xf] %v387
  %452 = vst [vmem:[%s3 + $0xb8] sm:$0xf] %v388
  %453 = vst [vmem:[%s3 + $0xbc] sm:$0xf] %v389
  %454 = vst [vmem:[%s3 + $0xc0] sm:$0xf] %v390
  %455 = vst [vmem:[%s3 + $0xc4] sm:$0xf] %v391
  %456 = vst [vmem:[%s3 + $0xc8] sm:$0xf] %v392
  %457 = vst [vmem:[%s3 + $0xcc] sm:$0xf] %v393
  %458 = vst [vmem:[%s3 + $0xd0] sm:$0xf] %v394
  %459 = vst [vmem:[%s3 + $0xd4] sm:$0xf] %v395
  %460 = vst [vmem:[%s3 + $0xd8] sm:$0xf] %v396
  %461 = vst [vmem:[%s3 + $0xdc] sm:$0xf] %v397
  %462 = vst [vmem:[%s3 + $0xe0] sm:$0xf] %v398
  %463 = vst [vmem:[%s3 + $0xe4] sm:$0xf] %v399
  %464 = vst [vmem:[%s3 + $0xe8] sm:$0xf] %v400
  %465 = vst [vmem:[%s3 + $0xec] sm:$0xf] %v401
  %466 = vst [vmem:[%s3 + $0xf0] sm:$0xf] %v402
  %467 = vst [vmem:[%s3 + $0xf4] sm:$0xf] %v403
  %468 = vst [vmem:[%s3 + $0xf8] sm:$0xf] %v404
  %469 = vst [vmem:[%s3 + $0xfc] sm:$0xf] %v405
  // Predicated region
  $region14: #{conv_block_x2.5} parent=0 // pred_check
    _
  $region15: #{conv_block_x2.5} parent=0 // pred_check_branch
    %471 = sbr.rel (0) target = $region17
  $region16: #{conv_block_x2.5} parent=0 // pred_region
    _
  $region17: #{conv_block_x2.5} parent=0 // pred_fallthru
    _
  // Predicated region
  $region18: #{conv_block_x2.5} parent=0 // pred_check
    _
  $region19: #{conv_block_x2.5} parent=0 // pred_check_branch
    %473 = sbr.rel (0) target = $region21
  $region20: #{conv_block_x2.5} parent=0 // pred_region
    _
  $region21: #{conv_block_x2.5} parent=0 // pred_fallthru
    _

// kernel: conv_block_x2.7
$region0: #{conv_block_x2.7}
  #allocation0 [shape = 'u32[]', space=smem, size = 0x4, offset = 0x4, fixed_abs, tag = 'smem constant byte address 0x4 - core index']
  #allocation1 [shape = 'u32[72,128]{1,0:T(1,128)}', space=vmem, size = 0x9000, scoped, tag = 'internal scratch']
  %s0 = inlined_call_operand.vmem [shape: bf16[512,128], index: 0, kind: input, shape index: {}]
  %s1 = inlined_call_operand.vmem [shape: f32[1,128], index: 1, kind: input, shape index: {}]
  %s2 = inlined_call_operand.vmem [shape: f32[1,128], index: 2, kind: input, shape index: {}]
  %s3 = inlined_call_operand.vmem [shape: bf16[512,128], index: 3, kind: input, shape index: {}]
  %s4 = inlined_call_operand.vmem [shape: f32[1,128], index: 4, kind: input, shape index: {}]
  %s5 = inlined_call_operand.vmem [shape: f32[1,128], index: 5, kind: input, shape index: {}]
  %s6 = inlined_call_operand.vmem [shape: f32[512,128], index: 6, kind: output, shape index: {}]
  %s7 = sld [smem:[#allocation0]]
  $region34: #{conv_block_x2.7} parent=0
    _
  %s9 = ssub.s32 1, %s7
  %s10 = scalar_select 0, %s9, %s7
  // Predicated region
  $region2: #{conv_block_x2.7} parent=0 // pred_check
    _
  $region3: #{conv_block_x2.7} parent=0 // pred_check_branch
    %12 = sbr.rel (0) target = $region5
  $region4: #{conv_block_x2.7} parent=0 // pred_region
    _
  $region5: #{conv_block_x2.7} parent=0 // pred_fallthru
    _
  // Predicated region
  $region6: #{conv_block_x2.7} parent=0 // pred_check
    _
  $region7: #{conv_block_x2.7} parent=0 // pred_check_branch
    %14 = sbr.rel (0) target = $region9
  $region8: #{conv_block_x2.7} parent=0 // pred_region
    _
  $region9: #{conv_block_x2.7} parent=0 // pred_fallthru
    _
  // Predicated region
  $region10: #{conv_block_x2.7} parent=0 // pred_check
    _
  $region11: #{conv_block_x2.7} parent=0 // pred_check_branch
    %16 = sbr.rel (0) target = $region13
  $region12: #{conv_block_x2.7} parent=0 // pred_region
    _
  $region13: #{conv_block_x2.7} parent=0 // pred_fallthru
    _
  // Predicated region
  $region14: #{conv_block_x2.7} parent=0 // pred_check
    _
  $region15: #{conv_block_x2.7} parent=0 // pred_check_branch
    %18 = sbr.rel (0) target = $region17
  $region16: #{conv_block_x2.7} parent=0 // pred_region
    _
  $region17: #{conv_block_x2.7} parent=0 // pred_fallthru
    _
  // Predicated region
  $region18: #{conv_block_x2.7} parent=0 // pred_check
    _
  $region19: #{conv_block_x2.7} parent=0 // pred_check_branch
    %20 = sbr.rel (0) target = $region21
  $region20: #{conv_block_x2.7} parent=0 // pred_region
    _
  $region21: #{conv_block_x2.7} parent=0 // pred_fallthru
    _
  // Predicated region
  $region22: #{conv_block_x2.7} parent=0 // pred_check
    _
  $region23: #{conv_block_x2.7} parent=0 // pred_check_branch
    %22 = sbr.rel (0) target = $region25
  $region24: #{conv_block_x2.7} parent=0 // pred_region
    _
  $region25: #{conv_block_x2.7} parent=0 // pred_fallthru
    _
  %v23 = vld [vmem:[%s0] sm:$0xf]
  %v24 = vld [vmem:[%s0 + $0x4] sm:$0xf]
  %v25 = vld [vmem:[%s0 + $0x8] sm:$0xf]
  %v26 = vld [vmem:[%s0 + $0xc] sm:$0xf]
  %v27 = vld [vmem:[%s0 + $0x10] sm:$0xf]
  %v28 = vld [vmem:[%s0 + $0x14] sm:$0xf]
  %v29 = vld [vmem:[%s0 + $0x18] sm:$0xf]
  %v30 = vld [vmem:[%s0 + $0x1c] sm:$0xf]
  %v31 = vld [vmem:[%s0 + $0x20] sm:$0xf]
  %v32 = vld [vmem:[%s0 + $0x24] sm:$0xf]
  %v33 = vld [vmem:[%s0 + $0x28] sm:$0xf]
  %v34 = vld [vmem:[%s0 + $0x2c] sm:$0xf]
  %v35 = vld [vmem:[%s0 + $0x30] sm:$0xf]
  %v36 = vld [vmem:[%s0 + $0x34] sm:$0xf]
  %v37 = vld [vmem:[%s0 + $0x38] sm:$0xf]
  %v38 = vld [vmem:[%s0 + $0x3c] sm:$0xf]
  %v39 = vld [vmem:[%s0 + $0x40] sm:$0xf]
  %v40 = vld [vmem:[%s0 + $0x44] sm:$0xf]
  %v41 = vld [vmem:[%s0 + $0x48] sm:$0xf]
  %v42 = vld [vmem:[%s0 + $0x4c] sm:$0xf]
  %v43 = vld [vmem:[%s0 + $0x50] sm:$0xf]
  %v44 = vld [vmem:[%s0 + $0x54] sm:$0xf]
  %v45 = vld [vmem:[%s0 + $0x58] sm:$0xf]
  %v46 = vld [vmem:[%s0 + $0x5c] sm:$0xf]
  %v47 = vld [vmem:[%s0 + $0x60] sm:$0xf]
  %v48 = vld [vmem:[%s0 + $0x64] sm:$0xf]
  %v49 = vld [vmem:[%s0 + $0x68] sm:$0xf]
  %v50 = vld [vmem:[%s0 + $0x6c] sm:$0xf]
  %v51 = vld [vmem:[%s0 + $0x70] sm:$0xf]
  %v52 = vld [vmem:[%s0 + $0x74] sm:$0xf]
  %v53 = vld [vmem:[%s0 + $0x78] sm:$0xf]
  %v54 = vld [vmem:[%s0 + $0x7c] sm:$0xf]
  %v55 = vld [vmem:[%s0 + $0x80] sm:$0xf]
  %v56 = vld [vmem:[%s0 + $0x84] sm:$0xf]
  %v57 = vld [vmem:[%s0 + $0x88] sm:$0xf]
  %v58 = vld [vmem:[%s0 + $0x8c] sm:$0xf]
  %v59 = vld [vmem:[%s0 + $0x90] sm:$0xf]
  %v60 = vld [vmem:[%s0 + $0x94] sm:$0xf]
  %v61 = vld [vmem:[%s0 + $0x98] sm:$0xf]
  %v62 = vld [vmem:[%s0 + $0x9c] sm:$0xf]
  %v63 = vld [vmem:[%s0 + $0xa0] sm:$0xf]
  %v64 = vld [vmem:[%s0 + $0xa4] sm:$0xf]
  %v65 = vld [vmem:[%s0 + $0xa8] sm:$0xf]
  %v66 = vld [vmem:[%s0 + $0xac] sm:$0xf]
  %v67 = vld [vmem:[%s0 + $0xb0] sm:$0xf]
  %v68 = vld [vmem:[%s0 + $0xb4] sm:$0xf]
  %v69 = vld [vmem:[%s0 + $0xb8] sm:$0xf]
  %v70 = vld [vmem:[%s0 + $0xbc] sm:$0xf]
  %v71 = vld [vmem:[%s0 + $0xc0] sm:$0xf]
  %v72 = vld [vmem:[%s0 + $0xc4] sm:$0xf]
  %v73 = vld [vmem:[%s0 + $0xc8] sm:$0xf]
  %v74 = vld [vmem:[%s0 + $0xcc] sm:$0xf]
  %v75 = vld [vmem:[%s0 + $0xd0] sm:$0xf]
  %v76 = vld [vmem:[%s0 + $0xd4] sm:$0xf]
  %v77 = vld [vmem:[%s0 + $0xd8] sm:$0xf]
  %v78 = vld [vmem:[%s0 + $0xdc] sm:$0xf]
  %v79 = vld [vmem:[%s0 + $0xe0] sm:$0xf]
  %v80 = vld [vmem:[%s0 + $0xe4] sm:$0xf]
  %v81 = vld [vmem:[%s0 + $0xe8] sm:$0xf]
  %v82 = vld [vmem:[%s0 + $0xec] sm:$0xf]
  %v83 = vld [vmem:[%s0 + $0xf0] sm:$0xf]
  %v84 = vld [vmem:[%s0 + $0xf4] sm:$0xf]
  %v85 = vld [vmem:[%s0 + $0xf8] sm:$0xf]
  %v86 = vld [vmem:[%s0 + $0xfc] sm:$0xf]
  %v87 = vunpack.c.l.bf16 %v23
  %v88 = vunpack.c.l.bf16 %v24
  %v89 = vunpack.c.l.bf16 %v25
  %v90 = vunpack.c.l.bf16 %v26
  %v91 = vunpack.c.l.bf16 %v27
  %v92 = vunpack.c.l.bf16 %v28
  %v93 = vunpack.c.l.bf16 %v29
  %v94 = vunpack.c.l.bf16 %v30
  %v95 = vunpack.c.l.bf16 %v31
  %v96 = vunpack.c.l.bf16 %v32
  %v97 = vunpack.c.l.bf16 %v33
  %v98 = vunpack.c.l.bf16 %v34
  %v99 = vunpack.c.l.bf16 %v35
  %v100 = vunpack.c.l.bf16 %v36
  %v101 = vunpack.c.l.bf16 %v37
  %v102 = vunpack.c.l.bf16 %v38
  %v103 = vunpack.c.l.bf16 %v39
  %v104 = vunpack.c.l.bf16 %v40
  %v105 = vunpack.c.l.bf16 %v41
  %v106 = vunpack.c.l.bf16 %v42
  %v107 = vunpack.c.l.bf16 %v43
  %v108 = vunpack.c.l.bf16 %v44
  %v109 = vunpack.c.l.bf16 %v45
  %v110 = vunpack.c.l.bf16 %v46
  %v111 = vunpack.c.l.bf16 %v47
  %v112 = vunpack.c.l.bf16 %v48
  %v113 = vunpack.c.l.bf16 %v49
  %v114 = vunpack.c.l.bf16 %v50
  %v115 = vunpack.c.l.bf16 %v51
  %v116 = vunpack.c.l.bf16 %v52
  %v117 = vunpack.c.l.bf16 %v53
  %v118 = vunpack.c.l.bf16 %v54
  %v119 = vunpack.c.l.bf16 %v55
  %v120 = vunpack.c.l.bf16 %v56
  %v121 = vunpack.c.l.bf16 %v57
  %v122 = vunpack.c.l.bf16 %v58
  %v123 = vunpack.c.l.bf16 %v59
  %v124 = vunpack.c.l.bf16 %v60
  %v125 = vunpack.c.l.bf16 %v61
  %v126 = vunpack.c.l.bf16 %v62
  %v127 = vunpack.c.l.bf16 %v63
  %v128 = vunpack.c.l.bf16 %v64
  %v129 = vunpack.c.l.bf16 %v65
  %v130 = vunpack.c.l.bf16 %v66
  %v131 = vunpack.c.l.bf16 %v67
  %v132 = vunpack.c.l.bf16 %v68
  %v133 = vunpack.c.l.bf16 %v69
  %v134 = vunpack.c.l.bf16 %v70
  %v135 = vunpack.c.l.bf16 %v71
  %v136 = vunpack.c.l.bf16 %v72
  %v137 = vunpack.c.l.bf16 %v73
  %v138 = vunpack.c.l.bf16 %v74
  %v139 = vunpack.c.l.bf16 %v75
  %v140 = vunpack.c.l.bf16 %v76
  %v141 = vunpack.c.l.bf16 %v77
  %v142 = vunpack.c.l.bf16 %v78
  %v143 = vunpack.c.l.bf16 %v79
  %v144 = vunpack.c.l.bf16 %v80
  %v145 = vunpack.c.l.bf16 %v81
  %v146 = vunpack.c.l.bf16 %v82
  %v147 = vunpack.c.l.bf16 %v83
  %v148 = vunpack.c.l.bf16 %v84
  %v149 = vunpack.c.l.bf16 %v85
  %v150 = vunpack.c.l.bf16 %v86
  %v151 = vld [vmem:[%s1] sm:$0x1]
  %v153 = vperm.slane %v151, 0
  %v155 = vmul.f32 %v87, %v153
  %v156 = vmul.f32 %v88, %v153
  %v157 = vmul.f32 %v89, %v153
  %v158 = vmul.f32 %v90, %v153
  %v159 = vmul.f32 %v91, %v153
  %v160 = vmul.f32 %v92, %v153
  %v161 = vmul.f32 %v93, %v153
  %v162 = vmul.f32 %v94, %v153
  %v163 = vmul.f32 %v95, %v153
  %v164 = vmul.f32 %v96, %v153
  %v165 = vmul.f32 %v97, %v153
  %v166 = vmul.f32 %v98, %v153
  %v167 = vmul.f32 %v99, %v153
  %v168 = vmul.f32 %v100, %v153
  %v169 = vmul.f32 %v101, %v153
  %v170 = vmul.f32 %v102, %v153
  %v171 = vmul.f32 %v103, %v153
  %v172 = vmul.f32 %v104, %v153
  %v173 = vmul.f32 %v105, %v153
  %v174 = vmul.f32 %v106, %v153
  %v175 = vmul.f32 %v107, %v153
  %v176 = vmul.f32 %v108, %v153
  %v177 = vmul.f32 %v109, %v153
  %v178 = vmul.f32 %v110, %v153
  %v179 = vmul.f32 %v111, %v153
  %v180 = vmul.f32 %v112, %v153
  %v181 = vmul.f32 %v113, %v153
  %v182 = vmul.f32 %v114, %v153
  %v183 = vmul.f32 %v115, %v153
  %v184 = vmul.f32 %v116, %v153
  %v185 = vmul.f32 %v117, %v153
  %v186 = vmul.f32 %v118, %v153
  %v187 = vmul.f32 %v119, %v153
  %v188 = vmul.f32 %v120, %v153
  %v189 = vmul.f32 %v121, %v153
  %v190 = vmul.f32 %v122, %v153
  %v191 = vmul.f32 %v123, %v153
  %v192 = vmul.f32 %v124, %v153
  %v193 = vmul.f32 %v125, %v153
  %v194 = vmul.f32 %v126, %v153
  %v195 = vmul.f32 %v127, %v153
  %v196 = vmul.f32 %v128, %v153
  %v197 = vmul.f32 %v129, %v153
  %v198 = vmul.f32 %v130, %v153
  %v199 = vmul.f32 %v131, %v153
  %v200 = vmul.f32 %v132, %v153
  %v201 = vmul.f32 %v133, %v153
  %v202 = vmul.f32 %v134, %v153
  %v203 = vmul.f32 %v135, %v153
  %v204 = vmul.f32 %v136, %v153
  %v205 = vmul.f32 %v137, %v153
  %v206 = vmul.f32 %v138, %v153
  %v207 = vmul.f32 %v139, %v153
  %v208 = vmul.f32 %v140, %v153
  %v209 = vmul.f32 %v141, %v153
  %v210 = vmul.f32 %v142, %v153
  %v211 = vmul.f32 %v143, %v153
  %v212 = vmul.f32 %v144, %v153
  %v213 = vmul.f32 %v145, %v153
  %v214 = vmul.f32 %v146, %v153
  %v215 = vmul.f32 %v147, %v153
  %v216 = vmul.f32 %v148, %v153
  %v217 = vmul.f32 %v149, %v153
  %v218 = vmul.f32 %v150, %v153
  %v219 = vld [vmem:[%s2] sm:$0x1]
  %v221 = vperm.slane %v219, 0
  %v223 = vadd.f32 %v155, %v221
  %v224 = vadd.f32 %v156, %v221
  %v225 = vadd.f32 %v157, %v221
  %v226 = vadd.f32 %v158, %v221
  %v227 = vadd.f32 %v159, %v221
  %v228 = vadd.f32 %v160, %v221
  %v229 = vadd.f32 %v161, %v221
  %v230 = vadd.f32 %v162, %v221
  %v231 = vadd.f32 %v163, %v221
  %v232 = vadd.f32 %v164, %v221
  %v233 = vadd.f32 %v165, %v221
  %v234 = vadd.f32 %v166, %v221
  %v235 = vadd.f32 %v167, %v221
  %v236 = vadd.f32 %v168, %v221
  %v237 = vadd.f32 %v169, %v221
  %v238 = vadd.f32 %v170, %v221
  %v239 = vadd.f32 %v171, %v221
  %v240 = vadd.f32 %v172, %v221
  %v241 = vadd.f32 %v173, %v221
  %v242 = vadd.f32 %v174, %v221
  %v243 = vadd.f32 %v175, %v221
  %v244 = vadd.f32 %v176, %v221
  %v245 = vadd.f32 %v177, %v221
  %v246 = vadd.f32 %v178, %v221
  %v247 = vadd.f32 %v179, %v221
  %v248 = vadd.f32 %v180, %v221
  %v249 = vadd.f32 %v181, %v221
  %v250 = vadd.f32 %v182, %v221
  %v251 = vadd.f32 %v183, %v221
  %v252 = vadd.f32 %v184, %v221
  %v253 = vadd.f32 %v185, %v221
  %v254 = vadd.f32 %v186, %v221
  %v255 = vadd.f32 %v187, %v221
  %v256 = vadd.f32 %v188, %v221
  %v257 = vadd.f32 %v189, %v221
  %v258 = vadd.f32 %v190, %v221
  %v259 = vadd.f32 %v191, %v221
  %v260 = vadd.f32 %v192, %v221
  %v261 = vadd.f32 %v193, %v221
  %v262 = vadd.f32 %v194, %v221
  %v263 = vadd.f32 %v195, %v221
  %v264 = vadd.f32 %v196, %v221
  %v265 = vadd.f32 %v197, %v221
  %v266 = vadd.f32 %v198, %v221
  %v267 = vadd.f32 %v199, %v221
  %v268 = vadd.f32 %v200, %v221
  %v269 = vadd.f32 %v201, %v221
  %v270 = vadd.f32 %v202, %v221
  %v271 = vadd.f32 %v203, %v221
  %v272 = vadd.f32 %v204, %v221
  %v273 = vadd.f32 %v205, %v221
  %v274 = vadd.f32 %v206, %v221
  %v275 = vadd.f32 %v207, %v221
  %v276 = vadd.f32 %v208, %v221
  %v277 = vadd.f32 %v209, %v221
  %v278 = vadd.f32 %v210, %v221
  %v279 = vadd.f32 %v211, %v221
  %v280 = vadd.f32 %v212, %v221
  %v281 = vadd.f32 %v213, %v221
  %v282 = vadd.f32 %v214, %v221
  %v283 = vadd.f32 %v215, %v221
  %v284 = vadd.f32 %v216, %v221
  %v285 = vadd.f32 %v217, %v221
  %v286 = vadd.f32 %v218, %v221
  %v287 = vld [vmem:[%s3] sm:$0xf]
  %v288 = vld [vmem:[%s3 + $0x4] sm:$0xf]
  %v289 = vld [vmem:[%s3 + $0x8] sm:$0xf]
  %v290 = vld [vmem:[%s3 + $0xc] sm:$0xf]
  %v291 = vld [vmem:[%s3 + $0x10] sm:$0xf]
  %v292 = vld [vmem:[%s3 + $0x14] sm:$0xf]
  %v293 = vld [vmem:[%s3 + $0x18] sm:$0xf]
  %v294 = vld [vmem:[%s3 + $0x1c] sm:$0xf]
  %v295 = vld [vmem:[%s3 + $0x20] sm:$0xf]
  %v296 = vld [vmem:[%s3 + $0x24] sm:$0xf]
  %v297 = vld [vmem:[%s3 + $0x28] sm:$0xf]
  %v298 = vld [vmem:[%s3 + $0x2c] sm:$0xf]
  %v299 = vld [vmem:[%s3 + $0x30] sm:$0xf]
  %v300 = vld [vmem:[%s3 + $0x34] sm:$0xf]
  %v301 = vld [vmem:[%s3 + $0x38] sm:$0xf]
  %v302 = vld [vmem:[%s3 + $0x3c] sm:$0xf]
  %v303 = vld [vmem:[%s3 + $0x40] sm:$0xf]
  %v304 = vld [vmem:[%s3 + $0x44] sm:$0xf]
  %v305 = vld [vmem:[%s3 + $0x48] sm:$0xf]
  %v306 = vld [vmem:[%s3 + $0x4c] sm:$0xf]
  %v307 = vld [vmem:[%s3 + $0x50] sm:$0xf]
  %v308 = vld [vmem:[%s3 + $0x54] sm:$0xf]
  %v309 = vld [vmem:[%s3 + $0x58] sm:$0xf]
  %v310 = vld [vmem:[%s3 + $0x5c] sm:$0xf]
  %v311 = vld [vmem:[%s3 + $0x60] sm:$0xf]
  %v312 = vld [vmem:[%s3 + $0x64] sm:$0xf]
  %v313 = vld [vmem:[%s3 + $0x68] sm:$0xf]
  %v314 = vld [vmem:[%s3 + $0x6c] sm:$0xf]
  %v315 = vld [vmem:[%s3 + $0x70] sm:$0xf]
  %v316 = vld [vmem:[%s3 + $0x74] sm:$0xf]
  %v317 = vld [vmem:[%s3 + $0x78] sm:$0xf]
  %v318 = vld [vmem:[%s3 + $0x7c] sm:$0xf]
  %v319 = vld [vmem:[%s3 + $0x80] sm:$0xf]
  %v320 = vld [vmem:[%s3 + $0x84] sm:$0xf]
  %v321 = vld [vmem:[%s3 + $0x88] sm:$0xf]
  %v322 = vld [vmem:[%s3 + $0x8c] sm:$0xf]
  %v323 = vld [vmem:[%s3 + $0x90] sm:$0xf]
  %v324 = vld [vmem:[%s3 + $0x94] sm:$0xf]
  %v325 = vld [vmem:[%s3 + $0x98] sm:$0xf]
  %v326 = vld [vmem:[%s3 + $0x9c] sm:$0xf]
  %v327 = vld [vmem:[%s3 + $0xa0] sm:$0xf]
  %v328 = vld [vmem:[%s3 + $0xa4] sm:$0xf]
  %v329 = vld [vmem:[%s3 + $0xa8] sm:$0xf]
  %v330 = vld [vmem:[%s3 + $0xac] sm:$0xf]
  %v331 = vld [vmem:[%s3 + $0xb0] sm:$0xf]
  %v332 = vld [vmem:[%s3 + $0xb4] sm:$0xf]
  %v333 = vld [vmem:[%s3 + $0xb8] sm:$0xf]
  %v334 = vld [vmem:[%s3 + $0xbc] sm:$0xf]
  %v335 = vld [vmem:[%s3 + $0xc0] sm:$0xf]
  %v336 = vld [vmem:[%s3 + $0xc4] sm:$0xf]
  %v337 = vld [vmem:[%s3 + $0xc8] sm:$0xf]
  %v338 = vld [vmem:[%s3 + $0xcc] sm:$0xf]
  %v339 = vld [vmem:[%s3 + $0xd0] sm:$0xf]
  %v340 = vld [vmem:[%s3 + $0xd4] sm:$0xf]
  %v341 = vld [vmem:[%s3 + $0xd8] sm:$0xf]
  %v342 = vld [vmem:[%s3 + $0xdc] sm:$0xf]
  %v343 = vld [vmem:[%s3 + $0xe0] sm:$0xf]
  %v344 = vld [vmem:[%s3 + $0xe4] sm:$0xf]
  %v345 = vld [vmem:[%s3 + $0xe8] sm:$0xf]
  %v346 = vld [vmem:[%s3 + $0xec] sm:$0xf]
  %v347 = vld [vmem:[%s3 + $0xf0] sm:$0xf]
  %v348 = vld [vmem:[%s3 + $0xf4] sm:$0xf]
  %v349 = vld [vmem:[%s3 + $0xf8] sm:$0xf]
  %v350 = vld [vmem:[%s3 + $0xfc] sm:$0xf]
  %v351 = vunpack.c.l.bf16 %v287
  %v352 = vunpack.c.l.bf16 %v288
  %v353 = vunpack.c.l.bf16 %v289
  %v354 = vunpack.c.l.bf16 %v290
  %v355 = vunpack.c.l.bf16 %v291
  %v356 = vunpack.c.l.bf16 %v292
  %v357 = vunpack.c.l.bf16 %v293
  %v358 = vunpack.c.l.bf16 %v294
  %v359 = vunpack.c.l.bf16 %v295
  %v360 = vunpack.c.l.bf16 %v296
  %v361 = vunpack.c.l.bf16 %v297
  %v362 = vunpack.c.l.bf16 %v298
  %v363 = vunpack.c.l.bf16 %v299
  %v364 = vunpack.c.l.bf16 %v300
  %v365 = vunpack.c.l.bf16 %v301
  %v366 = vunpack.c.l.bf16 %v302
  %v367 = vunpack.c.l.bf16 %v303
  %v368 = vunpack.c.l.bf16 %v304
  %v369 = vunpack.c.l.bf16 %v305
  %v370 = vunpack.c.l.bf16 %v306
  %v371 = vunpack.c.l.bf16 %v307
  %v372 = vunpack.c.l.bf16 %v308
  %v373 = vunpack.c.l.bf16 %v309
  %v374 = vunpack.c.l.bf16 %v310
  %v375 = vunpack.c.l.bf16 %v311
  %v376 = vunpack.c.l.bf16 %v312
  %v377 = vunpack.c.l.bf16 %v313
  %v378 = vunpack.c.l.bf16 %v314
  %v379 = vunpack.c.l.bf16 %v315
  %v380 = vunpack.c.l.bf16 %v316
  %v381 = vunpack.c.l.bf16 %v317
  %v382 = vunpack.c.l.bf16 %v318
  %v383 = vunpack.c.l.bf16 %v319
  %v384 = vunpack.c.l.bf16 %v320
  %v385 = vunpack.c.l.bf16 %v321
  %v386 = vunpack.c.l.bf16 %v322
  %v387 = vunpack.c.l.bf16 %v323
  %v388 = vunpack.c.l.bf16 %v324
  %v389 = vunpack.c.l.bf16 %v325
  %v390 = vunpack.c.l.bf16 %v326
  %v391 = vunpack.c.l.bf16 %v327
  %v392 = vunpack.c.l.bf16 %v328
  %v393 = vunpack.c.l.bf16 %v329
  %v394 = vunpack.c.l.bf16 %v330
  %v395 = vunpack.c.l.bf16 %v331
  %v396 = vunpack.c.l.bf16 %v332
  %v397 = vunpack.c.l.bf16 %v333
  %v398 = vunpack.c.l.bf16 %v334
  %v399 = vunpack.c.l.bf16 %v335
  %v400 = vunpack.c.l.bf16 %v336
  %v401 = vunpack.c.l.bf16 %v337
  %v402 = vunpack.c.l.bf16 %v338
  %v403 = vunpack.c.l.bf16 %v339
  %v404 = vunpack.c.l.bf16 %v340
  %v405 = vunpack.c.l.bf16 %v341
  %v406 = vunpack.c.l.bf16 %v342
  %v407 = vunpack.c.l.bf16 %v343
  %v408 = vunpack.c.l.bf16 %v344
  %v409 = vunpack.c.l.bf16 %v345
  %v410 = vunpack.c.l.bf16 %v346
  %v411 = vunpack.c.l.bf16 %v347
  %v412 = vunpack.c.l.bf16 %v348
  %v413 = vunpack.c.l.bf16 %v349
  %v414 = vunpack.c.l.bf16 %v350
  %v415 = vld [vmem:[%s4] sm:$0x1]
  %v417 = vperm.slane %v415, 0
  %v419 = vmul.f32 %v351, %v417
  %v420 = vmul.f32 %v352, %v417
  %v421 = vmul.f32 %v353, %v417
  %v422 = vmul.f32 %v354, %v417
  %v423 = vmul.f32 %v355, %v417
  %v424 = vmul.f32 %v356, %v417
  %v425 = vmul.f32 %v357, %v417
  %v426 = vmul.f32 %v358, %v417
  %v427 = vmul.f32 %v359, %v417
  %v428 = vmul.f32 %v360, %v417
  %v429 = vmul.f32 %v361, %v417
  %v430 = vmul.f32 %v362, %v417
  %v431 = vmul.f32 %v363, %v417
  %v432 = vmul.f32 %v364, %v417
  %v433 = vmul.f32 %v365, %v417
  %v434 = vmul.f32 %v366, %v417
  %v435 = vmul.f32 %v367, %v417
  %v436 = vmul.f32 %v368, %v417
  %v437 = vmul.f32 %v369, %v417
  %v438 = vmul.f32 %v370, %v417
  %v439 = vmul.f32 %v371, %v417
  %v440 = vmul.f32 %v372, %v417
  %v441 = vmul.f32 %v373, %v417
  %v442 = vmul.f32 %v374, %v417
  %v443 = vmul.f32 %v375, %v417
  %v444 = vmul.f32 %v376, %v417
  %v445 = vmul.f32 %v377, %v417
  %v446 = vmul.f32 %v378, %v417
  %v447 = vmul.f32 %v379, %v417
  %v448 = vmul.f32 %v380, %v417
  %v449 = vmul.f32 %v381, %v417
  %v450 = vmul.f32 %v382, %v417
  %v451 = vmul.f32 %v383, %v417
  %v452 = vmul.f32 %v384, %v417
  %v453 = vmul.f32 %v385, %v417
  %v454 = vmul.f32 %v386, %v417
  %v455 = vmul.f32 %v387, %v417
  %v456 = vmul.f32 %v388, %v417
  %v457 = vmul.f32 %v389, %v417
  %v458 = vmul.f32 %v390, %v417
  %v459 = vmul.f32 %v391, %v417
  %v460 = vmul.f32 %v392, %v417
  %v461 = vmul.f32 %v393, %v417
  %v462 = vmul.f32 %v394, %v417
  %v463 = vmul.f32 %v395, %v417
  %v464 = vmul.f32 %v396, %v417
  %v465 = vmul.f32 %v397, %v417
  %v466 = vmul.f32 %v398, %v417
  %v467 = vmul.f32 %v399, %v417
  %v468 = vmul.f32 %v400, %v417
  %v469 = vmul.f32 %v401, %v417
  %v470 = vmul.f32 %v402, %v417
  %v471 = vmul.f32 %v403, %v417
  %v472 = vmul.f32 %v404, %v417
  %v473 = vmul.f32 %v405, %v417
  %v474 = vmul.f32 %v406, %v417
  %v475 = vmul.f32 %v407, %v417
  %v476 = vmul.f32 %v408, %v417
  %v477 = vmul.f32 %v409, %v417
  %v478 = vmul.f32 %v410, %v417
  %v479 = vmul.f32 %v411, %v417
  %v480 = vmul.f32 %v412, %v417
  %v481 = vmul.f32 %v413, %v417
  %v482 = vmul.f32 %v414, %v417
  %v483 = vld [vmem:[%s5] sm:$0x1]
  %v485 = vperm.slane %v483, 0
  %v487 = vadd.f32 %v419, %v485
  %v488 = vadd.f32 %v420, %v485
  %v489 = vadd.f32 %v421, %v485
  %v490 = vadd.f32 %v422, %v485
  %v491 = vadd.f32 %v423, %v485
  %v492 = vadd.f32 %v424, %v485
  %v493 = vadd.f32 %v425, %v485
  %v494 = vadd.f32 %v426, %v485
  %v495 = vadd.f32 %v427, %v485
  %v496 = vadd.f32 %v428, %v485
  %v497 = vadd.f32 %v429, %v485
  %v498 = vadd.f32 %v430, %v485
  %v499 = vadd.f32 %v431, %v485
  %v500 = vadd.f32 %v432, %v485
  %v501 = vadd.f32 %v433, %v485
  %v502 = vadd.f32 %v434, %v485
  %v503 = vadd.f32 %v435, %v485
  %v504 = vadd.f32 %v436, %v485
  %v505 = vadd.f32 %v437, %v485
  %v506 = vadd.f32 %v438, %v485
  %v507 = vadd.f32 %v439, %v485
  %v508 = vadd.f32 %v440, %v485
  %v509 = vadd.f32 %v441, %v485
  %v510 = vadd.f32 %v442, %v485
  %v511 = vadd.f32 %v443, %v485
  %v512 = vadd.f32 %v444, %v485
  %v513 = vadd.f32 %v445, %v485
  %v514 = vadd.f32 %v446, %v485
  %v515 = vadd.f32 %v447, %v485
  %v516 = vadd.f32 %v448, %v485
  %v517 = vadd.f32 %v449, %v485
  %v518 = vadd.f32 %v450, %v485
  %v519 = vadd.f32 %v451, %v485
  %v520 = vadd.f32 %v452, %v485
  %v521 = vadd.f32 %v453, %v485
  %v522 = vadd.f32 %v454, %v485
  %v523 = vadd.f32 %v455, %v485
  %v524 = vadd.f32 %v456, %v485
  %v525 = vadd.f32 %v457, %v485
  %v526 = vadd.f32 %v458, %v485
  %v527 = vadd.f32 %v459, %v485
  %v528 = vadd.f32 %v460, %v485
  %v529 = vadd.f32 %v461, %v485
  %v530 = vadd.f32 %v462, %v485
  %v531 = vadd.f32 %v463, %v485
  %v532 = vadd.f32 %v464, %v485
  %v533 = vadd.f32 %v465, %v485
  %v534 = vadd.f32 %v466, %v485
  %v535 = vadd.f32 %v467, %v485
  %v536 = vadd.f32 %v468, %v485
  %v537 = vadd.f32 %v469, %v485
  %v538 = vadd.f32 %v470, %v485
  %v539 = vadd.f32 %v471, %v485
  %v540 = vadd.f32 %v472, %v485
  %v541 = vadd.f32 %v473, %v485
  %v542 = vadd.f32 %v474, %v485
  %v543 = vadd.f32 %v475, %v485
  %v544 = vadd.f32 %v476, %v485
  %v545 = vadd.f32 %v477, %v485
  %v546 = vadd.f32 %v478, %v485
  %v547 = vadd.f32 %v479, %v485
  %v548 = vadd.f32 %v480, %v485
  %v549 = vadd.f32 %v481, %v485
  %v550 = vadd.f32 %v482, %v485
  %v551 = vadd.f32 %v223, %v487
  %v552 = vadd.f32 %v224, %v488
  %v553 = vadd.f32 %v225, %v489
  %v554 = vadd.f32 %v226, %v490
  %v555 = vadd.f32 %v227, %v491
  %v556 = vadd.f32 %v228, %v492
  %v557 = vadd.f32 %v229, %v493
  %v558 = vadd.f32 %v230, %v494
  %v559 = vadd.f32 %v231, %v495
  %v560 = vadd.f32 %v232, %v496
  %v561 = vadd.f32 %v233, %v497
  %v562 = vadd.f32 %v234, %v498
  %v563 = vadd.f32 %v235, %v499
  %v564 = vadd.f32 %v236, %v500
  %v565 = vadd.f32 %v237, %v501
  %v566 = vadd.f32 %v238, %v502
  %v567 = vadd.f32 %v239, %v503
  %v568 = vadd.f32 %v240, %v504
  %v569 = vadd.f32 %v241, %v505
  %v570 = vadd.f32 %v242, %v506
  %v571 = vadd.f32 %v243, %v507
  %v572 = vadd.f32 %v244, %v508
  %v573 = vadd.f32 %v245, %v509
  %v574 = vadd.f32 %v246, %v510
  %v575 = vadd.f32 %v247, %v511
  %v576 = vadd.f32 %v248, %v512
  %v577 = vadd.f32 %v249, %v513
  %v578 = vadd.f32 %v250, %v514
  %v579 = vadd.f32 %v251, %v515
  %v580 = vadd.f32 %v252, %v516
  %v581 = vadd.f32 %v253, %v517
  %v582 = vadd.f32 %v254, %v518
  %v583 = vadd.f32 %v255, %v519
  %v584 = vadd.f32 %v256, %v520
  %v585 = vadd.f32 %v257, %v521
  %v586 = vadd.f32 %v258, %v522
  %v587 = vadd.f32 %v259, %v523
  %v588 = vadd.f32 %v260, %v524
  %v589 = vadd.f32 %v261, %v525
  %v590 = vadd.f32 %v262, %v526
  %v591 = vadd.f32 %v263, %v527
  %v592 = vadd.f32 %v264, %v528
  %v593 = vadd.f32 %v265, %v529
  %v594 = vadd.f32 %v266, %v530
  %v595 = vadd.f32 %v267, %v531
  %v596 = vadd.f32 %v268, %v532
  %v597 = vadd.f32 %v269, %v533
  %v598 = vadd.f32 %v270, %v534
  %v599 = vadd.f32 %v271, %v535
  %v600 = vadd.f32 %v272, %v536
  %v601 = vadd.f32 %v273, %v537
  %v602 = vadd.f32 %v274, %v538
  %v603 = vadd.f32 %v275, %v539
  %v604 = vadd.f32 %v276, %v540
  %v605 = vadd.f32 %v277, %v541
  %v606 = vadd.f32 %v278, %v542
  %v607 = vadd.f32 %v279, %v543
  %v608 = vadd.f32 %v280, %v544
  %v609 = vadd.f32 %v281, %v545
  %v610 = vadd.f32 %v282, %v546
  %v611 = vadd.f32 %v283, %v547
  %v612 = vadd.f32 %v284, %v548
  %v613 = vadd.f32 %v285, %v549
  %v614 = vadd.f32 %v286, %v550
  %v615 = vmax.f32 %v551, 0.0
  %v616 = vmax.f32 %v552, 0.0
  %v617 = vmax.f32 %v553, 0.0
  %v618 = vmax.f32 %v554, 0.0
  %v619 = vmax.f32 %v555, 0.0
  %v620 = vmax.f32 %v556, 0.0
  %v621 = vmax.f32 %v557, 0.0
  %v622 = vmax.f32 %v558, 0.0
  %v623 = vmax.f32 %v559, 0.0
  %v624 = vmax.f32 %v560, 0.0
  %v625 = vmax.f32 %v561, 0.0
  %v626 = vmax.f32 %v562, 0.0
  %v627 = vmax.f32 %v563, 0.0
  %v628 = vmax.f32 %v564, 0.0
  %v629 = vmax.f32 %v565, 0.0
  %v630 = vmax.f32 %v566, 0.0
  %v631 = vmax.f32 %v567, 0.0
  %v632 = vmax.f32 %v568, 0.0
  %v633 = vmax.f32 %v569, 0.0
  %v634 = vmax.f32 %v570, 0.0
  %v635 = vmax.f32 %v571, 0.0
  %v636 = vmax.f32 %v572, 0.0
  %v637 = vmax.f32 %v573, 0.0
  %v638 = vmax.f32 %v574, 0.0
  %v639 = vmax.f32 %v575, 0.0
  %v640 = vmax.f32 %v576, 0.0
  %v641 = vmax.f32 %v577, 0.0
  %v642 = vmax.f32 %v578, 0.0
  %v643 = vmax.f32 %v579, 0.0
  %v644 = vmax.f32 %v580, 0.0
  %v645 = vmax.f32 %v581, 0.0
  %v646 = vmax.f32 %v582, 0.0
  %v647 = vmax.f32 %v583, 0.0
  %v648 = vmax.f32 %v584, 0.0
  %v649 = vmax.f32 %v585, 0.0
  %v650 = vmax.f32 %v586, 0.0
  %v651 = vmax.f32 %v587, 0.0
  %v652 = vmax.f32 %v588, 0.0
  %v653 = vmax.f32 %v589, 0.0
  %v654 = vmax.f32 %v590, 0.0
  %v655 = vmax.f32 %v591, 0.0
  %v656 = vmax.f32 %v592, 0.0
  %v657 = vmax.f32 %v593, 0.0
  %v658 = vmax.f32 %v594, 0.0
  %v659 = vmax.f32 %v595, 0.0
  %v660 = vmax.f32 %v596, 0.0
  %v661 = vmax.f32 %v597, 0.0
  %v662 = vmax.f32 %v598, 0.0
  %v663 = vmax.f32 %v599, 0.0
  %v664 = vmax.f32 %v600, 0.0
  %v665 = vmax.f32 %v601, 0.0
  %v666 = vmax.f32 %v602, 0.0
  %v667 = vmax.f32 %v603, 0.0
  %v668 = vmax.f32 %v604, 0.0
  %v669 = vmax.f32 %v605, 0.0
  %v670 = vmax.f32 %v606, 0.0
  %v671 = vmax.f32 %v607, 0.0
  %v672 = vmax.f32 %v608, 0.0
  %v673 = vmax.f32 %v609, 0.0
  %v674 = vmax.f32 %v610, 0.0
  %v675 = vmax.f32 %v611, 0.0
  %v676 = vmax.f32 %v612, 0.0
  %v677 = vmax.f32 %v613, 0.0
  %v678 = vmax.f32 %v614, 0.0
  %679 = vst [vmem:[%s6] sm:$0xff] %v615
  %680 = vst [vmem:[%s6 + $0x8] sm:$0xff] %v616
  %681 = vst [vmem:[%s6 + $0x10] sm:$0xff] %v617
  %682 = vst [vmem:[%s6 + $0x18] sm:$0xff] %v618
  %683 = vst [vmem:[%s6 + $0x20] sm:$0xff] %v619
  %684 = vst [vmem:[%s6 + $0x28] sm:$0xff] %v620
  %685 = vst [vmem:[%s6 + $0x30] sm:$0xff] %v621
  %686 = vst [vmem:[%s6 + $0x38] sm:$0xff] %v622
  %687 = vst [vmem:[%s6 + $0x40] sm:$0xff] %v623
  %688 = vst [vmem:[%s6 + $0x48] sm:$0xff] %v624
  %689 = vst [vmem:[%s6 + $0x50] sm:$0xff] %v625
  %690 = vst [vmem:[%s6 + $0x58] sm:$0xff] %v626
  %691 = vst [vmem:[%s6 + $0x60] sm:$0xff] %v627
  %692 = vst [vmem:[%s6 + $0x68] sm:$0xff] %v628
  %693 = vst [vmem:[%s6 + $0x70] sm:$0xff] %v629
  %694 = vst [vmem:[%s6 + $0x78] sm:$0xff] %v630
  %695 = vst [vmem:[%s6 + $0x80] sm:$0xff] %v631
  %696 = vst [vmem:[%s6 + $0x88] sm:$0xff] %v632
  %697 = vst [vmem:[%s6 + $0x90] sm:$0xff] %v633
  %698 = vst [vmem:[%s6 + $0x98] sm:$0xff] %v634
  %699 = vst [vmem:[%s6 + $0xa0] sm:$0xff] %v635
  %700 = vst [vmem:[%s6 + $0xa8] sm:$0xff] %v636
  %701 = vst [vmem:[%s6 + $0xb0] sm:$0xff] %v637
  %702 = vst [vmem:[%s6 + $0xb8] sm:$0xff] %v638
  %703 = vst [vmem:[%s6 + $0xc0] sm:$0xff] %v639
  %704 = vst [vmem:[%s6 + $0xc8] sm:$0xff] %v640
  %705 = vst [vmem:[%s6 + $0xd0] sm:$0xff] %v641
  %706 = vst [vmem:[%s6 + $0xd8] sm:$0xff] %v642
  %707 = vst [vmem:[%s6 + $0xe0] sm:$0xff] %v643
  %708 = vst [vmem:[%s6 + $0xe8] sm:$0xff] %v644
  %709 = vst [vmem:[%s6 + $0xf0] sm:$0xff] %v645
  %710 = vst [vmem:[%s6 + $0xf8] sm:$0xff] %v646
  %711 = vst [vmem:[%s6 + $0x100] sm:$0xff] %v647
  %712 = vst [vmem:[%s6 + $0x108] sm:$0xff] %v648
  %713 = vst [vmem:[%s6 + $0x110] sm:$0xff] %v649
  %714 = vst [vmem:[%s6 + $0x118] sm:$0xff] %v650
  %715 = vst [vmem:[%s6 + $0x120] sm:$0xff] %v651
  %716 = vst [vmem:[%s6 + $0x128] sm:$0xff] %v652
  %717 = vst [vmem:[%s6 + $0x130] sm:$0xff] %v653
  %718 = vst [vmem:[%s6 + $0x138] sm:$0xff] %v654
  %719 = vst [vmem:[%s6 + $0x140] sm:$0xff] %v655
  %720 = vst [vmem:[%s6 + $0x148] sm:$0xff] %v656
  %721 = vst [vmem:[%s6 + $0x150] sm:$0xff] %v657
  %722 = vst [vmem:[%s6 + $0x158] sm:$0xff] %v658
  %723 = vst [vmem:[%s6 + $0x160] sm:$0xff] %v659
  %724 = vst [vmem:[%s6 + $0x168] sm:$0xff] %v660
  %725 = vst [vmem:[%s6 + $0x170] sm:$0xff] %v661
  %726 = vst [vmem:[%s6 + $0x178] sm:$0xff] %v662
  %727 = vst [vmem:[%s6 + $0x180] sm:$0xff] %v663
  %728 = vst [vmem:[%s6 + $0x188] sm:$0xff] %v664
  %729 = vst [vmem:[%s6 + $0x190] sm:$0xff] %v665
  %730 = vst [vmem:[%s6 + $0x198] sm:$0xff] %v666
  %731 = vst [vmem:[%s6 + $0x1a0] sm:$0xff] %v667
  %732 = vst [vmem:[%s6 + $0x1a8] sm:$0xff] %v668
  %733 = vst [vmem:[%s6 + $0x1b0] sm:$0xff] %v669
  %734 = vst [vmem:[%s6 + $0x1b8] sm:$0xff] %v670
  %735 = vst [vmem:[%s6 + $0x1c0] sm:$0xff] %v671
  %736 = vst [vmem:[%s6 + $0x1c8] sm:$0xff] %v672
  %737 = vst [vmem:[%s6 + $0x1d0] sm:$0xff] %v673
  %738 = vst [vmem:[%s6 + $0x1d8] sm:$0xff] %v674
  %739 = vst [vmem:[%s6 + $0x1e0] sm:$0xff] %v675
  %740 = vst [vmem:[%s6 + $0x1e8] sm:$0xff] %v676
  %741 = vst [vmem:[%s6 + $0x1f0] sm:$0xff] %v677
  %742 = vst [vmem:[%s6 + $0x1f8] sm:$0xff] %v678
  // Predicated region
  $region26: #{conv_block_x2.7} parent=0 // pred_check
    _
  $region27: #{conv_block_x2.7} parent=0 // pred_check_branch
    %744 = sbr.rel (0) target = $region29
  $region28: #{conv_block_x2.7} parent=0 // pred_region
    _
  $region29: #{conv_block_x2.7} parent=0 // pred_fallthru
    _
  // Predicated region
  $region30: #{conv_block_x2.7} parent=0 // pred_check
    _
  $region31: #{conv_block_x2.7} parent=0 // pred_check_branch
    %746 = sbr.rel (0) target = $region33
  $region32: #{conv_block_x2.7} parent=0 // pred_region
    _
  $region33: #{conv_block_x2.7} parent=0 // pred_fallthru
    _

// kernel: conv_block_x2.6
$region0: #{conv_block_x2.6}
  #allocation0 [shape = 'u32[]', space=smem, size = 0x4, offset = 0x4, fixed_abs, tag = 'smem constant byte address 0x4 - core index']
  #allocation1 [shape = 'u32[72,128]{1,0:T(1,128)}', space=vmem, size = 0x9000, scoped, tag = 'internal scratch']
  #allocation2 [shape = 'f32[8,128]{1,0:T(8,128)}', space=vmem, size = 0x1000, scoped, tag = 'scratch operand']
  #allocation3 [shape = 'f32[8,128]{1,0:T(8,128)}', space=vmem, size = 0x1000, scoped, tag = 'scratch operand']
  %s0 = inlined_call_operand.vmem [shape: bf16[512,80], index: 0, kind: input, shape index: {}]
  %s1 = inlined_call_operand.vmem [shape: bf16[80,128], index: 1, kind: input, shape index: {}]
  %s2 = inlined_call_operand.vmem [shape: bf16[512,16], index: 2, kind: input, shape index: {}]
  %s3 = inlined_call_operand.vmem [shape: bf16[16,128], index: 3, kind: input, shape index: {}]
  %s4 = inlined_call_operand.vmem [shape: bf16[512,128], index: 4, kind: output, shape index: {0}]
  %s5 = inlined_call_operand.vmem [shape: bf16[512,128], index: 5, kind: output, shape index: {1}]
  %s6 = inlined_call_operand.vmem [shape: f32[16,128], index: 6, kind: output, shape index: {2}]
  %s7 = inlined_call_operand.vmem [shape: f32[16,128], index: 7, kind: output, shape index: {3}]
  %8 = xla_tuple %s4, %s5, %s6, %s7
  %s9 = sld [smem:[#allocation0]]
  $region81: #{conv_block_x2.6} parent=0
    _
  %s11 = ssub.s32 1, %s9
  %s12 = scalar_select 0, %s11, %s9
  loop: start=0, step=1, limit=4
  $region2: #{conv_block_x2.6} parent=0 // loop_pre_header
    _
  $region3: #{conv_block_x2.6} parent=0 // loop_header
    %s14 = sphi 0, %s18
    %p15 = scmp.ge.s32.totalorder %s14, 4
    %s21 = sphi 0, %s33
    %s22 = sphi 0, %s29
    %s23 = sphi 0, %s21
    %s24 = sphi 0, %s22
    %s25 = sphi 0, %s23
    %s26 = sphi 0, %s24
    %s38 = sphi 0, %s40
    %s41 = sphi 0, %s38
    %s42 = sphi 0, %s41
    %s58 = sphi 0, %s42
    %s62 = sphi 0, %s62
    %s64 = sphi 0, %s62
    %s65 = sphi 0, %s64
    %s79 = sphi 0, %s65
    %s87 = sphi 0, %s89
    %s90 = sphi 0, %s87
    %s91 = sphi 0, %s90
    %s107 = sphi 0, %s91
    %s111 = sphi 0, %s111
    %s113 = sphi 0, %s111
    %s114 = sphi 0, %s113
    %s128 = sphi 0, %s114
    %s136 = sphi 0, %s138
    %s139 = sphi 0, %s136
    %s140 = sphi 0, %s139
    %s156 = sphi 0, %s140
    %s164 = sphi 0, %s166
    %s167 = sphi 0, %s164
    %s168 = sphi 0, %s167
    %s184 = sphi 0, %s168
    %s190 = sphi 0, %s192
    %s193 = sphi 0, %s190
    %s194 = sphi 0, %s193
    %s210 = sphi 0, %s194
    %s216 = sphi 0, %s218
    %s219 = sphi 0, %s216
    %s220 = sphi 0, %s219
    %s236 = sphi 0, %s220
  $region4: #{conv_block_x2.6} parent=0 // loop_header_branch
    %17 = sbr.rel (%p15) target = $region8
  $region5: #{conv_block_x2.6} parent=0 // loop_body
    %s19 = ssub.s32 %s14, 1
    %s20 = ssub.s32 %s14, 2
    %s27 = sadd.s32 1, %s22
    %p28 = scmp.ge.s32.totalorder %s27, 1
    %s29 = scalar_select %p28, 0, %s27
    %s30 = sadd.s32 1, %s21
    %s31 = scalar_select %p28, %s30, %s21
    %p32 = scmp.ge.s32.totalorder %s31, 2
    %s33 = scalar_select %p32, 0, %s31
    %s34 = sadd.s32 %s21, %s22
    %s35 = sadd.s32 %s33, %s29
    %s36 = ssub.s32 %s34, %s35
    %p37 = scmp.eq.s32.totalorder %s36, 0
    %s39 = sadd.s32 %s38, 1
    %s40 = scalar_select %p37, %s38, %s39
    %p43 = pneg %p37
    %p44 = scmp.eq.s32.totalorder %s14, 1
    %p45 = por %p43, %p44
    %p46 = scmp.ne.s32.totalorder %s38, %s41
    %p47 = scmp.eq.s32.totalorder %s14, 0
    %p48 = por %p46, %p47
    %p49 = scmp.ne.s32.totalorder %s38, %s41
    %p50 = scmp.eq.s32.totalorder %s19, 1
    %p51 = por %p49, %p50
    %p52 = scmp.ne.s32.totalorder %s41, %s42
    %p53 = scmp.eq.s32.totalorder %s19, 0
    %p54 = por %p52, %p53
    %p55 = scmp.ne.s32.totalorder %s41, %s42
    %p56 = scmp.eq.s32.totalorder %s20, 1
    %p57 = por %p55, %p56
    %p59 = scmp.ne.s32.totalorder %s42, %s58
    %p60 = scmp.eq.s32.totalorder %s20, 0
    %p61 = por %p59, %p60
    %s63 = sadd.s32 %s62, 1
    %p66 = scmp.eq.s32.totalorder %s14, 1
    %p67 = scmp.ne.s32.totalorder %s62, %s64
    %p68 = scmp.eq.s32.totalorder %s14, 0
    %p69 = por %p67, %p68
    %p70 = scmp.ne.s32.totalorder %s62, %s64
    %p71 = scmp.eq.s32.totalorder %s19, 1
    %p72 = por %p70, %p71
    %p73 = scmp.ne.s32.totalorder %s64, %s65
    %p74 = scmp.eq.s32.totalorder %s19, 0
    %p75 = por %p73, %p74
    %p76 = scmp.ne.s32.totalorder %s64, %s65
    %p77 = scmp.eq.s32.totalorder %s20, 1
    %p78 = por %p76, %p77
    %p80 = scmp.ne.s32.totalorder %s65, %s79
    %p81 = scmp.eq.s32.totalorder %s20, 0
    %p82 = por %p80, %p81
    %s83 = sadd.s32 %s21, %s22
    %s84 = sadd.s32 %s33, %s29
    %s85 = ssub.s32 %s83, %s84
    %p86 = scmp.eq.s32.totalorder %s85, 0
    %s88 = sadd.s32 %s87, 1
    %s89 = scalar_select %p86, %s87, %s88
    %p92 = pneg %p86
    %p93 = scmp.eq.s32.totalorder %s14, 1
    %p94 = por %p92, %p93
    %p95 = scmp.ne.s32.totalorder %s87, %s90
    %p96 = scmp.eq.s32.totalorder %s14, 0
    %p97 = por %p95, %p96
    %p98 = scmp.ne.s32.totalorder %s87, %s90
    %p99 = scmp.eq.s32.totalorder %s19, 1
    %p100 = por %p98, %p99
    %p101 = scmp.ne.s32.totalorder %s90, %s91
    %p102 = scmp.eq.s32.totalorder %s19, 0
    %p103 = por %p101, %p102
    %p104 = scmp.ne.s32.totalorder %s90, %s91
    %p105 = scmp.eq.s32.totalorder %s20, 1
    %p106 = por %p104, %p105
    %p108 = scmp.ne.s32.totalorder %s91, %s107
    %p109 = scmp.eq.s32.totalorder %s20, 0
    %p110 = por %p108, %p109
    %s112 = sadd.s32 %s111, 1
    %p115 = scmp.eq.s32.totalorder %s14, 1
    %p116 = scmp.ne.s32.totalorder %s111, %s113
    %p117 = scmp.eq.s32.totalorder %s14, 0
    %p118 = por %p116, %p117
    %p119 = scmp.ne.s32.totalorder %s111, %s113
    %p120 = scmp.eq.s32.totalorder %s19, 1
    %p121 = por %p119, %p120
    %p122 = scmp.ne.s32.totalorder %s113, %s114
    %p123 = scmp.eq.s32.totalorder %s19, 0
    %p124 = por %p122, %p123
    %p125 = scmp.ne.s32.totalorder %s113, %s114
    %p126 = scmp.eq.s32.totalorder %s20, 1
    %p127 = por %p125, %p126
    %p129 = scmp.ne.s32.totalorder %s114, %s128
    %p130 = scmp.eq.s32.totalorder %s20, 0
    %p131 = por %p129, %p130
    %s132 = sadd.s32 %s21, %s22
    %s133 = sadd.s32 %s33, %s29
    %s134 = ssub.s32 %s132, %s133
    %p135 = scmp.eq.s32.totalorder %s134, 0
    %s137 = sadd.s32 %s136, 1
    %s138 = scalar_select %p135, %s136, %s137
    %p141 = pneg %p135
    %p142 = scmp.eq.s32.totalorder %s14, 1
    %p143 = por %p141, %p142
    %p144 = scmp.ne.s32.totalorder %s136, %s139
    %p145 = scmp.eq.s32.totalorder %s14, 0
    %p146 = por %p144, %p145
    %p147 = scmp.ne.s32.totalorder %s136, %s139
    %p148 = scmp.eq.s32.totalorder %s19, 1
    %p149 = por %p147, %p148
    %p150 = scmp.ne.s32.totalorder %s139, %s140
    %p151 = scmp.eq.s32.totalorder %s19, 0
    %p152 = por %p150, %p151
    %p153 = scmp.ne.s32.totalorder %s139, %s140
    %p154 = scmp.eq.s32.totalorder %s20, 1
    %p155 = por %p153, %p154
    %p157 = scmp.ne.s32.totalorder %s140, %s156
    %p158 = scmp.eq.s32.totalorder %s20, 0
    %p159 = por %p157, %p158
    %s160 = sadd.s32 %s21, %s22
    %s161 = sadd.s32 %s33, %s29
    %s162 = ssub.s32 %s160, %s161
    %p163 = scmp.eq.s32.totalorder %s162, 0
    %s165 = sadd.s32 %s164, 1
    %s166 = scalar_select %p163, %s164, %s165
    %p169 = pneg %p163
    %p170 = scmp.eq.s32.totalorder %s14, 1
    %p171 = por %p169, %p170
    %p172 = scmp.ne.s32.totalorder %s164, %s167
    %p173 = scmp.eq.s32.totalorder %s14, 0
    %p174 = por %p172, %p173
    %p175 = scmp.ne.s32.totalorder %s164, %s167
    %p176 = scmp.eq.s32.totalorder %s19, 1
    %p177 = por %p175, %p176
    %p178 = scmp.ne.s32.totalorder %s167, %s168
    %p179 = scmp.eq.s32.totalorder %s19, 0
    %p180 = por %p178, %p179
    %p181 = scmp.ne.s32.totalorder %s167, %s168
    %p182 = scmp.eq.s32.totalorder %s20, 1
    %p183 = por %p181, %p182
    %p185 = scmp.ne.s32.totalorder %s168, %s184
    %p186 = scmp.eq.s32.totalorder %s20, 0
    %p187 = por %p185, %p186
    %s188 = ssub.s32 %s21, %s33
    %p189 = scmp.eq.s32.totalorder %s188, 0
    %s191 = sadd.s32 %s190, 1
    %s192 = scalar_select %p189, %s190, %s191
    %p195 = pneg %p189
    %p196 = scmp.eq.s32.totalorder %s14, 1
    %p197 = por %p195, %p196
    %p198 = scmp.ne.s32.totalorder %s190, %s193
    %p199 = scmp.eq.s32.totalorder %s14, 0
    %p200 = por %p198, %p199
    %p201 = scmp.ne.s32.totalorder %s190, %s193
    %p202 = scmp.eq.s32.totalorder %s19, 1
    %p203 = por %p201, %p202
    %p204 = scmp.ne.s32.totalorder %s193, %s194
    %p205 = scmp.eq.s32.totalorder %s19, 0
    %p206 = por %p204, %p205
    %p207 = scmp.ne.s32.totalorder %s193, %s194
    %p208 = scmp.eq.s32.totalorder %s20, 1
    %p209 = por %p207, %p208
    %p211 = scmp.ne.s32.totalorder %s194, %s210
    %p212 = scmp.eq.s32.totalorder %s20, 0
    %p213 = por %p211, %p212
    %s214 = ssub.s32 %s21, %s33
    %p215 = scmp.eq.s32.totalorder %s214, 0
    %s217 = sadd.s32 %s216, 1
    %s218 = scalar_select %p215, %s216, %s217
    %p221 = pneg %p215
    %p222 = scmp.eq.s32.totalorder %s14, 1
    %p223 = por %p221, %p222
    %p224 = scmp.ne.s32.totalorder %s216, %s219
    %p225 = scmp.eq.s32.totalorder %s14, 0
    %p226 = por %p224, %p225
    %p227 = scmp.ne.s32.totalorder %s216, %s219
    %p228 = scmp.eq.s32.totalorder %s19, 1
    %p229 = por %p227, %p228
    %p230 = scmp.ne.s32.totalorder %s219, %s220
    %p231 = scmp.eq.s32.totalorder %s19, 0
    %p232 = por %p230, %p231
    %p233 = scmp.ne.s32.totalorder %s219, %s220
    %p234 = scmp.eq.s32.totalorder %s20, 1
    %p235 = por %p233, %p234
    %p237 = scmp.ne.s32.totalorder %s220, %s236
    %p238 = scmp.eq.s32.totalorder %s20, 0
    %p239 = por %p237, %p238
    %p240 = scmp.le.s32.totalorder 1, %s14
    %p241 = scmp.lt.s32.totalorder %s14, 3
    %p242 = pnand %p240, %p241
    %p243 = pneg %p242
    // Predicated region
    $region9: #{conv_block_x2.6} parent=5 // pred_check
      _
    $region10: #{conv_block_x2.6} parent=5 // pred_check_branch
      %245 = sbr.rel (%p242) target = $region12
    $region11: #{conv_block_x2.6} parent=5 // pred_region
      %s246 = ssub.s32 %s14, 1
      // Predicated region
      $region13: #{conv_block_x2.6} parent=11 // pred_check
        %p247 = pneg %p75
      $region14: #{conv_block_x2.6} parent=11 // pred_check_branch
        %249 = sbr.rel (%p247) target = $region16
      $region15: #{conv_block_x2.6} parent=11 // pred_region
        _
      $region16: #{conv_block_x2.6} parent=11 // pred_fallthru
        _
      // Predicated region
      $region17: #{conv_block_x2.6} parent=11 // pred_check
        %p250 = pneg %p124
      $region18: #{conv_block_x2.6} parent=11 // pred_check_branch
        %252 = sbr.rel (%p250) target = $region20
      $region19: #{conv_block_x2.6} parent=11 // pred_region
        _
      $region20: #{conv_block_x2.6} parent=11 // pred_fallthru
        _
    $region12: #{conv_block_x2.6} parent=5 // pred_fallthru
      _
    %p253 = scmp.lt.s32.totalorder %s14, 2
    // Predicated region
    $region21: #{conv_block_x2.6} parent=5 // pred_check
      %p254 = pneg %p253
    $region22: #{conv_block_x2.6} parent=5 // pred_check_branch
      %256 = sbr.rel (%p254) target = $region24
    $region23: #{conv_block_x2.6} parent=5 // pred_region
      // Predicated region
      $region25: #{conv_block_x2.6} parent=23 // pred_check
        %p257 = pneg %p48
      $region26: #{conv_block_x2.6} parent=23 // pred_check_branch
        %259 = sbr.rel (%p257) target = $region28
      $region27: #{conv_block_x2.6} parent=23 // pred_region
        %s260 = sadd.s32 %s21, %s22
        %s261 = smul.u32 32, %s260
        %p262 = scmp.lt.s32.totalorder %s261, 63
        %s263 = scalar_select %p262, %s261, 63
        %s264 = smul.addr %s263, 4
        %s265 = scalar_lea.vmem %s0, %s264
        %s266 = sadd.s32 %s21, %s22
        %s267 = smul.u32 32, %s266
      $region28: #{conv_block_x2.6} parent=23 // pred_fallthru
        _
      // Predicated region
      $region29: #{conv_block_x2.6} parent=23 // pred_check
        %p268 = pneg %p97
      $region30: #{conv_block_x2.6} parent=23 // pred_check_branch
        %270 = sbr.rel (%p268) target = $region32
      $region31: #{conv_block_x2.6} parent=23 // pred_region
        %s271 = sadd.s32 %s21, %s22
        %s272 = smul.u32 32, %s271
        %p273 = scmp.lt.s32.totalorder %s272, 63
        %s274 = scalar_select %p273, %s272, 63
        %s275 = smul.addr %s274, 4
        %s276 = scalar_lea.vmem %s2, %s275
        %s277 = sadd.s32 %s21, %s22
        %s278 = smul.u32 32, %s277
      $region32: #{conv_block_x2.6} parent=23 // pred_fallthru
        _
    $region24: #{conv_block_x2.6} parent=5 // pred_fallthru
      _
    %p279 = scmp.le.s32.totalorder 1, %s14
    %p280 = scmp.lt.s32.totalorder %s14, 3
    %p281 = pnand %p279, %p280
    %p282 = pneg %p281
    // Predicated region
    $region33: #{conv_block_x2.6} parent=5 // pred_check
      _
    $region34: #{conv_block_x2.6} parent=5 // pred_check_branch
      %284 = sbr.rel (%p281) target = $region36
    $region35: #{conv_block_x2.6} parent=5 // pred_region
      %s285 = ssub.s32 %s14, 1
      %s286 = sadd.s32 %s23, %s24
      %s287 = smul.u32 32, %s286
      %p288 = scmp.lt.s32.totalorder %s287, 63
      %s289 = scalar_select %p288, %s287, 63
      %s290 = smul.addr %s289, 4
      %s291 = scalar_lea.vmem %s0, %s290
      %p292 = pneg %p54
      %p293 = pneg %p51
      %p294 = pneg %p75
      %p295 = pneg %p72
      %s296 = sadd.s32 %s23, %s24
      %s297 = smul.u32 32, %s296
      %p298 = scmp.lt.s32.totalorder %s297, 63
      %s299 = scalar_select %p298, %s297, 63
      %s300 = smul.addr %s299, 4
      %s301 = scalar_lea.vmem %s2, %s300
      %p302 = pneg %p103
      %p303 = pneg %p100
      %p304 = pneg %p124
      %p305 = pneg %p121
      %p306 = pneg %p152
      %p307 = pneg %p149
      %s308 = sadd.s32 %s23, %s24
      %s309 = smul.u32 32, %s308
      %p310 = scmp.lt.s32.totalorder %s309, 63
      %s311 = scalar_select %p310, %s309, 63
      %s312 = smul.addr %s311, 4
      %s313 = scalar_lea.vmem %s4, %s312
      %p314 = pneg %p180
      %p315 = pneg %p177
      %s316 = sadd.s32 %s23, %s24
      %s317 = smul.u32 32, %s316
      %p318 = scmp.lt.s32.totalorder %s317, 63
      %s319 = scalar_select %p318, %s317, 63
      %s320 = smul.addr %s319, 4
      %s321 = scalar_lea.vmem %s5, %s320
      %p322 = pneg %p206
      %p323 = pneg %p203
      %p324 = scmp.lt.s32.totalorder %s23, 1
      %s325 = scalar_select %p324, %s23, 1
      %s326 = smul.addr %s325, 8
      %s327 = scalar_lea.vmem %s6, %s326
      %p328 = pneg %p232
      %p329 = pneg %p229
      %p330 = scmp.lt.s32.totalorder %s23, 1
      %s331 = scalar_select %p330, %s23, 1
      %s332 = smul.addr %s331, 8
      %s333 = scalar_lea.vmem %s7, %s332
      %s334 = sadd.s32 %s23, %s24
      %s335 = smul.u32 32, %s334
      %p336 = scmp.lt.s32.totalorder %s335, 63
      %s337 = scalar_select %p336, %s335, 63
      %s338 = smul.addr %s337, 4
      %s339 = scalar_lea.vmem %s0, %s338
      %s340 = sadd.s32 %s23, %s24
      %s341 = smul.u32 32, %s340
      %s342 = sadd.s32 %s23, %s24
      %s343 = smul.u32 32, %s342
      %p344 = scmp.lt.s32.totalorder %s343, 63
      %s345 = scalar_select %p344, %s343, 63
      %s346 = smul.addr %s345, 4
      %s347 = scalar_lea.vmem %s2, %s346
      %s348 = sadd.s32 %s23, %s24
      %s349 = smul.u32 32, %s348
      %s350 = sadd.s32 %s23, %s24
      %s351 = smul.u32 32, %s350
      %p352 = scmp.lt.s32.totalorder %s351, 63
      %s353 = scalar_select %p352, %s351, 63
      %s354 = smul.addr %s353, 4
      %s355 = scalar_lea.vmem %s4, %s354
      %s356 = sadd.s32 %s23, %s24
      %s357 = smul.u32 32, %s356
      %s358 = sadd.s32 %s23, %s24
      %s359 = smul.u32 32, %s358
      %p360 = scmp.lt.s32.totalorder %s359, 63
      %s361 = scalar_select %p360, %s359, 63
      %s362 = smul.addr %s361, 4
      %s363 = scalar_lea.vmem %s5, %s362
      %s364 = sadd.s32 %s23, %s24
      %s365 = smul.u32 32, %s364
      %p366 = scmp.lt.s32.totalorder %s23, 1
      %s367 = scalar_select %p366, %s23, 1
      %s368 = smul.addr %s367, 8
      %s369 = scalar_lea.vmem %s6, %s368
      %p370 = scmp.lt.s32.totalorder %s23, 1
      %s371 = scalar_select %p370, %s23, 1
      %s372 = smul.addr %s371, 8
      %s373 = scalar_lea.vmem %s7, %s372
      %v375 = vld [vmem:[%s339] sm:$0xf]
      %v376 = vld [vmem:[%s339 + $0x4] sm:$0xf]
      %v377 = vld [vmem:[%s339 + $0x8] sm:$0xf]
      %v378 = vld [vmem:[%s339 + $0xc] sm:$0xf]
      %v379 = vld [vmem:[%s339 + $0x10] sm:$0xf]
      %v380 = vld [vmem:[%s339 + $0x14] sm:$0xf]
      %v381 = vld [vmem:[%s339 + $0x18] sm:$0xf]
      %v382 = vld [vmem:[%s339 + $0x1c] sm:$0xf]
      %v383 = vld [vmem:[%s339 + $0x20] sm:$0xf]
      %v384 = vld [vmem:[%s339 + $0x24] sm:$0xf]
      %v385 = vld [vmem:[%s339 + $0x28] sm:$0xf]
      %v386 = vld [vmem:[%s339 + $0x2c] sm:$0xf]
      %v387 = vld [vmem:[%s339 + $0x30] sm:$0xf]
      %v388 = vld [vmem:[%s339 + $0x34] sm:$0xf]
      %v389 = vld [vmem:[%s339 + $0x38] sm:$0xf]
      %v390 = vld [vmem:[%s339 + $0x3c] sm:$0xf]
      %v391 = vld [vmem:[%s339 + $0x40] sm:$0xf]
      %v392 = vld [vmem:[%s339 + $0x44] sm:$0xf]
      %v393 = vld [vmem:[%s339 + $0x48] sm:$0xf]
      %v394 = vld [vmem:[%s339 + $0x4c] sm:$0xf]
      %v395 = vld [vmem:[%s339 + $0x50] sm:$0xf]
      %v396 = vld [vmem:[%s339 + $0x54] sm:$0xf]
      %v397 = vld [vmem:[%s339 + $0x58] sm:$0xf]
      %v398 = vld [vmem:[%s339 + $0x5c] sm:$0xf]
      %v399 = vld [vmem:[%s339 + $0x60] sm:$0xf]
      %v400 = vld [vmem:[%s339 + $0x64] sm:$0xf]
      %v401 = vld [vmem:[%s339 + $0x68] sm:$0xf]
      %v402 = vld [vmem:[%s339 + $0x6c] sm:$0xf]
      %v403 = vld [vmem:[%s339 + $0x70] sm:$0xf]
      %v404 = vld [vmem:[%s339 + $0x74] sm:$0xf]
      %v405 = vld [vmem:[%s339 + $0x78] sm:$0xf]
      %v406 = vld [vmem:[%s339 + $0x7c] sm:$0xf]
      %v407 = vld [vmem:[%s1] sm:$0xf]
      %v408 = vld [vmem:[%s1 + $0x4] sm:$0xf]
      %v409 = vld [vmem:[%s1 + $0x8] sm:$0xf]
      %v410 = vld [vmem:[%s1 + $0xc] sm:$0xf]
      %v411 = vld [vmem:[%s1 + $0x10] sm:$0xf]
      %v412 = vld [vmem:[%s1 + $0x14] sm:$0xf]
      %v413 = vld [vmem:[%s1 + $0x18] sm:$0xf]
      %v414 = vld [vmem:[%s1 + $0x1c] sm:$0xf]
      %v415 = vld [vmem:[%s1 + $0x20] sm:$0xf]
      %v416 = vld [vmem:[%s1 + $0x24] sm:$0xf]
      %v449 = vunpack.c.l.b16 %v375
      %v450 = vunpack.c.l.b16 %v376
      %v451 = vunpack.c.l.b16 %v377
      %v452 = vunpack.c.l.b16 %v378
      %v453 = vunpack.c.l.b16 %v379
      %v454 = vunpack.c.l.b16 %v380
      %v455 = vunpack.c.l.b16 %v381
      %v456 = vunpack.c.l.b16 %v382
      %v457 = vunpack.c.l.b16 %v383
      %v458 = vunpack.c.l.b16 %v384
      %v459 = vunpack.c.l.b16 %v385
      %v460 = vunpack.c.l.b16 %v386
      %v461 = vunpack.c.l.b16 %v387
      %v462 = vunpack.c.l.b16 %v388
      %v463 = vunpack.c.l.b16 %v389
      %v464 = vunpack.c.l.b16 %v390
      %v465 = vunpack.c.l.b16 %v391
      %v466 = vunpack.c.l.b16 %v392
      %v467 = vunpack.c.l.b16 %v393
      %v468 = vunpack.c.l.b16 %v394
      %v469 = vunpack.c.l.b16 %v395
      %v470 = vunpack.c.l.b16 %v396
      %v471 = vunpack.c.l.b16 %v397
      %v472 = vunpack.c.l.b16 %v398
      %v473 = vunpack.c.l.b16 %v399
      %v474 = vunpack.c.l.b16 %v400
      %v475 = vunpack.c.l.b16 %v401
      %v476 = vunpack.c.l.b16 %v402
      %v477 = vunpack.c.l.b16 %v403
      %v478 = vunpack.c.l.b16 %v404
      %v479 = vunpack.c.l.b16 %v405
      %v480 = vunpack.c.l.b16 %v406
      %v481 = vpack.c.b16 %v450, %v449
      %v482 = vpack.c.b16 %v452, %v451
      %v483 = vpack.c.b16 %v454, %v453
      %v484 = vpack.c.b16 %v456, %v455
      %v485 = vpack.c.b16 %v458, %v457
      %v486 = vpack.c.b16 %v460, %v459
      %v487 = vpack.c.b16 %v462, %v461
      %v488 = vpack.c.b16 %v464, %v463
      %v489 = vpack.c.b16 %v466, %v465
      %v490 = vpack.c.b16 %v468, %v467
      %v491 = vpack.c.b16 %v470, %v469
      %v492 = vpack.c.b16 %v472, %v471
      %v493 = vpack.c.b16 %v474, %v473
      %v494 = vpack.c.b16 %v476, %v475
      %v495 = vpack.c.b16 %v478, %v477
      %v496 = vpack.c.b16 %v480, %v479
      %v507 = vunpack.c.l.b16 %v407
      %v508 = vunpack.c.l.b16 %v408
      %v509 = vunpack.c.l.b16 %v409
      %v510 = vunpack.c.l.b16 %v410
      %v511 = vunpack.c.l.b16 %v411
      %v512 = vunpack.c.l.b16 %v412
      %v513 = vunpack.c.l.b16 %v413
      %v514 = vunpack.c.l.b16 %v414
      %v515 = vunpack.c.l.b16 %v415
      %v516 = vunpack.c.l.b16 %v416
      %v517 = vpack.c.b16 %v508, %v507
      %v518 = vpack.c.b16 %v510, %v509
      %v519 = vpack.c.b16 %v512, %v511
      %v520 = vpack.c.b16 %v514, %v513
      %v521 = vpack.c.b16 %v516, %v515
      %vm527 = vcmask 654336
      %v529 = vsel %vm527, %v481, 0
      %v532 = vsel %vm527, %v482, 0
      %v535 = vsel %vm527, %v483, 0
      %v538 = vsel %vm527, %v484, 0
      %v541 = vsel %vm527, %v485, 0
      %v544 = vsel %vm527, %v486, 0
      %v547 = vsel %vm527, %v487, 0
      %v550 = vsel %vm527, %v488, 0
      %v553 = vsel %vm527, %v489, 0
      %v556 = vsel %vm527, %v490, 0
      %v559 = vsel %vm527, %v491, 0
      %v562 = vsel %vm527, %v492, 0
      %v565 = vsel %vm527, %v493, 0
      %v568 = vsel %vm527, %v494, 0
      %v571 = vsel %vm527, %v495, 0
      %v574 = vsel %vm527, %v496, 0
      %576 = vmatpush.bf16.msra.mxu0 0
      %577 = vmatpush.bf16.msra.mxu0 0
      %578 = vmatpush.bf16.msra.mxu0 0
      %579 = vmatpush.bf16.msra.mxu0 %v521
      %580 = vmatpush.bf16.msra.mxu0 %v520
      %581 = vmatpush.bf16.msra.mxu0 %v519
      %582 = vmatpush.bf16.msra.mxu0 %v518
      %583 = vmatpush.bf16.msra.mxu0 %v517
      %584 = vmatmul.bf16.gmra.mxu0 %v529
      %v585 = vpop.f32.mrf.mxu0
      %v586 = vadd.f32 0.0, %v585
      %v587 = vpop.f32.mrf.mxu0
      %v588 = vadd.f32 0.0, %v587
      %589 = vmatmul.bf16.gmra.mxu0 %v532
      %v590 = vpop.f32.mrf.mxu0
      %v591 = vadd.f32 0.0, %v590
      %v592 = vpop.f32.mrf.mxu0
      %v593 = vadd.f32 0.0, %v592
      %594 = vmatmul.bf16.gmra.mxu0 %v535
      %v595 = vpop.f32.mrf.mxu0
      %v596 = vadd.f32 0.0, %v595
      %v597 = vpop.f32.mrf.mxu0
      %v598 = vadd.f32 0.0, %v597
      %599 = vmatmul.bf16.gmra.mxu0 %v538
      %v600 = vpop.f32.mrf.mxu0
      %v601 = vadd.f32 0.0, %v600
      %v602 = vpop.f32.mrf.mxu0
      %v603 = vadd.f32 0.0, %v602
      %604 = vmatmul.bf16.gmra.mxu0 %v541
      %v605 = vpop.f32.mrf.mxu0
      %v606 = vadd.f32 0.0, %v605
      %v607 = vpop.f32.mrf.mxu0
      %v608 = vadd.f32 0.0, %v607
      %609 = vmatmul.bf16.gmra.mxu0 %v544
      %v610 = vpop.f32.mrf.mxu0
      %v611 = vadd.f32 0.0, %v610
      %v612 = vpop.f32.mrf.mxu0
      %v613 = vadd.f32 0.0, %v612
      %614 = vmatmul.bf16.gmra.mxu0 %v547
      %v615 = vpop.f32.mrf.mxu0
      %v616 = vadd.f32 0.0, %v615
      %v617 = vpop.f32.mrf.mxu0
      %v618 = vadd.f32 0.0, %v617
      %619 = vmatmul.bf16.gmra.mxu0 %v550
      %v620 = vpop.f32.mrf.mxu0
      %v621 = vadd.f32 0.0, %v620
      %v622 = vpop.f32.mrf.mxu0
      %v623 = vadd.f32 0.0, %v622
      %624 = vmatmul.bf16.gmra.mxu0 %v553
      %v625 = vpop.f32.mrf.mxu0
      %v626 = vadd.f32 0.0, %v625
      %v627 = vpop.f32.mrf.mxu0
      %v628 = vadd.f32 0.0, %v627
      %629 = vmatmul.bf16.gmra.mxu0 %v556
      %v630 = vpop.f32.mrf.mxu0
      %v631 = vadd.f32 0.0, %v630
      %v632 = vpop.f32.mrf.mxu0
      %v633 = vadd.f32 0.0, %v632
      %634 = vmatmul.bf16.gmra.mxu0 %v559
      %v635 = vpop.f32.mrf.mxu0
      %v636 = vadd.f32 0.0, %v635
      %v637 = vpop.f32.mrf.mxu0
      %v638 = vadd.f32 0.0, %v637
      %639 = vmatmul.bf16.gmra.mxu0 %v562
      %v640 = vpop.f32.mrf.mxu0
      %v641 = vadd.f32 0.0, %v640
      %v642 = vpop.f32.mrf.mxu0
      %v643 = vadd.f32 0.0, %v642
      %644 = vmatmul.bf16.gmra.mxu0 %v565
      %v645 = vpop.f32.mrf.mxu0
      %v646 = vadd.f32 0.0, %v645
      %v647 = vpop.f32.mrf.mxu0
      %v648 = vadd.f32 0.0, %v647
      %649 = vmatmul.bf16.gmra.mxu0 %v568
      %v650 = vpop.f32.mrf.mxu0
      %v651 = vadd.f32 0.0, %v650
      %v652 = vpop.f32.mrf.mxu0
      %v653 = vadd.f32 0.0, %v652
      %654 = vmatmul.bf16.gmra.mxu0 %v571
      %v655 = vpop.f32.mrf.mxu0
      %v656 = vadd.f32 0.0, %v655
      %v657 = vpop.f32.mrf.mxu0
      %v658 = vadd.f32 0.0, %v657
      %659 = vmatmul.bf16.gmra.mxu0 %v574
      %v660 = vpop.f32.mrf.mxu0
      %v661 = vadd.f32 0.0, %v660
      %v662 = vpop.f32.mrf.mxu0
      %v663 = vadd.f32 0.0, %v662
      %664 = vdwg.mxu0
      %v665 = vld [vmem:[%s347] sm:$0xf]
      %v666 = vld [vmem:[%s347 + $0x4] sm:$0xf]
      %v667 = vld [vmem:[%s347 + $0x8] sm:$0xf]
      %v668 = vld [vmem:[%s347 + $0xc] sm:$0xf]
      %v669 = vld [vmem:[%s347 + $0x10] sm:$0xf]
      %v670 = vld [vmem:[%s347 + $0x14] sm:$0xf]
      %v671 = vld [vmem:[%s347 + $0x18] sm:$0xf]
      %v672 = vld [vmem:[%s347 + $0x1c] sm:$0xf]
      %v673 = vld [vmem:[%s347 + $0x20] sm:$0xf]
      %v674 = vld [vmem:[%s347 + $0x24] sm:$0xf]
      %v675 = vld [vmem:[%s347 + $0x28] sm:$0xf]
      %v676 = vld [vmem:[%s347 + $0x2c] sm:$0xf]
      %v677 = vld [vmem:[%s347 + $0x30] sm:$0xf]
      %v678 = vld [vmem:[%s347 + $0x34] sm:$0xf]
      %v679 = vld [vmem:[%s347 + $0x38] sm:$0xf]
      %v680 = vld [vmem:[%s347 + $0x3c] sm:$0xf]
      %v681 = vld [vmem:[%s347 + $0x40] sm:$0xf]
      %v682 = vld [vmem:[%s347 + $0x44] sm:$0xf]
      %v683 = vld [vmem:[%s347 + $0x48] sm:$0xf]
      %v684 = vld [vmem:[%s347 + $0x4c] sm:$0xf]
      %v685 = vld [vmem:[%s347 + $0x50] sm:$0xf]
      %v686 = vld [vmem:[%s347 + $0x54] sm:$0xf]
      %v687 = vld [vmem:[%s347 + $0x58] sm:$0xf]
      %v688 = vld [vmem:[%s347 + $0x5c] sm:$0xf]
      %v689 = vld [vmem:[%s347 + $0x60] sm:$0xf]
      %v690 = vld [vmem:[%s347 + $0x64] sm:$0xf]
      %v691 = vld [vmem:[%s347 + $0x68] sm:$0xf]
      %v692 = vld [vmem:[%s347 + $0x6c] sm:$0xf]
      %v693 = vld [vmem:[%s347 + $0x70] sm:$0xf]
      %v694 = vld [vmem:[%s347 + $0x74] sm:$0xf]
      %v695 = vld [vmem:[%s347 + $0x78] sm:$0xf]
      %v696 = vld [vmem:[%s347 + $0x7c] sm:$0xf]
      %v697 = vld [vmem:[%s3] sm:$0xf]
      %v698 = vld [vmem:[%s3 + $0x4] sm:$0xf]
      %v731 = vunpack.c.l.b16 %v665
      %v732 = vunpack.c.l.b16 %v666
      %v733 = vunpack.c.l.b16 %v667
      %v734 = vunpack.c.l.b16 %v668
      %v735 = vunpack.c.l.b16 %v669
      %v736 = vunpack.c.l.b16 %v670
      %v737 = vunpack.c.l.b16 %v671
      %v738 = vunpack.c.l.b16 %v672
      %v739 = vunpack.c.l.b16 %v673
      %v740 = vunpack.c.l.b16 %v674
      %v741 = vunpack.c.l.b16 %v675
      %v742 = vunpack.c.l.b16 %v676
      %v743 = vunpack.c.l.b16 %v677
      %v744 = vunpack.c.l.b16 %v678
      %v745 = vunpack.c.l.b16 %v679
      %v746 = vunpack.c.l.b16 %v680
      %v747 = vunpack.c.l.b16 %v681
      %v748 = vunpack.c.l.b16 %v682
      %v749 = vunpack.c.l.b16 %v683
      %v750 = vunpack.c.l.b16 %v684
      %v751 = vunpack.c.l.b16 %v685
      %v752 = vunpack.c.l.b16 %v686
      %v753 = vunpack.c.l.b16 %v687
      %v754 = vunpack.c.l.b16 %v688
      %v755 = vunpack.c.l.b16 %v689
      %v756 = vunpack.c.l.b16 %v690
      %v757 = vunpack.c.l.b16 %v691
      %v758 = vunpack.c.l.b16 %v692
      %v759 = vunpack.c.l.b16 %v693
      %v760 = vunpack.c.l.b16 %v694
      %v761 = vunpack.c.l.b16 %v695
      %v762 = vunpack.c.l.b16 %v696
      %v763 = vpack.c.b16 %v732, %v731
      %v764 = vpack.c.b16 %v734, %v733
      %v765 = vpack.c.b16 %v736, %v735
      %v766 = vpack.c.b16 %v738, %v737
      %v767 = vpack.c.b16 %v740, %v739
      %v768 = vpack.c.b16 %v742, %v741
      %v769 = vpack.c.b16 %v744, %v743
      %v770 = vpack.c.b16 %v746, %v745
      %v771 = vpack.c.b16 %v748, %v747
      %v772 = vpack.c.b16 %v750, %v749
      %v773 = vpack.c.b16 %v752, %v751
      %v774 = vpack.c.b16 %v754, %v753
      %v775 = vpack.c.b16 %v756, %v755
      %v776 = vpack.c.b16 %v758, %v757
      %v777 = vpack.c.b16 %v760, %v759
      %v778 = vpack.c.b16 %v762, %v761
      %v781 = vunpack.c.l.b16 %v697
      %v782 = vunpack.c.l.b16 %v698
      %v783 = vpack.c.b16 %v782, %v781
      %vm785 = vcmask 130048
      %v787 = vsel %vm785, %v763, 0
      %v790 = vsel %vm785, %v764, 0
      %v793 = vsel %vm785, %v765, 0
      %v796 = vsel %vm785, %v766, 0
      %v799 = vsel %vm785, %v767, 0
      %v802 = vsel %vm785, %v768, 0
      %v805 = vsel %vm785, %v769, 0
      %v808 = vsel %vm785, %v770, 0
      %v811 = vsel %vm785, %v771, 0
      %v814 = vsel %vm785, %v772, 0
      %v817 = vsel %vm785, %v773, 0
      %v820 = vsel %vm785, %v774, 0
      %v823 = vsel %vm785, %v775, 0
      %v826 = vsel %vm785, %v776, 0
      %v829 = vsel %vm785, %v777, 0
      %v832 = vsel %vm785, %v778, 0
      %834 = vmatpush.bf16.msra.mxu0 0
      %835 = vmatpush.bf16.msra.mxu0 0
      %836 = vmatpush.bf16.msra.mxu0 0
      %837 = vmatpush.bf16.msra.mxu0 0
      %838 = vmatpush.bf16.msra.mxu0 0
      %839 = vmatpush.bf16.msra.mxu0 0
      %840 = vmatpush.bf16.msra.mxu0 0
      %841 = vmatpush.bf16.msra.mxu0 %v783
      %842 = vmatmul.bf16.gmra.mxu0 %v787
      %v843 = vpop.f32.mrf.mxu0
      %v844 = vadd.f32 0.0, %v843
      %v845 = vpop.f32.mrf.mxu0
      %v846 = vadd.f32 0.0, %v845
      %847 = vmatmul.bf16.gmra.mxu0 %v790
      %v848 = vpop.f32.mrf.mxu0
      %v849 = vadd.f32 0.0, %v848
      %v850 = vpop.f32.mrf.mxu0
      %v851 = vadd.f32 0.0, %v850
      %852 = vmatmul.bf16.gmra.mxu0 %v793
      %v853 = vpop.f32.mrf.mxu0
      %v854 = vadd.f32 0.0, %v853
      %v855 = vpop.f32.mrf.mxu0
      %v856 = vadd.f32 0.0, %v855
      %857 = vmatmul.bf16.gmra.mxu0 %v796
      %v858 = vpop.f32.mrf.mxu0
      %v859 = vadd.f32 0.0, %v858
      %v860 = vpop.f32.mrf.mxu0
      %v861 = vadd.f32 0.0, %v860
      %862 = vmatmul.bf16.gmra.mxu0 %v799
      %v863 = vpop.f32.mrf.mxu0
      %v864 = vadd.f32 0.0, %v863
      %v865 = vpop.f32.mrf.mxu0
      %v866 = vadd.f32 0.0, %v865
      %867 = vmatmul.bf16.gmra.mxu0 %v802
      %v868 = vpop.f32.mrf.mxu0
      %v869 = vadd.f32 0.0, %v868
      %v870 = vpop.f32.mrf.mxu0
      %v871 = vadd.f32 0.0, %v870
      %872 = vmatmul.bf16.gmra.mxu0 %v805
      %v873 = vpop.f32.mrf.mxu0
      %v874 = vadd.f32 0.0, %v873
      %v875 = vpop.f32.mrf.mxu0
      %v876 = vadd.f32 0.0, %v875
      %877 = vmatmul.bf16.gmra.mxu0 %v808
      %v878 = vpop.f32.mrf.mxu0
      %v879 = vadd.f32 0.0, %v878
      %v880 = vpop.f32.mrf.mxu0
      %v881 = vadd.f32 0.0, %v880
      %882 = vmatmul.bf16.gmra.mxu0 %v811
      %v883 = vpop.f32.mrf.mxu0
      %v884 = vadd.f32 0.0, %v883
      %v885 = vpop.f32.mrf.mxu0
      %v886 = vadd.f32 0.0, %v885
      %887 = vmatmul.bf16.gmra.mxu0 %v814
      %v888 = vpop.f32.mrf.mxu0
      %v889 = vadd.f32 0.0, %v888
      %v890 = vpop.f32.mrf.mxu0
      %v891 = vadd.f32 0.0, %v890
      %892 = vmatmul.bf16.gmra.mxu0 %v817
      %v893 = vpop.f32.mrf.mxu0
      %v894 = vadd.f32 0.0, %v893
      %v895 = vpop.f32.mrf.mxu0
      %v896 = vadd.f32 0.0, %v895
      %897 = vmatmul.bf16.gmra.mxu0 %v820
      %v898 = vpop.f32.mrf.mxu0
      %v899 = vadd.f32 0.0, %v898
      %v900 = vpop.f32.mrf.mxu0
      %v901 = vadd.f32 0.0, %v900
      %902 = vmatmul.bf16.gmra.mxu0 %v823
      %v903 = vpop.f32.mrf.mxu0
      %v904 = vadd.f32 0.0, %v903
      %v905 = vpop.f32.mrf.mxu0
      %v906 = vadd.f32 0.0, %v905
      %907 = vmatmul.bf16.gmra.mxu0 %v826
      %v908 = vpop.f32.mrf.mxu0
      %v909 = vadd.f32 0.0, %v908
      %v910 = vpop.f32.mrf.mxu0
      %v911 = vadd.f32 0.0, %v910
      %912 = vmatmul.bf16.gmra.mxu0 %v829
      %v913 = vpop.f32.mrf.mxu0
      %v914 = vadd.f32 0.0, %v913
      %v915 = vpop.f32.mrf.mxu0
      %v916 = vadd.f32 0.0, %v915
      %917 = vmatmul.bf16.gmra.mxu0 %v832
      %v918 = vpop.f32.mrf.mxu0
      %v919 = vadd.f32 0.0, %v918
      %v920 = vpop.f32.mrf.mxu0
      %v921 = vadd.f32 0.0, %v920
      %922 = vdwg.mxu0
      %v923 = vpack.c.bf16 %v586, %v586
      %v924 = vpack.c.bf16 %v588, %v588
      %v925 = vpack.c.bf16 %v591, %v591
      %v926 = vpack.c.bf16 %v593, %v593
      %v927 = vpack.c.bf16 %v596, %v596
      %v928 = vpack.c.bf16 %v598, %v598
      %v929 = vpack.c.bf16 %v601, %v601
      %v930 = vpack.c.bf16 %v603, %v603
      %v931 = vpack.c.bf16 %v606, %v606
      %v932 = vpack.c.bf16 %v608, %v608
      %v933 = vpack.c.bf16 %v611, %v611
      %v934 = vpack.c.bf16 %v613, %v613
      %v935 = vpack.c.bf16 %v616, %v616
      %v936 = vpack.c.bf16 %v618, %v618
      %v937 = vpack.c.bf16 %v621, %v621
      %v938 = vpack.c.bf16 %v623, %v623
      %v939 = vpack.c.bf16 %v626, %v626
      %v940 = vpack.c.bf16 %v628, %v628
      %v941 = vpack.c.bf16 %v631, %v631
      %v942 = vpack.c.bf16 %v633, %v633
      %v943 = vpack.c.bf16 %v636, %v636
      %v944 = vpack.c.bf16 %v638, %v638
      %v945 = vpack.c.bf16 %v641, %v641
      %v946 = vpack.c.bf16 %v643, %v643
      %v947 = vpack.c.bf16 %v646, %v646
      %v948 = vpack.c.bf16 %v648, %v648
      %v949 = vpack.c.bf16 %v651, %v651
      %v950 = vpack.c.bf16 %v653, %v653
      %v951 = vpack.c.bf16 %v656, %v656
      %v952 = vpack.c.bf16 %v658, %v658
      %v953 = vpack.c.bf16 %v661, %v661
      %v954 = vpack.c.bf16 %v663, %v663
      %955 = vst [vmem:[%s355] sm:$0xf] %v923
      %956 = vst [vmem:[%s355 + $0x4] sm:$0xf] %v924
      %957 = vst [vmem:[%s355 + $0x8] sm:$0xf] %v925
      %958 = vst [vmem:[%s355 + $0xc] sm:$0xf] %v926
      %959 = vst [vmem:[%s355 + $0x10] sm:$0xf] %v927
      %960 = vst [vmem:[%s355 + $0x14] sm:$0xf] %v928
      %961 = vst [vmem:[%s355 + $0x18] sm:$0xf] %v929
      %962 = vst [vmem:[%s355 + $0x1c] sm:$0xf] %v930
      %963 = vst [vmem:[%s355 + $0x20] sm:$0xf] %v931
      %964 = vst [vmem:[%s355 + $0x24] sm:$0xf] %v932
      %965 = vst [vmem:[%s355 + $0x28] sm:$0xf] %v933
      %966 = vst [vmem:[%s355 + $0x2c] sm:$0xf] %v934
      %967 = vst [vmem:[%s355 + $0x30] sm:$0xf] %v935
      %968 = vst [vmem:[%s355 + $0x34] sm:$0xf] %v936
      %969 = vst [vmem:[%s355 + $0x38] sm:$0xf] %v937
      %970 = vst [vmem:[%s355 + $0x3c] sm:$0xf] %v938
      %971 = vst [vmem:[%s355 + $0x40] sm:$0xf] %v939
      %972 = vst [vmem:[%s355 + $0x44] sm:$0xf] %v940
      %973 = vst [vmem:[%s355 + $0x48] sm:$0xf] %v941
      %974 = vst [vmem:[%s355 + $0x4c] sm:$0xf] %v942
      %975 = vst [vmem:[%s355 + $0x50] sm:$0xf] %v943
      %976 = vst [vmem:[%s355 + $0x54] sm:$0xf] %v944
      %977 = vst [vmem:[%s355 + $0x58] sm:$0xf] %v945
      %978 = vst [vmem:[%s355 + $0x5c] sm:$0xf] %v946
      %979 = vst [vmem:[%s355 + $0x60] sm:$0xf] %v947
      %980 = vst [vmem:[%s355 + $0x64] sm:$0xf] %v948
      %981 = vst [vmem:[%s355 + $0x68] sm:$0xf] %v949
      %982 = vst [vmem:[%s355 + $0x6c] sm:$0xf] %v950
      %983 = vst [vmem:[%s355 + $0x70] sm:$0xf] %v951
      %984 = vst [vmem:[%s355 + $0x74] sm:$0xf] %v952
      %985 = vst [vmem:[%s355 + $0x78] sm:$0xf] %v953
      %986 = vst [vmem:[%s355 + $0x7c] sm:$0xf] %v954
      %v987 = vpack.c.bf16 %v844, %v844
      %v988 = vpack.c.bf16 %v846, %v846
      %v989 = vpack.c.bf16 %v849, %v849
      %v990 = vpack.c.bf16 %v851, %v851
      %v991 = vpack.c.bf16 %v854, %v854
      %v992 = vpack.c.bf16 %v856, %v856
      %v993 = vpack.c.bf16 %v859, %v859
      %v994 = vpack.c.bf16 %v861, %v861
      %v995 = vpack.c.bf16 %v864, %v864
      %v996 = vpack.c.bf16 %v866, %v866
      %v997 = vpack.c.bf16 %v869, %v869
      %v998 = vpack.c.bf16 %v871, %v871
      %v999 = vpack.c.bf16 %v874, %v874
      %v1000 = vpack.c.bf16 %v876, %v876
      %v1001 = vpack.c.bf16 %v879, %v879
      %v1002 = vpack.c.bf16 %v881, %v881
      %v1003 = vpack.c.bf16 %v884, %v884
      %v1004 = vpack.c.bf16 %v886, %v886
      %v1005 = vpack.c.bf16 %v889, %v889
      %v1006 = vpack.c.bf16 %v891, %v891
      %v1007 = vpack.c.bf16 %v894, %v894
      %v1008 = vpack.c.bf16 %v896, %v896
      %v1009 = vpack.c.bf16 %v899, %v899
      %v1010 = vpack.c.bf16 %v901, %v901
      %v1011 = vpack.c.bf16 %v904, %v904
      %v1012 = vpack.c.bf16 %v906, %v906
      %v1013 = vpack.c.bf16 %v909, %v909
      %v1014 = vpack.c.bf16 %v911, %v911
      %v1015 = vpack.c.bf16 %v914, %v914
      %v1016 = vpack.c.bf16 %v916, %v916
      %v1017 = vpack.c.bf16 %v919, %v919
      %v1018 = vpack.c.bf16 %v921, %v921
      %1019 = vst [vmem:[%s363] sm:$0xf] %v987
      %1020 = vst [vmem:[%s363 + $0x4] sm:$0xf] %v988
      %1021 = vst [vmem:[%s363 + $0x8] sm:$0xf] %v989
      %1022 = vst [vmem:[%s363 + $0xc] sm:$0xf] %v990
      %1023 = vst [vmem:[%s363 + $0x10] sm:$0xf] %v991
      %1024 = vst [vmem:[%s363 + $0x14] sm:$0xf] %v992
      %1025 = vst [vmem:[%s363 + $0x18] sm:$0xf] %v993
      %1026 = vst [vmem:[%s363 + $0x1c] sm:$0xf] %v994
      %1027 = vst [vmem:[%s363 + $0x20] sm:$0xf] %v995
      %1028 = vst [vmem:[%s363 + $0x24] sm:$0xf] %v996
      %1029 = vst [vmem:[%s363 + $0x28] sm:$0xf] %v997
      %1030 = vst [vmem:[%s363 + $0x2c] sm:$0xf] %v998
      %1031 = vst [vmem:[%s363 + $0x30] sm:$0xf] %v999
      %1032 = vst [vmem:[%s363 + $0x34] sm:$0xf] %v1000
      %1033 = vst [vmem:[%s363 + $0x38] sm:$0xf] %v1001
      %1034 = vst [vmem:[%s363 + $0x3c] sm:$0xf] %v1002
      %1035 = vst [vmem:[%s363 + $0x40] sm:$0xf] %v1003
      %1036 = vst [vmem:[%s363 + $0x44] sm:$0xf] %v1004
      %1037 = vst [vmem:[%s363 + $0x48] sm:$0xf] %v1005
      %1038 = vst [vmem:[%s363 + $0x4c] sm:$0xf] %v1006
      %1039 = vst [vmem:[%s363 + $0x50] sm:$0xf] %v1007
      %1040 = vst [vmem:[%s363 + $0x54] sm:$0xf] %v1008
      %1041 = vst [vmem:[%s363 + $0x58] sm:$0xf] %v1009
      %1042 = vst [vmem:[%s363 + $0x5c] sm:$0xf] %v1010
      %1043 = vst [vmem:[%s363 + $0x60] sm:$0xf] %v1011
      %1044 = vst [vmem:[%s363 + $0x64] sm:$0xf] %v1012
      %1045 = vst [vmem:[%s363 + $0x68] sm:$0xf] %v1013
      %1046 = vst [vmem:[%s363 + $0x6c] sm:$0xf] %v1014
      %1047 = vst [vmem:[%s363 + $0x70] sm:$0xf] %v1015
      %1048 = vst [vmem:[%s363 + $0x74] sm:$0xf] %v1016
      %1049 = vst [vmem:[%s363 + $0x78] sm:$0xf] %v1017
      %1050 = vst [vmem:[%s363 + $0x7c] sm:$0xf] %v1018
      %p1051 = scmp.eq.s32.totalorder %s24, 0
      // Predicated region
      $region37: #{conv_block_x2.6} parent=35 // pred_check
        %p1052 = pneg %p1051
      $region38: #{conv_block_x2.6} parent=35 // pred_check_branch
        %1054 = sbr.rel (%p1052) target = $region40
      $region39: #{conv_block_x2.6} parent=35 // pred_region
        %1055 = vst [vmem:[#allocation2] sm:$0xff] 0.0
        %1056 = vst [vmem:[#allocation3] sm:$0xff] 0.0
      $region40: #{conv_block_x2.6} parent=35 // pred_fallthru
        _
      %v1057 = vld [vmem:[#allocation2] sm:$0x1]
      %v1058 = vadd.f32 %v586, %v588
      %v1059 = vadd.f32 %v1058, %v591
      %v1060 = vadd.f32 %v1059, %v593
      %v1061 = vadd.f32 %v1060, %v596
      %v1062 = vadd.f32 %v1061, %v598
      %v1063 = vadd.f32 %v1062, %v601
      %v1064 = vadd.f32 %v1063, %v603
      %v1065 = vadd.f32 %v1064, %v606
      %v1066 = vadd.f32 %v1065, %v608
      %v1067 = vadd.f32 %v1066, %v611
      %v1068 = vadd.f32 %v1067, %v613
      %v1069 = vadd.f32 %v1068, %v616
      %v1070 = vadd.f32 %v1069, %v618
      %v1071 = vadd.f32 %v1070, %v621
      %v1072 = vadd.f32 %v1071, %v623
      %v1073 = vadd.f32 %v1072, %v626
      %v1074 = vadd.f32 %v1073, %v628
      %v1075 = vadd.f32 %v1074, %v631
      %v1076 = vadd.f32 %v1075, %v633
      %v1077 = vadd.f32 %v1076, %v636
      %v1078 = vadd.f32 %v1077, %v638
      %v1079 = vadd.f32 %v1078, %v641
      %v1080 = vadd.f32 %v1079, %v643
      %v1081 = vadd.f32 %v1080, %v646
      %v1082 = vadd.f32 %v1081, %v648
      %v1083 = vadd.f32 %v1082, %v651
      %v1084 = vadd.f32 %v1083, %v653
      %v1085 = vadd.f32 %v1084, %v656
      %v1086 = vadd.f32 %v1085, %v658
      %v1087 = vadd.f32 %v1086, %v661
      %v1088 = vadd.f32 %v1087, %v663
      %v1089 = vrot.slane %v1088, 4
      %v1090 = vadd.f32 %v1088, %v1089
      %v1091 = vrot.slane %v1090, 2
      %v1092 = vadd.f32 %v1090, %v1091
      %v1093 = vrot.slane %v1092, 1
      %v1094 = vadd.f32 %v1092, %v1093
      %v1095 = vadd.f32 %v1057, %v1094
      %1096 = vst [vmem:[#allocation2] sm:$0x1] %v1095
      %v1097 = vld [vmem:[#allocation2 + $0x1] sm:$0x1]
      %v1098 = vmul.f32 %v586, %v586
      %v1099 = vmul.f32 %v588, %v588
      %v1100 = vmul.f32 %v591, %v591
      %v1101 = vmul.f32 %v593, %v593
      %v1102 = vmul.f32 %v596, %v596
      %v1103 = vmul.f32 %v598, %v598
      %v1104 = vmul.f32 %v601, %v601
      %v1105 = vmul.f32 %v603, %v603
      %v1106 = vmul.f32 %v606, %v606
      %v1107 = vmul.f32 %v608, %v608
      %v1108 = vmul.f32 %v611, %v611
      %v1109 = vmul.f32 %v613, %v613
      %v1110 = vmul.f32 %v616, %v616
      %v1111 = vmul.f32 %v618, %v618
      %v1112 = vmul.f32 %v621, %v621
      %v1113 = vmul.f32 %v623, %v623
      %v1114 = vmul.f32 %v626, %v626
      %v1115 = vmul.f32 %v628, %v628
      %v1116 = vmul.f32 %v631, %v631
      %v1117 = vmul.f32 %v633, %v633
      %v1118 = vmul.f32 %v636, %v636
      %v1119 = vmul.f32 %v638, %v638
      %v1120 = vmul.f32 %v641, %v641
      %v1121 = vmul.f32 %v643, %v643
      %v1122 = vmul.f32 %v646, %v646
      %v1123 = vmul.f32 %v648, %v648
      %v1124 = vmul.f32 %v651, %v651
      %v1125 = vmul.f32 %v653, %v653
      %v1126 = vmul.f32 %v656, %v656
      %v1127 = vmul.f32 %v658, %v658
      %v1128 = vmul.f32 %v661, %v661
      %v1129 = vmul.f32 %v663, %v663
      %v1130 = vadd.f32 %v1098, %v1099
      %v1131 = vadd.f32 %v1130, %v1100
      %v1132 = vadd.f32 %v1131, %v1101
      %v1133 = vadd.f32 %v1132, %v1102
      %v1134 = vadd.f32 %v1133, %v1103
      %v1135 = vadd.f32 %v1134, %v1104
      %v1136 = vadd.f32 %v1135, %v1105
      %v1137 = vadd.f32 %v1136, %v1106
      %v1138 = vadd.f32 %v1137, %v1107
      %v1139 = vadd.f32 %v1138, %v1108
      %v1140 = vadd.f32 %v1139, %v1109
      %v1141 = vadd.f32 %v1140, %v1110
      %v1142 = vadd.f32 %v1141, %v1111
      %v1143 = vadd.f32 %v1142, %v1112
      %v1144 = vadd.f32 %v1143, %v1113
      %v1145 = vadd.f32 %v1144, %v1114
      %v1146 = vadd.f32 %v1145, %v1115
      %v1147 = vadd.f32 %v1146, %v1116
      %v1148 = vadd.f32 %v1147, %v1117
      %v1149 = vadd.f32 %v1148, %v1118
      %v1150 = vadd.f32 %v1149, %v1119
      %v1151 = vadd.f32 %v1150, %v1120
      %v1152 = vadd.f32 %v1151, %v1121
      %v1153 = vadd.f32 %v1152, %v1122
      %v1154 = vadd.f32 %v1153, %v1123
      %v1155 = vadd.f32 %v1154, %v1124
      %v1156 = vadd.f32 %v1155, %v1125
      %v1157 = vadd.f32 %v1156, %v1126
      %v1158 = vadd.f32 %v1157, %v1127
      %v1159 = vadd.f32 %v1158, %v1128
      %v1160 = vadd.f32 %v1159, %v1129
      %v1161 = vrot.slane %v1160, 4
      %v1162 = vadd.f32 %v1160, %v1161
      %v1163 = vrot.slane %v1162, 2
      %v1164 = vadd.f32 %v1162, %v1163
      %v1165 = vrot.slane %v1164, 1
      %v1166 = vadd.f32 %v1164, %v1165
      %v1167 = vadd.f32 %v1097, %v1166
      %1168 = vst [vmem:[#allocation2 + $0x1] sm:$0x1] %v1167
      %v1169 = vld [vmem:[#allocation3] sm:$0x1]
      %v1170 = vadd.f32 %v844, %v846
      %v1171 = vadd.f32 %v1170, %v849
      %v1172 = vadd.f32 %v1171, %v851
      %v1173 = vadd.f32 %v1172, %v854
      %v1174 = vadd.f32 %v1173, %v856
      %v1175 = vadd.f32 %v1174, %v859
      %v1176 = vadd.f32 %v1175, %v861
      %v1177 = vadd.f32 %v1176, %v864
      %v1178 = vadd.f32 %v1177, %v866
      %v1179 = vadd.f32 %v1178, %v869
      %v1180 = vadd.f32 %v1179, %v871
      %v1181 = vadd.f32 %v1180, %v874
      %v1182 = vadd.f32 %v1181, %v876
      %v1183 = vadd.f32 %v1182, %v879
      %v1184 = vadd.f32 %v1183, %v881
      %v1185 = vadd.f32 %v1184, %v884
      %v1186 = vadd.f32 %v1185, %v886
      %v1187 = vadd.f32 %v1186, %v889
      %v1188 = vadd.f32 %v1187, %v891
      %v1189 = vadd.f32 %v1188, %v894
      %v1190 = vadd.f32 %v1189, %v896
      %v1191 = vadd.f32 %v1190, %v899
      %v1192 = vadd.f32 %v1191, %v901
      %v1193 = vadd.f32 %v1192, %v904
      %v1194 = vadd.f32 %v1193, %v906
      %v1195 = vadd.f32 %v1194, %v909
      %v1196 = vadd.f32 %v1195, %v911
      %v1197 = vadd.f32 %v1196, %v914
      %v1198 = vadd.f32 %v1197, %v916
      %v1199 = vadd.f32 %v1198, %v919
      %v1200 = vadd.f32 %v1199, %v921
      %v1201 = vrot.slane %v1200, 4
      %v1202 = vadd.f32 %v1200, %v1201
      %v1203 = vrot.slane %v1202, 2
      %v1204 = vadd.f32 %v1202, %v1203
      %v1205 = vrot.slane %v1204, 1
      %v1206 = vadd.f32 %v1204, %v1205
      %v1207 = vadd.f32 %v1169, %v1206
      %1208 = vst [vmem:[#allocation3] sm:$0x1] %v1207
      %v1209 = vld [vmem:[#allocation3 + $0x1] sm:$0x1]
      %v1210 = vmul.f32 %v844, %v844
      %v1211 = vmul.f32 %v846, %v846
      %v1212 = vmul.f32 %v849, %v849
      %v1213 = vmul.f32 %v851, %v851
      %v1214 = vmul.f32 %v854, %v854
      %v1215 = vmul.f32 %v856, %v856
      %v1216 = vmul.f32 %v859, %v859
      %v1217 = vmul.f32 %v861, %v861
      %v1218 = vmul.f32 %v864, %v864
      %v1219 = vmul.f32 %v866, %v866
      %v1220 = vmul.f32 %v869, %v869
      %v1221 = vmul.f32 %v871, %v871
      %v1222 = vmul.f32 %v874, %v874
      %v1223 = vmul.f32 %v876, %v876
      %v1224 = vmul.f32 %v879, %v879
      %v1225 = vmul.f32 %v881, %v881
      %v1226 = vmul.f32 %v884, %v884
      %v1227 = vmul.f32 %v886, %v886
      %v1228 = vmul.f32 %v889, %v889
      %v1229 = vmul.f32 %v891, %v891
      %v1230 = vmul.f32 %v894, %v894
      %v1231 = vmul.f32 %v896, %v896
      %v1232 = vmul.f32 %v899, %v899
      %v1233 = vmul.f32 %v901, %v901
      %v1234 = vmul.f32 %v904, %v904
      %v1235 = vmul.f32 %v906, %v906
      %v1236 = vmul.f32 %v909, %v909
      %v1237 = vmul.f32 %v911, %v911
      %v1238 = vmul.f32 %v914, %v914
      %v1239 = vmul.f32 %v916, %v916
      %v1240 = vmul.f32 %v919, %v919
      %v1241 = vmul.f32 %v921, %v921
      %v1242 = vadd.f32 %v1210, %v1211
      %v1243 = vadd.f32 %v1242, %v1212
      %v1244 = vadd.f32 %v1243, %v1213
      %v1245 = vadd.f32 %v1244, %v1214
      %v1246 = vadd.f32 %v1245, %v1215
      %v1247 = vadd.f32 %v1246, %v1216
      %v1248 = vadd.f32 %v1247, %v1217
      %v1249 = vadd.f32 %v1248, %v1218
      %v1250 = vadd.f32 %v1249, %v1219
      %v1251 = vadd.f32 %v1250, %v1220
      %v1252 = vadd.f32 %v1251, %v1221
      %v1253 = vadd.f32 %v1252, %v1222
      %v1254 = vadd.f32 %v1253, %v1223
      %v1255 = vadd.f32 %v1254, %v1224
      %v1256 = vadd.f32 %v1255, %v1225
      %v1257 = vadd.f32 %v1256, %v1226
      %v1258 = vadd.f32 %v1257, %v1227
      %v1259 = vadd.f32 %v1258, %v1228
      %v1260 = vadd.f32 %v1259, %v1229
      %v1261 = vadd.f32 %v1260, %v1230
      %v1262 = vadd.f32 %v1261, %v1231
      %v1263 = vadd.f32 %v1262, %v1232
      %v1264 = vadd.f32 %v1263, %v1233
      %v1265 = vadd.f32 %v1264, %v1234
      %v1266 = vadd.f32 %v1265, %v1235
      %v1267 = vadd.f32 %v1266, %v1236
      %v1268 = vadd.f32 %v1267, %v1237
      %v1269 = vadd.f32 %v1268, %v1238
      %v1270 = vadd.f32 %v1269, %v1239
      %v1271 = vadd.f32 %v1270, %v1240
      %v1272 = vadd.f32 %v1271, %v1241
      %v1273 = vrot.slane %v1272, 4
      %v1274 = vadd.f32 %v1272, %v1273
      %v1275 = vrot.slane %v1274, 2
      %v1276 = vadd.f32 %v1274, %v1275
      %v1277 = vrot.slane %v1276, 1
      %v1278 = vadd.f32 %v1276, %v1277
      %v1279 = vadd.f32 %v1209, %v1278
      %1280 = vst [vmem:[#allocation3 + $0x1] sm:$0x1] %v1279
      // Predicated region
      $region41: #{conv_block_x2.6} parent=35 // pred_check
        %p1281 = pneg %p1051
      $region42: #{conv_block_x2.6} parent=35 // pred_check_branch
        %1283 = sbr.rel (%p1281) target = $region44
      $region43: #{conv_block_x2.6} parent=35 // pred_region
        %v1284 = vld [vmem:[#allocation2] sm:$0xff]
        %1285 = vst [vmem:[%s369] sm:$0xff] %v1284
        %v1286 = vld [vmem:[#allocation3] sm:$0xff]
        %1287 = vst [vmem:[%s373] sm:$0xff] %v1286
      $region44: #{conv_block_x2.6} parent=35 // pred_fallthru
        _
      %s1288 = sadd.s32 %s23, %s24
      %s1289 = smul.u32 32, %s1288
      %p1290 = scmp.lt.s32.totalorder %s1289, 63
      %s1291 = scalar_select %p1290, %s1289, 63
      %s1292 = smul.addr %s1291, 4
      %s1293 = scalar_lea.vmem %s4, %s1292
      %s1294 = sadd.s32 %s23, %s24
      %s1295 = smul.u32 32, %s1294
      %p1296 = scmp.lt.s32.totalorder %s1295, 63
      %s1297 = scalar_select %p1296, %s1295, 63
      %s1298 = smul.addr %s1297, 4
      %s1299 = scalar_lea.vmem %s5, %s1298
      %p1300 = scmp.lt.s32.totalorder %s23, 1
      %s1301 = scalar_select %p1300, %s23, 1
      %s1302 = smul.addr %s1301, 8
      %s1303 = scalar_lea.vmem %s6, %s1302
      %p1304 = scmp.lt.s32.totalorder %s23, 1
      %s1305 = scalar_select %p1304, %s23, 1
      %s1306 = smul.addr %s1305, 8
      %s1307 = scalar_lea.vmem %s7, %s1306
      // Predicated region
      $region45: #{conv_block_x2.6} parent=35 // pred_check
        %p1308 = pneg %p149
      $region46: #{conv_block_x2.6} parent=35 // pred_check_branch
        %1310 = sbr.rel (%p1308) target = $region48
      $region47: #{conv_block_x2.6} parent=35 // pred_region
        %s1311 = sadd.s32 %s23, %s24
        %s1312 = smul.u32 32, %s1311
      $region48: #{conv_block_x2.6} parent=35 // pred_fallthru
        _
      // Predicated region
      $region49: #{conv_block_x2.6} parent=35 // pred_check
        %p1313 = pneg %p177
      $region50: #{conv_block_x2.6} parent=35 // pred_check_branch
        %1315 = sbr.rel (%p1313) target = $region52
      $region51: #{conv_block_x2.6} parent=35 // pred_region
        %s1316 = sadd.s32 %s23, %s24
        %s1317 = smul.u32 32, %s1316
      $region52: #{conv_block_x2.6} parent=35 // pred_fallthru
        _
      // Predicated region
      $region53: #{conv_block_x2.6} parent=35 // pred_check
        %p1318 = pneg %p203
      $region54: #{conv_block_x2.6} parent=35 // pred_check_branch
        %1320 = sbr.rel (%p1318) target = $region56
      $region55: #{conv_block_x2.6} parent=35 // pred_region
        _
      $region56: #{conv_block_x2.6} parent=35 // pred_fallthru
        _
      // Predicated region
      $region57: #{conv_block_x2.6} parent=35 // pred_check
        %p1321 = pneg %p229
      $region58: #{conv_block_x2.6} parent=35 // pred_check_branch
        %1323 = sbr.rel (%p1321) target = $region60
      $region59: #{conv_block_x2.6} parent=35 // pred_region
        _
      $region60: #{conv_block_x2.6} parent=35 // pred_fallthru
        _
    $region36: #{conv_block_x2.6} parent=5 // pred_fallthru
      _
    %p1324 = scmp.le.s32.totalorder 2, %s14
    // Predicated region
    $region61: #{conv_block_x2.6} parent=5 // pred_check
      %p1325 = pneg %p1324
    $region62: #{conv_block_x2.6} parent=5 // pred_check_branch
      %1327 = sbr.rel (%p1325) target = $region64
    $region63: #{conv_block_x2.6} parent=5 // pred_region
      %s1328 = ssub.s32 %s14, 2
      // Predicated region
      $region65: #{conv_block_x2.6} parent=63 // pred_check
        %p1329 = pneg %p155
      $region66: #{conv_block_x2.6} parent=63 // pred_check_branch
        %1331 = sbr.rel (%p1329) target = $region68
      $region67: #{conv_block_x2.6} parent=63 // pred_region
        %s1332 = sadd.s32 %s25, %s26
        %s1333 = smul.u32 32, %s1332
        %p1334 = scmp.lt.s32.totalorder %s1333, 63
        %s1335 = scalar_select %p1334, %s1333, 63
        %s1336 = smul.addr %s1335, 4
        %s1337 = scalar_lea.vmem %s4, %s1336
      $region68: #{conv_block_x2.6} parent=63 // pred_fallthru
        _
      // Predicated region
      $region69: #{conv_block_x2.6} parent=63 // pred_check
        %p1338 = pneg %p183
      $region70: #{conv_block_x2.6} parent=63 // pred_check_branch
        %1340 = sbr.rel (%p1338) target = $region72
      $region71: #{conv_block_x2.6} parent=63 // pred_region
        %s1341 = sadd.s32 %s25, %s26
        %s1342 = smul.u32 32, %s1341
        %p1343 = scmp.lt.s32.totalorder %s1342, 63
        %s1344 = scalar_select %p1343, %s1342, 63
        %s1345 = smul.addr %s1344, 4
        %s1346 = scalar_lea.vmem %s5, %s1345
      $region72: #{conv_block_x2.6} parent=63 // pred_fallthru
        _
      // Predicated region
      $region73: #{conv_block_x2.6} parent=63 // pred_check
        %p1347 = pneg %p209
      $region74: #{conv_block_x2.6} parent=63 // pred_check_branch
        %1349 = sbr.rel (%p1347) target = $region76
      $region75: #{conv_block_x2.6} parent=63 // pred_region
        %p1350 = scmp.lt.s32.totalorder %s25, 1
        %s1351 = scalar_select %p1350, %s25, 1
        %s1352 = smul.addr %s1351, 8
        %s1353 = scalar_lea.vmem %s6, %s1352
      $region76: #{conv_block_x2.6} parent=63 // pred_fallthru
        _
      // Predicated region
      $region77: #{conv_block_x2.6} parent=63 // pred_check
        %p1354 = pneg %p235
      $region78: #{conv_block_x2.6} parent=63 // pred_check_branch
        %1356 = sbr.rel (%p1354) target = $region80
      $region79: #{conv_block_x2.6} parent=63 // pred_region
        %p1357 = scmp.lt.s32.totalorder %s25, 1
        %s1358 = scalar_select %p1357, %s25, 1
        %s1359 = smul.addr %s1358, 8
        %s1360 = scalar_lea.vmem %s7, %s1359
      $region80: #{conv_block_x2.6} parent=63 // pred_fallthru
        _
    $region64: #{conv_block_x2.6} parent=5 // pred_fallthru
      _
  $region6: #{conv_block_x2.6} parent=0 // loop_footer
    %s18 = sadd.s32 1, %s14
  $region7: #{conv_block_x2.6} parent=0 // loop_footer_branch
    %13 = sbr.rel target = $region3
  $region8: #{conv_block_x2.6} parent=0 // loop_exit
    _

</llo_original>
